<compile_context>
chip_gen: v6e
topology: v6e:2x2x1
jax: 0.10.0
libtpu: 0.0.40
codegen_flags: <defaults>
</compile_context>

<pallas_src>
import jax
import jax.numpy as jnp
from jax.experimental import pallas as pl
from jax.experimental.pallas import tpu as pltpu


def _round_up(x, m):
    return ((x + m - 1) // m) * m


def _lstm_gates(gates, c, Hp):
    """LSTM gate math; gate column order is [i, f, o, g], each Hp lanes wide."""
    sg = jax.nn.sigmoid(gates[:, :3 * Hp])       # one contiguous sigmoid (i,f,o)
    i_g = sg[:, 0 * Hp:1 * Hp]
    f_g = sg[:, 1 * Hp:2 * Hp]
    o_g = sg[:, 2 * Hp:3 * Hp]
    g_g = jnp.tanh(gates[:, 3 * Hp:4 * Hp])
    c_new = f_g * c + i_g * g_g
    h_new = o_g * jnp.tanh(c_new)
    return h_new, c_new


def seq2seq_tsp_kernel(tokens_ref, emb_ref,
                       e_wih_ref, e_whh_ref, e_b_ref,
                       d_embw_ref, d_embb_ref,
                       d_w_ref, d_b_ref,
                       out_w_ref, out_b_ref,
                       paths_ref, logp_ref):
    B, S = tokens_ref.shape          # B = batch block (multiple of 8)
    Vp, Hp = emb_ref.shape           # padded vocab / padded hidden (128-aligned)
    Ap = out_w_ref.shape[1]          # padded action head (128-aligned)
    f32 = jnp.float32
    neg_inf = jnp.float32(-jnp.inf)

    tokens = tokens_ref[...]
    emb = emb_ref[...]
    e_wih, e_whh, e_b = e_wih_ref[...], e_whh_ref[...], e_b_ref[...]
    d_embw, d_embb = d_embw_ref[...], d_embb_ref[...]
    d_w, d_b = d_w_ref[...], d_b_ref[...]
    out_w, out_b = out_w_ref[...], out_b_ref[...]

    # ------------------------- Encoder -------------------------
    # Hoisted non-recurrent work: one-hot for all (S*B) tokens, one embedding
    # matmul, one input-projection matmul.  Only h @ w_hh stays in the loop.
    # TODO(synk): nn.Dropout(0.1) implemented as identity (eval-mode semantics).
    vocab_iota = jax.lax.broadcasted_iota(jnp.int32, (B, Vp), 1)
    onehot_all = jnp.concatenate(
        [(vocab_iota == tokens[:, t:t + 1]).astype(f32) for t in range(S)],
        axis=0)                                                    # (S*B, Vp)
    x_all = jnp.dot(onehot_all, emb, preferred_element_type=f32)   # (S*B, Hp)
    xproj_all = (jnp.dot(x_all, e_wih, preferred_element_type=f32)
                 + e_b)                                            # (S*B, 4Hp)

    h = jnp.zeros((B, Hp), f32)
    c = jnp.zeros((B, Hp), f32)
    for t in range(S):
        gates = xproj_all[t * B:(t + 1) * B, :] + jnp.dot(
            h, e_whh, preferred_element_type=f32)
        h, c = _lstm_gates(gates, c, Hp)

    # ------------------------- Decoder -------------------------
    # Greedy decode with visited-mask; decoder LSTM initialized with the
    # encoder's final (h, c).  Recurrent matmuls are fused via [x, h] @ d_w.
    dec_input = jnp.ones((B, 1), f32)                  # torch.ones(B, 1)
    mask = jnp.zeros((B, Ap), f32)
    lane_iota = jax.lax.broadcasted_iota(jnp.int32, (B, Ap), 1)
    out_iota = jax.lax.broadcasted_iota(jnp.int32, (B, S), 1)
    paths_acc = jnp.zeros((B, S), f32)
    logp_acc = jnp.zeros((B, S), f32)
    chosen = None                                      # (B, 1) int32 after step 0

    for step in range(S):
        # forward_step: Linear(1, H) -> ReLU -> LSTM (fused) -> Linear(H, S)
        x = jax.nn.relu(dec_input * d_embw + d_embb)   # (B, Hp)
        xh = jnp.concatenate([x, h], axis=-1)          # (B, 2Hp)
        gates = jnp.dot(xh, d_w, preferred_element_type=f32) + d_b
        h, c = _lstm_gates(gates, c, Hp)
        logits = (jnp.dot(h, out_w, preferred_element_type=f32)
                  + out_b)                             # (B, Ap), pads are -inf

        # next decoder input = argmax of the RAW (unmasked) logits (topk(1))
        raw_max = jnp.max(logits, axis=-1, keepdims=True)
        raw_idx = jnp.min(jnp.where(logits == raw_max, lane_iota, Ap),
                          axis=-1, keepdims=True)      # first-max index
        dec_input = raw_idx.astype(f32)

        # apply_mask_to_logits (mutates the logits used by log_softmax below)
        if chosen is None:
            # logits[:, :] = -inf ; logits[:, :, 0] = 1 ; mask unchanged
            masked = jnp.where(lane_iota == 0, jnp.float32(1.0), neg_inf)
        else:
            mask = jnp.where(lane_iota == chosen, jnp.float32(1.0), mask)
            masked = jnp.where(mask > 0.5, neg_inf, logits)

        m = jnp.max(masked, axis=-1, keepdims=True)
        chosen = jnp.min(jnp.where(masked == m, lane_iota, Ap),
                         axis=-1, keepdims=True)       # (B, 1) masked argmax

        # log_softmax over the (masked) logits, gather at chosen index
        shifted = masked - m
        lse = jnp.log(jnp.sum(jnp.exp(shifted), axis=-1, keepdims=True))
        logp = jnp.sum(jnp.where(lane_iota == chosen, shifted - lse,
                                 jnp.float32(0.0)),
                       axis=-1, keepdims=True)         # (B, 1)

        # accumulate outputs directly into (B, S) vregs (no final concat)
        sel_step = (out_iota == step)
        paths_acc = jnp.where(sel_step, chosen.astype(f32), paths_acc)
        logp_acc = jnp.where(sel_step, logp, logp_acc)

    paths_ref[...] = paths_acc
    logp_ref[...] = logp_acc


def prepare_params(params):
    """Pad / reorder logical params into the lane-aligned kernel layout.

    - hidden dim padded to Hp (>=128), vocab to Vp (>=128), head to Ap (>=128)
    - gate columns reordered from PyTorch [i, f, g, o] to [i, f, o, g]
    - decoder w_ih / w_hh stacked into one (2Hp, 4Hp) matrix
    - out_b padded with -inf so padded action lanes never win argmax/softmax
    All padded weight rows/columns are zero so padded hidden lanes stay 0.
    """
    H = params["e_whh"].shape[0]
    V = params["emb"].shape[0]
    S = params["out_w"].shape[1]
    Hp = _round_up(max(H, 128), 128)
    Vp = _round_up(max(V, 128), 128)
    Ap = _round_up(max(S, 128), 128)

    def pad2(a, shape, fill=0.0):
        out = jnp.full(shape, fill, dtype=a.dtype)
        return out.at[:a.shape[0], :a.shape[1]].set(a)

    def pad_gates(w, rows_pad):
        # w: (rows, 4H) in [i,f,g,o] order -> (rows_pad, 4Hp) in [i,f,o,g]
        blocks = [w[:, k * H:(k + 1) * H] for k in (0, 1, 3, 2)]
        return jnp.concatenate([pad2(b, (rows_pad, Hp)) for b in blocks],
                               axis=1)

    d_wih_p = pad_gates(params["d_wih"], Hp)
    d_whh_p = pad_gates(params["d_whh"], Hp)
    return {
        "emb":    pad2(params["emb"], (Vp, Hp)),
        "e_wih":  pad_gates(params["e_wih"], Hp),
        "e_whh":  pad_gates(params["e_whh"], Hp),
        "e_b":    pad_gates(params["e_b"], 1),
        "d_embw": pad2(params["d_embw"], (1, Hp)),
        "d_embb": pad2(params["d_embb"], (1, Hp)),
        "d_w":    jnp.concatenate([d_wih_p, d_whh_p], axis=0),   # (2Hp, 4Hp)
        "d_b":    pad_gates(params["d_b"], 1),
        "out_w":  pad2(params["out_w"], (Hp, Ap)),
        "out_b":  pad2(params["out_b"], (1, Ap), fill=-jnp.inf),
    }


def seq2seq_tsp_forward(tokens, params):
    B, S = tokens.shape
    prep = prepare_params(params)

    # Pad batch to fill the 8-sublane vreg rows; block the batch so the grid
    # axis can shard across TensorCores ("parallel") when B is large.
    B_pad = _round_up(max(B, 8), 8)
    block_b = B_pad if B_pad <= 128 else 128
    B_pad = _round_up(B_pad, block_b)
    tokens_p = jnp.zeros((B_pad, S), jnp.int32).at[:B, :].set(tokens)

    arg_order = ("emb", "e_wih", "e_whh", "e_b",
                 "d_embw", "d_embb", "d_w", "d_b", "out_w", "out_b")
    weights = tuple(prep[k] for k in arg_order)

    tok_spec = pl.BlockSpec((block_b, S), lambda b: (b, 0))
    w_specs = [pl.BlockSpec(w.shape, lambda b: (0, 0)) for w in weights]
    out_spec = pl.BlockSpec((block_b, S), lambda b: (b, 0))

    paths_p, logp_p = pl.pallas_call(
        seq2seq_tsp_kernel,
        out_shape=(jax.ShapeDtypeStruct((B_pad, S), jnp.float32),
                   jax.ShapeDtypeStruct((B_pad, S), jnp.float32)),
        grid=(B_pad // block_b,),
        in_specs=[tok_spec] + w_specs,
        out_specs=(out_spec, out_spec),
        compiler_params=pltpu.CompilerParams(
            dimension_semantics=("parallel",)),
    )(tokens_p, *weights)

    paths = paths_p[:B]
    logp = logp_p[:B]
    # Match PyTorch output shapes: paths (B,1,S), path_logp (B,S,1)
    return paths.reshape(B, 1, S), logp.reshape(B, S, 1)


def init_params(key, input_dim, hidden_dim, seq_len):
    """Logical (unpadded) parameters; PyTorch gate order [i, f, g, o]."""
    H = hidden_dim
    ks = jax.random.split(key, 12)
    u = lambda k, shape, s: jax.random.uniform(k, shape, jnp.float32, -s, s)
    scale = 1.0 / jnp.sqrt(H)
    return {
        # Encoder
        "emb":    jax.random.normal(ks[0], (input_dim, H), jnp.float32),
        "e_wih":  u(ks[1], (H, 4 * H), scale),
        "e_whh":  u(ks[2], (H, 4 * H), scale),
        "e_b":    u(ks[3], (1, 4 * H), scale),   # b_ih + b_hh folded together
        # Decoder
        "d_embw": u(ks[4], (1, H), 1.0),         # Linear(1, H) weight (transposed)
        "d_embb": u(ks[5], (1, H), 1.0),
        "d_wih":  u(ks[6], (H, 4 * H), scale),
        "d_whh":  u(ks[7], (H, 4 * H), scale),
        "d_b":    u(ks[8], (1, 4 * H), scale),
        "out_w":  u(ks[9], (H, seq_len), scale), # Linear(H, n_action) (transposed)
        "out_b":  u(ks[10], (1, seq_len), scale),
    }


if __name__ == "__main__":
    input_dim = 16      # vocabulary size for nn.Embedding
    hidden_dim = 32
    seq_len = 8         # sequence_length == n_action
    batch = 2

    key = jax.random.PRNGKey(0)
    k_tok, k_par = jax.random.split(key)
    tokens = jax.random.randint(k_tok, (batch, seq_len), 0, input_dim, jnp.int32)
    params = init_params(k_par, input_dim, hidden_dim, seq_len)

    paths, path_logp = seq2seq_tsp_forward(tokens, params)
    jax.block_until_ready((paths, path_logp))

    assert paths.shape == (batch, 1, seq_len)
    assert path_logp.shape == (batch, seq_len, 1)
    print("KERNEL_OK")
</pallas_src>

<mosaic_0001>
module attributes {stable_mosaic.version = 11 : i64} {
  func.func @seq2seq_tsp_kernel(%arg0: i32, %arg1: memref<8x8xi32, #tpu.memory_space<vmem>>, %arg2: memref<128x128xf32, #tpu.memory_space<vmem>>, %arg3: memref<128x512xf32, #tpu.memory_space<vmem>>, %arg4: memref<128x512xf32, #tpu.memory_space<vmem>>, %arg5: memref<1x512xf32, #tpu.memory_space<vmem>>, %arg6: memref<1x128xf32, #tpu.memory_space<vmem>>, %arg7: memref<1x128xf32, #tpu.memory_space<vmem>>, %arg8: memref<256x512xf32, #tpu.memory_space<vmem>>, %arg9: memref<1x512xf32, #tpu.memory_space<vmem>>, %arg10: memref<128x128xf32, #tpu.memory_space<vmem>>, %arg11: memref<1x128xf32, #tpu.memory_space<vmem>>, %arg12: memref<8x8xf32, #tpu.memory_space<vmem>>, %arg13: memref<8x8xf32, #tpu.memory_space<vmem>>) attributes {dimension_semantics = [#tpu.dimension_semantics<parallel>], iteration_bounds = array<i64: 1>, scalar_prefetch = 0 : i64, scratch_operands = 0 : i64, tpu.core_type = #tpu.core_type<tc>, window_params = [{transform_indices = @transform_0, window_bounds = array<i64: 8, 8>}, {pipeline_mode = #tpu.pipeline_mode<synchronous>, transform_indices = @transform_1, window_bounds = array<i64: 128, 128>}, {pipeline_mode = #tpu.pipeline_mode<synchronous>, transform_indices = @transform_2, window_bounds = array<i64: 128, 512>}, {pipeline_mode = #tpu.pipeline_mode<synchronous>, transform_indices = @transform_3, window_bounds = array<i64: 128, 512>}, {pipeline_mode = #tpu.pipeline_mode<synchronous>, transform_indices = @transform_4, window_bounds = array<i64: 1, 512>}, {pipeline_mode = #tpu.pipeline_mode<synchronous>, transform_indices = @transform_5, window_bounds = array<i64: 1, 128>}, {pipeline_mode = #tpu.pipeline_mode<synchronous>, transform_indices = @transform_6, window_bounds = array<i64: 1, 128>}, {pipeline_mode = #tpu.pipeline_mode<synchronous>, transform_indices = @transform_7, window_bounds = array<i64: 256, 512>}, {pipeline_mode = #tpu.pipeline_mode<synchronous>, transform_indices = @transform_8, window_bounds = array<i64: 1, 512>}, {pipeline_mode = #tpu.pipeline_mode<synchronous>, transform_indices = @transform_9, window_bounds = array<i64: 128, 128>}, {pipeline_mode = #tpu.pipeline_mode<synchronous>, transform_indices = @transform_10, window_bounds = array<i64: 1, 128>}, {transform_indices = @transform_11, window_bounds = array<i64: 8, 8>}, {transform_indices = @transform_12, window_bounds = array<i64: 8, 8>}]} {
    %c0 = arith.constant 0 : index
    %c0_0 = arith.constant 0 : index
    %0 = vector.load %arg1[%c0, %c0_0] : memref<8x8xi32, #tpu.memory_space<vmem>>, vector<8x8xi32>
    %c0_1 = arith.constant 0 : index
    %c0_2 = arith.constant 0 : index
    %1 = vector.load %arg2[%c0_1, %c0_2] : memref<128x128xf32, #tpu.memory_space<vmem>>, vector<128x128xf32>
    %c0_3 = arith.constant 0 : index
    %c0_4 = arith.constant 0 : index
    %2 = vector.load %arg3[%c0_3, %c0_4] : memref<128x512xf32, #tpu.memory_space<vmem>>, vector<128x512xf32>
    %c0_5 = arith.constant 0 : index
    %c0_6 = arith.constant 0 : index
    %3 = vector.load %arg4[%c0_5, %c0_6] : memref<128x512xf32, #tpu.memory_space<vmem>>, vector<128x512xf32>
    %c0_7 = arith.constant 0 : index
    %c0_8 = arith.constant 0 : index
    %4 = vector.load %arg5[%c0_7, %c0_8] : memref<1x512xf32, #tpu.memory_space<vmem>>, vector<1x512xf32>
    %c0_9 = arith.constant 0 : index
    %c0_10 = arith.constant 0 : index
    %5 = vector.load %arg6[%c0_9, %c0_10] : memref<1x128xf32, #tpu.memory_space<vmem>>, vector<1x128xf32>
    %c0_11 = arith.constant 0 : index
    %c0_12 = arith.constant 0 : index
    %6 = vector.load %arg7[%c0_11, %c0_12] : memref<1x128xf32, #tpu.memory_space<vmem>>, vector<1x128xf32>
    %c0_13 = arith.constant 0 : index
    %c0_14 = arith.constant 0 : index
    %7 = vector.load %arg8[%c0_13, %c0_14] : memref<256x512xf32, #tpu.memory_space<vmem>>, vector<256x512xf32>
    %c0_15 = arith.constant 0 : index
    %c0_16 = arith.constant 0 : index
    %8 = vector.load %arg9[%c0_15, %c0_16] : memref<1x512xf32, #tpu.memory_space<vmem>>, vector<1x512xf32>
    %c0_17 = arith.constant 0 : index
    %c0_18 = arith.constant 0 : index
    %9 = vector.load %arg10[%c0_17, %c0_18] : memref<128x128xf32, #tpu.memory_space<vmem>>, vector<128x128xf32>
    %c0_19 = arith.constant 0 : index
    %c0_20 = arith.constant 0 : index
    %10 = vector.load %arg11[%c0_19, %c0_20] : memref<1x128xf32, #tpu.memory_space<vmem>>, vector<1x128xf32>
    %11 = tpu.iota {dimensions = array<i32: 1>} : vector<8x128xi32>
    %12 = vector.extract_strided_slice %0 {offsets = [0, 0], sizes = [8, 1], strides = [1, 1]} : vector<8x8xi32> to vector<8x1xi32>
    %13 = vector.broadcast %12 : vector<8x1xi32> to vector<8x128xi32>
    %14 = arith.cmpi eq, %11, %13 : vector<8x128xi32>
    %15 = arith.extui %14 : vector<8x128xi1> to vector<8x128xi32>
    %16 = arith.sitofp %15 : vector<8x128xi32> to vector<8x128xf32>
    %17 = vector.extract_strided_slice %0 {offsets = [0, 1], sizes = [8, 1], strides = [1, 1]} : vector<8x8xi32> to vector<8x1xi32>
    %18 = vector.broadcast %17 : vector<8x1xi32> to vector<8x128xi32>
    %19 = arith.cmpi eq, %11, %18 : vector<8x128xi32>
    %20 = arith.extui %19 : vector<8x128xi1> to vector<8x128xi32>
    %21 = arith.sitofp %20 : vector<8x128xi32> to vector<8x128xf32>
    %22 = vector.extract_strided_slice %0 {offsets = [0, 2], sizes = [8, 1], strides = [1, 1]} : vector<8x8xi32> to vector<8x1xi32>
    %23 = vector.broadcast %22 : vector<8x1xi32> to vector<8x128xi32>
    %24 = arith.cmpi eq, %11, %23 : vector<8x128xi32>
    %25 = arith.extui %24 : vector<8x128xi1> to vector<8x128xi32>
    %26 = arith.sitofp %25 : vector<8x128xi32> to vector<8x128xf32>
    %27 = vector.extract_strided_slice %0 {offsets = [0, 3], sizes = [8, 1], strides = [1, 1]} : vector<8x8xi32> to vector<8x1xi32>
    %28 = vector.broadcast %27 : vector<8x1xi32> to vector<8x128xi32>
    %29 = arith.cmpi eq, %11, %28 : vector<8x128xi32>
    %30 = arith.extui %29 : vector<8x128xi1> to vector<8x128xi32>
    %31 = arith.sitofp %30 : vector<8x128xi32> to vector<8x128xf32>
    %32 = vector.extract_strided_slice %0 {offsets = [0, 4], sizes = [8, 1], strides = [1, 1]} : vector<8x8xi32> to vector<8x1xi32>
    %33 = vector.broadcast %32 : vector<8x1xi32> to vector<8x128xi32>
    %34 = arith.cmpi eq, %11, %33 : vector<8x128xi32>
    %35 = arith.extui %34 : vector<8x128xi1> to vector<8x128xi32>
    %36 = arith.sitofp %35 : vector<8x128xi32> to vector<8x128xf32>
    %37 = vector.extract_strided_slice %0 {offsets = [0, 5], sizes = [8, 1], strides = [1, 1]} : vector<8x8xi32> to vector<8x1xi32>
    %38 = vector.broadcast %37 : vector<8x1xi32> to vector<8x128xi32>
    %39 = arith.cmpi eq, %11, %38 : vector<8x128xi32>
    %40 = arith.extui %39 : vector<8x128xi1> to vector<8x128xi32>
    %41 = arith.sitofp %40 : vector<8x128xi32> to vector<8x128xf32>
    %42 = vector.extract_strided_slice %0 {offsets = [0, 6], sizes = [8, 1], strides = [1, 1]} : vector<8x8xi32> to vector<8x1xi32>
    %43 = vector.broadcast %42 : vector<8x1xi32> to vector<8x128xi32>
    %44 = arith.cmpi eq, %11, %43 : vector<8x128xi32>
    %45 = arith.extui %44 : vector<8x128xi1> to vector<8x128xi32>
    %46 = arith.sitofp %45 : vector<8x128xi32> to vector<8x128xf32>
    %47 = vector.extract_strided_slice %0 {offsets = [0, 7], sizes = [8, 1], strides = [1, 1]} : vector<8x8xi32> to vector<8x1xi32>
    %48 = vector.broadcast %47 : vector<8x1xi32> to vector<8x128xi32>
    %49 = arith.cmpi eq, %11, %48 : vector<8x128xi32>
    %50 = arith.extui %49 : vector<8x128xi1> to vector<8x128xi32>
    %51 = arith.sitofp %50 : vector<8x128xi32> to vector<8x128xf32>
    %52 = tpu.concatenate %16, %21, %26, %31, %36, %41, %46, %51 in 0 : vector<8x128xf32>, vector<8x128xf32>, vector<8x128xf32>, vector<8x128xf32>, vector<8x128xf32>, vector<8x128xf32>, vector<8x128xf32>, vector<8x128xf32> -> vector<64x128xf32>
    %cst = arith.constant dense<0.000000e+00> : vector<64x128xf32>
    %53 = tpu.matmul %52, %1, %cst {dimension_numbers = #tpu.dot_dimension_numbers<[1], [0], [0], [1], [0, 0, 1, 1], [], []>} : vector<64x128xf32>, vector<128x128xf32>, vector<64x128xf32> -> vector<64x128xf32>
    %cst_21 = arith.constant dense<0.000000e+00> : vector<64x512xf32>
    %54 = tpu.matmul %53, %2, %cst_21 {dimension_numbers = #tpu.dot_dimension_numbers<[1], [0], [0], [1], [0, 0, 1, 1], [], []>} : vector<64x128xf32>, vector<128x512xf32>, vector<64x512xf32> -> vector<64x512xf32>
    %55 = vector.broadcast %4 : vector<1x512xf32> to vector<64x512xf32>
    %56 = arith.addf %54, %55 : vector<64x512xf32>
    %cst_22 = arith.constant 0.000000e+00 : f32
    %57 = vector.broadcast %cst_22 : f32 to vector<8x128xf32>
    %cst_23 = arith.constant 0.000000e+00 : f32
    %58 = vector.broadcast %cst_23 : f32 to vector<8x128xf32>
    %59 = vector.extract_strided_slice %56 {offsets = [0, 0], sizes = [8, 512], strides = [1, 1]} : vector<64x512xf32> to vector<8x512xf32>
    %cst_24 = arith.constant dense<0.000000e+00> : vector<8x512xf32>
    %60 = tpu.matmul %57, %3, %cst_24 {dimension_numbers = #tpu.dot_dimension_numbers<[1], [0], [0], [1], [0, 0, 1, 1], [], []>} : vector<8x128xf32>, vector<128x512xf32>, vector<8x512xf32> -> vector<8x512xf32>
    %61 = arith.addf %59, %60 : vector<8x512xf32>
    %62 = vector.extract_strided_slice %61 {offsets = [0, 0], sizes = [8, 384], strides = [1, 1]} : vector<8x512xf32> to vector<8x384xf32>
    %63 = arith.negf %62 : vector<8x384xf32>
    %64 = math.exp %63 : vector<8x384xf32>
    %cst_25 = arith.constant 1.000000e+00 : f32
    %65 = vector.broadcast %cst_25 : f32 to vector<8x384xf32>
    %66 = arith.addf %65, %64 : vector<8x384xf32>
    %67 = arith.divf %65, %66 : vector<8x384xf32>
    %68 = vector.extract_strided_slice %67 {offsets = [0, 0], sizes = [8, 128], strides = [1, 1]} : vector<8x384xf32> to vector<8x128xf32>
    %69 = vector.extract_strided_slice %67 {offsets = [0, 128], sizes = [8, 128], strides = [1, 1]} : vector<8x384xf32> to vector<8x128xf32>
    %70 = vector.extract_strided_slice %67 {offsets = [0, 256], sizes = [8, 128], strides = [1, 1]} : vector<8x384xf32> to vector<8x128xf32>
    %71 = vector.extract_strided_slice %61 {offsets = [0, 384], sizes = [8, 128], strides = [1, 1]} : vector<8x512xf32> to vector<8x128xf32>
    %72 = math.tanh %71 : vector<8x128xf32>
    %73 = arith.mulf %69, %58 : vector<8x128xf32>
    %74 = arith.mulf %68, %72 : vector<8x128xf32>
    %75 = arith.addf %73, %74 : vector<8x128xf32>
    %76 = math.tanh %75 : vector<8x128xf32>
    %77 = arith.mulf %70, %76 : vector<8x128xf32>
    %78 = vector.extract_strided_slice %56 {offsets = [8, 0], sizes = [8, 512], strides = [1, 1]} : vector<64x512xf32> to vector<8x512xf32>
    %cst_26 = arith.constant dense<0.000000e+00> : vector<8x512xf32>
    %79 = tpu.matmul %77, %3, %cst_26 {dimension_numbers = #tpu.dot_dimension_numbers<[1], [0], [0], [1], [0, 0, 1, 1], [], []>} : vector<8x128xf32>, vector<128x512xf32>, vector<8x512xf32> -> vector<8x512xf32>
    %80 = arith.addf %78, %79 : vector<8x512xf32>
    %81 = vector.extract_strided_slice %80 {offsets = [0, 0], sizes = [8, 384], strides = [1, 1]} : vector<8x512xf32> to vector<8x384xf32>
    %82 = arith.negf %81 : vector<8x384xf32>
    %83 = math.exp %82 : vector<8x384xf32>
    %cst_27 = arith.constant 1.000000e+00 : f32
    %84 = vector.broadcast %cst_27 : f32 to vector<8x384xf32>
    %85 = arith.addf %84, %83 : vector<8x384xf32>
    %86 = arith.divf %84, %85 : vector<8x384xf32>
    %87 = vector.extract_strided_slice %86 {offsets = [0, 0], sizes = [8, 128], strides = [1, 1]} : vector<8x384xf32> to vector<8x128xf32>
    %88 = vector.extract_strided_slice %86 {offsets = [0, 128], sizes = [8, 128], strides = [1, 1]} : vector<8x384xf32> to vector<8x128xf32>
    %89 = vector.extract_strided_slice %86 {offsets = [0, 256], sizes = [8, 128], strides = [1, 1]} : vector<8x384xf32> to vector<8x128xf32>
    %90 = vector.extract_strided_slice %80 {offsets = [0, 384], sizes = [8, 128], strides = [1, 1]} : vector<8x512xf32> to vector<8x128xf32>
    %91 = math.tanh %90 : vector<8x128xf32>
    %92 = arith.mulf %88, %75 : vector<8x128xf32>
    %93 = arith.mulf %87, %91 : vector<8x128xf32>
    %94 = arith.addf %92, %93 : vector<8x128xf32>
    %95 = math.tanh %94 : vector<8x128xf32>
    %96 = arith.mulf %89, %95 : vector<8x128xf32>
    %97 = vector.extract_strided_slice %56 {offsets = [16, 0], sizes = [8, 512], strides = [1, 1]} : vector<64x512xf32> to vector<8x512xf32>
    %cst_28 = arith.constant dense<0.000000e+00> : vector<8x512xf32>
    %98 = tpu.matmul %96, %3, %cst_28 {dimension_numbers = #tpu.dot_dimension_numbers<[1], [0], [0], [1], [0, 0, 1, 1], [], []>} : vector<8x128xf32>, vector<128x512xf32>, vector<8x512xf32> -> vector<8x512xf32>
    %99 = arith.addf %97, %98 : vector<8x512xf32>
    %100 = vector.extract_strided_slice %99 {offsets = [0, 0], sizes = [8, 384], strides = [1, 1]} : vector<8x512xf32> to vector<8x384xf32>
    %101 = arith.negf %100 : vector<8x384xf32>
    %102 = math.exp %101 : vector<8x384xf32>
    %cst_29 = arith.constant 1.000000e+00 : f32
    %103 = vector.broadcast %cst_29 : f32 to vector<8x384xf32>
    %104 = arith.addf %103, %102 : vector<8x384xf32>
    %105 = arith.divf %103, %104 : vector<8x384xf32>
    %106 = vector.extract_strided_slice %105 {offsets = [0, 0], sizes = [8, 128], strides = [1, 1]} : vector<8x384xf32> to vector<8x128xf32>
    %107 = vector.extract_strided_slice %105 {offsets = [0, 128], sizes = [8, 128], strides = [1, 1]} : vector<8x384xf32> to vector<8x128xf32>
    %108 = vector.extract_strided_slice %105 {offsets = [0, 256], sizes = [8, 128], strides = [1, 1]} : vector<8x384xf32> to vector<8x128xf32>
    %109 = vector.extract_strided_slice %99 {offsets = [0, 384], sizes = [8, 128], strides = [1, 1]} : vector<8x512xf32> to vector<8x128xf32>
    %110 = math.tanh %109 : vector<8x128xf32>
    %111 = arith.mulf %107, %94 : vector<8x128xf32>
    %112 = arith.mulf %106, %110 : vector<8x128xf32>
    %113 = arith.addf %111, %112 : vector<8x128xf32>
    %114 = math.tanh %113 : vector<8x128xf32>
    %115 = arith.mulf %108, %114 : vector<8x128xf32>
    %116 = vector.extract_strided_slice %56 {offsets = [24, 0], sizes = [8, 512], strides = [1, 1]} : vector<64x512xf32> to vector<8x512xf32>
    %cst_30 = arith.constant dense<0.000000e+00> : vector<8x512xf32>
    %117 = tpu.matmul %115, %3, %cst_30 {dimension_numbers = #tpu.dot_dimension_numbers<[1], [0], [0], [1], [0, 0, 1, 1], [], []>} : vector<8x128xf32>, vector<128x512xf32>, vector<8x512xf32> -> vector<8x512xf32>
    %118 = arith.addf %116, %117 : vector<8x512xf32>
    %119 = vector.extract_strided_slice %118 {offsets = [0, 0], sizes = [8, 384], strides = [1, 1]} : vector<8x512xf32> to vector<8x384xf32>
    %120 = arith.negf %119 : vector<8x384xf32>
    %121 = math.exp %120 : vector<8x384xf32>
    %cst_31 = arith.constant 1.000000e+00 : f32
    %122 = vector.broadcast %cst_31 : f32 to vector<8x384xf32>
    %123 = arith.addf %122, %121 : vector<8x384xf32>
    %124 = arith.divf %122, %123 : vector<8x384xf32>
    %125 = vector.extract_strided_slice %124 {offsets = [0, 0], sizes = [8, 128], strides = [1, 1]} : vector<8x384xf32> to vector<8x128xf32>
    %126 = vector.extract_strided_slice %124 {offsets = [0, 128], sizes = [8, 128], strides = [1, 1]} : vector<8x384xf32> to vector<8x128xf32>
    %127 = vector.extract_strided_slice %124 {offsets = [0, 256], sizes = [8, 128], strides = [1, 1]} : vector<8x384xf32> to vector<8x128xf32>
    %128 = vector.extract_strided_slice %118 {offsets = [0, 384], sizes = [8, 128], strides = [1, 1]} : vector<8x512xf32> to vector<8x128xf32>
    %129 = math.tanh %128 : vector<8x128xf32>
    %130 = arith.mulf %126, %113 : vector<8x128xf32>
    %131 = arith.mulf %125, %129 : vector<8x128xf32>
    %132 = arith.addf %130, %131 : vector<8x128xf32>
    %133 = math.tanh %132 : vector<8x128xf32>
    %134 = arith.mulf %127, %133 : vector<8x128xf32>
    %135 = vector.extract_strided_slice %56 {offsets = [32, 0], sizes = [8, 512], strides = [1, 1]} : vector<64x512xf32> to vector<8x512xf32>
    %cst_32 = arith.constant dense<0.000000e+00> : vector<8x512xf32>
    %136 = tpu.matmul %134, %3, %cst_32 {dimension_numbers = #tpu.dot_dimension_numbers<[1], [0], [0], [1], [0, 0, 1, 1], [], []>} : vector<8x128xf32>, vector<128x512xf32>, vector<8x512xf32> -> vector<8x512xf32>
    %137 = arith.addf %135, %136 : vector<8x512xf32>
    %138 = vector.extract_strided_slice %137 {offsets = [0, 0], sizes = [8, 384], strides = [1, 1]} : vector<8x512xf32> to vector<8x384xf32>
    %139 = arith.negf %138 : vector<8x384xf32>
    %140 = math.exp %139 : vector<8x384xf32>
    %cst_33 = arith.constant 1.000000e+00 : f32
    %141 = vector.broadcast %cst_33 : f32 to vector<8x384xf32>
    %142 = arith.addf %141, %140 : vector<8x384xf32>
    %143 = arith.divf %141, %142 : vector<8x384xf32>
    %144 = vector.extract_strided_slice %143 {offsets = [0, 0], sizes = [8, 128], strides = [1, 1]} : vector<8x384xf32> to vector<8x128xf32>
    %145 = vector.extract_strided_slice %143 {offsets = [0, 128], sizes = [8, 128], strides = [1, 1]} : vector<8x384xf32> to vector<8x128xf32>
    %146 = vector.extract_strided_slice %143 {offsets = [0, 256], sizes = [8, 128], strides = [1, 1]} : vector<8x384xf32> to vector<8x128xf32>
    %147 = vector.extract_strided_slice %137 {offsets = [0, 384], sizes = [8, 128], strides = [1, 1]} : vector<8x512xf32> to vector<8x128xf32>
    %148 = math.tanh %147 : vector<8x128xf32>
    %149 = arith.mulf %145, %132 : vector<8x128xf32>
    %150 = arith.mulf %144, %148 : vector<8x128xf32>
    %151 = arith.addf %149, %150 : vector<8x128xf32>
    %152 = math.tanh %151 : vector<8x128xf32>
    %153 = arith.mulf %146, %152 : vector<8x128xf32>
    %154 = vector.extract_strided_slice %56 {offsets = [40, 0], sizes = [8, 512], strides = [1, 1]} : vector<64x512xf32> to vector<8x512xf32>
    %cst_34 = arith.constant dense<0.000000e+00> : vector<8x512xf32>
    %155 = tpu.matmul %153, %3, %cst_34 {dimension_numbers = #tpu.dot_dimension_numbers<[1], [0], [0], [1], [0, 0, 1, 1], [], []>} : vector<8x128xf32>, vector<128x512xf32>, vector<8x512xf32> -> vector<8x512xf32>
    %156 = arith.addf %154, %155 : vector<8x512xf32>
    %157 = vector.extract_strided_slice %156 {offsets = [0, 0], sizes = [8, 384], strides = [1, 1]} : vector<8x512xf32> to vector<8x384xf32>
    %158 = arith.negf %157 : vector<8x384xf32>
    %159 = math.exp %158 : vector<8x384xf32>
    %cst_35 = arith.constant 1.000000e+00 : f32
    %160 = vector.broadcast %cst_35 : f32 to vector<8x384xf32>
    %161 = arith.addf %160, %159 : vector<8x384xf32>
    %162 = arith.divf %160, %161 : vector<8x384xf32>
    %163 = vector.extract_strided_slice %162 {offsets = [0, 0], sizes = [8, 128], strides = [1, 1]} : vector<8x384xf32> to vector<8x128xf32>
    %164 = vector.extract_strided_slice %162 {offsets = [0, 128], sizes = [8, 128], strides = [1, 1]} : vector<8x384xf32> to vector<8x128xf32>
    %165 = vector.extract_strided_slice %162 {offsets = [0, 256], sizes = [8, 128], strides = [1, 1]} : vector<8x384xf32> to vector<8x128xf32>
    %166 = vector.extract_strided_slice %156 {offsets = [0, 384], sizes = [8, 128], strides = [1, 1]} : vector<8x512xf32> to vector<8x128xf32>
    %167 = math.tanh %166 : vector<8x128xf32>
    %168 = arith.mulf %164, %151 : vector<8x128xf32>
    %169 = arith.mulf %163, %167 : vector<8x128xf32>
    %170 = arith.addf %168, %169 : vector<8x128xf32>
    %171 = math.tanh %170 : vector<8x128xf32>
    %172 = arith.mulf %165, %171 : vector<8x128xf32>
    %173 = vector.extract_strided_slice %56 {offsets = [48, 0], sizes = [8, 512], strides = [1, 1]} : vector<64x512xf32> to vector<8x512xf32>
    %cst_36 = arith.constant dense<0.000000e+00> : vector<8x512xf32>
    %174 = tpu.matmul %172, %3, %cst_36 {dimension_numbers = #tpu.dot_dimension_numbers<[1], [0], [0], [1], [0, 0, 1, 1], [], []>} : vector<8x128xf32>, vector<128x512xf32>, vector<8x512xf32> -> vector<8x512xf32>
    %175 = arith.addf %173, %174 : vector<8x512xf32>
    %176 = vector.extract_strided_slice %175 {offsets = [0, 0], sizes = [8, 384], strides = [1, 1]} : vector<8x512xf32> to vector<8x384xf32>
    %177 = arith.negf %176 : vector<8x384xf32>
    %178 = math.exp %177 : vector<8x384xf32>
    %cst_37 = arith.constant 1.000000e+00 : f32
    %179 = vector.broadcast %cst_37 : f32 to vector<8x384xf32>
    %180 = arith.addf %179, %178 : vector<8x384xf32>
    %181 = arith.divf %179, %180 : vector<8x384xf32>
    %182 = vector.extract_strided_slice %181 {offsets = [0, 0], sizes = [8, 128], strides = [1, 1]} : vector<8x384xf32> to vector<8x128xf32>
    %183 = vector.extract_strided_slice %181 {offsets = [0, 128], sizes = [8, 128], strides = [1, 1]} : vector<8x384xf32> to vector<8x128xf32>
    %184 = vector.extract_strided_slice %181 {offsets = [0, 256], sizes = [8, 128], strides = [1, 1]} : vector<8x384xf32> to vector<8x128xf32>
    %185 = vector.extract_strided_slice %175 {offsets = [0, 384], sizes = [8, 128], strides = [1, 1]} : vector<8x512xf32> to vector<8x128xf32>
    %186 = math.tanh %185 : vector<8x128xf32>
    %187 = arith.mulf %183, %170 : vector<8x128xf32>
    %188 = arith.mulf %182, %186 : vector<8x128xf32>
    %189 = arith.addf %187, %188 : vector<8x128xf32>
    %190 = math.tanh %189 : vector<8x128xf32>
    %191 = arith.mulf %184, %190 : vector<8x128xf32>
    %192 = vector.extract_strided_slice %56 {offsets = [56, 0], sizes = [8, 512], strides = [1, 1]} : vector<64x512xf32> to vector<8x512xf32>
    %cst_38 = arith.constant dense<0.000000e+00> : vector<8x512xf32>
    %193 = tpu.matmul %191, %3, %cst_38 {dimension_numbers = #tpu.dot_dimension_numbers<[1], [0], [0], [1], [0, 0, 1, 1], [], []>} : vector<8x128xf32>, vector<128x512xf32>, vector<8x512xf32> -> vector<8x512xf32>
    %194 = arith.addf %192, %193 : vector<8x512xf32>
    %195 = vector.extract_strided_slice %194 {offsets = [0, 0], sizes = [8, 384], strides = [1, 1]} : vector<8x512xf32> to vector<8x384xf32>
    %196 = arith.negf %195 : vector<8x384xf32>
    %197 = math.exp %196 : vector<8x384xf32>
    %cst_39 = arith.constant 1.000000e+00 : f32
    %198 = vector.broadcast %cst_39 : f32 to vector<8x384xf32>
    %199 = arith.addf %198, %197 : vector<8x384xf32>
    %200 = arith.divf %198, %199 : vector<8x384xf32>
    %201 = vector.extract_strided_slice %200 {offsets = [0, 0], sizes = [8, 128], strides = [1, 1]} : vector<8x384xf32> to vector<8x128xf32>
    %202 = vector.extract_strided_slice %200 {offsets = [0, 128], sizes = [8, 128], strides = [1, 1]} : vector<8x384xf32> to vector<8x128xf32>
    %203 = vector.extract_strided_slice %200 {offsets = [0, 256], sizes = [8, 128], strides = [1, 1]} : vector<8x384xf32> to vector<8x128xf32>
    %204 = vector.extract_strided_slice %194 {offsets = [0, 384], sizes = [8, 128], strides = [1, 1]} : vector<8x512xf32> to vector<8x128xf32>
    %205 = math.tanh %204 : vector<8x128xf32>
    %206 = arith.mulf %202, %189 : vector<8x128xf32>
    %207 = arith.mulf %201, %205 : vector<8x128xf32>
    %208 = arith.addf %206, %207 : vector<8x128xf32>
    %209 = math.tanh %208 : vector<8x128xf32>
    %210 = arith.mulf %203, %209 : vector<8x128xf32>
    %cst_40 = arith.constant 1.000000e+00 : f32
    %211 = vector.broadcast %cst_40 : f32 to vector<8x1xf32>
    %cst_41 = arith.constant 0.000000e+00 : f32
    %212 = vector.broadcast %cst_41 : f32 to vector<8x128xf32>
    %213 = tpu.iota {dimensions = array<i32: 1>} : vector<8x128xi32>
    %214 = tpu.iota {dimensions = array<i32: 1>} : vector<8x8xi32>
    %cst_42 = arith.constant 0.000000e+00 : f32
    %215 = vector.broadcast %cst_42 : f32 to vector<8x8xf32>
    %cst_43 = arith.constant 0.000000e+00 : f32
    %216 = vector.broadcast %cst_43 : f32 to vector<8x8xf32>
    %217 = vector.broadcast %211 : vector<8x1xf32> to vector<8x128xf32>
    %218 = vector.broadcast %5 : vector<1x128xf32> to vector<8x128xf32>
    %219 = arith.mulf %217, %218 : vector<8x128xf32>
    %220 = vector.broadcast %6 : vector<1x128xf32> to vector<8x128xf32>
    %221 = arith.addf %219, %220 : vector<8x128xf32>
    %cst_44 = arith.constant 0.000000e+00 : f32
    %222 = vector.broadcast %cst_44 : f32 to vector<8x128xf32>
    %223 = arith.maximumf %221, %222 : vector<8x128xf32>
    %224 = tpu.concatenate %223, %210 in 1 : vector<8x128xf32>, vector<8x128xf32> -> vector<8x256xf32>
    %cst_45 = arith.constant dense<0.000000e+00> : vector<8x512xf32>
    %225 = tpu.matmul %224, %7, %cst_45 {dimension_numbers = #tpu.dot_dimension_numbers<[1], [0], [0], [1], [0, 0, 1, 1], [], []>} : vector<8x256xf32>, vector<256x512xf32>, vector<8x512xf32> -> vector<8x512xf32>
    %226 = vector.broadcast %8 : vector<1x512xf32> to vector<8x512xf32>
    %227 = arith.addf %225, %226 : vector<8x512xf32>
    %228 = vector.extract_strided_slice %227 {offsets = [0, 0], sizes = [8, 384], strides = [1, 1]} : vector<8x512xf32> to vector<8x384xf32>
    %229 = arith.negf %228 : vector<8x384xf32>
    %230 = math.exp %229 : vector<8x384xf32>
    %cst_46 = arith.constant 1.000000e+00 : f32
    %231 = vector.broadcast %cst_46 : f32 to vector<8x384xf32>
    %232 = arith.addf %231, %230 : vector<8x384xf32>
    %233 = arith.divf %231, %232 : vector<8x384xf32>
    %234 = vector.extract_strided_slice %233 {offsets = [0, 0], sizes = [8, 128], strides = [1, 1]} : vector<8x384xf32> to vector<8x128xf32>
    %235 = vector.extract_strided_slice %233 {offsets = [0, 128], sizes = [8, 128], strides = [1, 1]} : vector<8x384xf32> to vector<8x128xf32>
    %236 = vector.extract_strided_slice %233 {offsets = [0, 256], sizes = [8, 128], strides = [1, 1]} : vector<8x384xf32> to vector<8x128xf32>
    %237 = vector.extract_strided_slice %227 {offsets = [0, 384], sizes = [8, 128], strides = [1, 1]} : vector<8x512xf32> to vector<8x128xf32>
    %238 = math.tanh %237 : vector<8x128xf32>
    %239 = arith.mulf %235, %208 : vector<8x128xf32>
    %240 = arith.mulf %234, %238 : vector<8x128xf32>
    %241 = arith.addf %239, %240 : vector<8x128xf32>
    %242 = math.tanh %241 : vector<8x128xf32>
    %243 = arith.mulf %236, %242 : vector<8x128xf32>
    %cst_47 = arith.constant dense<0.000000e+00> : vector<8x128xf32>
    %244 = tpu.matmul %243, %9, %cst_47 {dimension_numbers = #tpu.dot_dimension_numbers<[1], [0], [0], [1], [0, 0, 1, 1], [], []>} : vector<8x128xf32>, vector<128x128xf32>, vector<8x128xf32> -> vector<8x128xf32>
    %245 = vector.broadcast %10 : vector<1x128xf32> to vector<8x128xf32>
    %246 = arith.addf %244, %245 : vector<8x128xf32>
    %cst_48 = arith.constant dense<0xFF800000> : vector<8xf32>
    %247 = vector.multi_reduction <maximumf>, %246, %cst_48 [1] : vector<8x128xf32> to vector<8xf32>
    %248 = vector.shape_cast %247 : vector<8xf32> to vector<8x1xf32>
    %249 = vector.broadcast %248 : vector<8x1xf32> to vector<8x128xf32>
    %250 = arith.cmpf oeq, %246, %249 : vector<8x128xf32>
    %c128_i32 = arith.constant 128 : i32
    %251 = vector.broadcast %c128_i32 : i32 to vector<8x128xi32>
    %252 = arith.select %250, %213, %251 : vector<8x128xi1>, vector<8x128xi32>
    %cst_49 = arith.constant dense<2147483647> : vector<8xi32>
    %253 = vector.multi_reduction <minsi>, %252, %cst_49 [1] : vector<8x128xi32> to vector<8xi32>
    %254 = vector.shape_cast %253 : vector<8xi32> to vector<8x1xi32>
    %255 = arith.sitofp %254 : vector<8x1xi32> to vector<8x1xf32>
    %c0_i32 = arith.constant 0 : i32
    %256 = vector.broadcast %c0_i32 : i32 to vector<8x128xi32>
    %257 = arith.cmpi eq, %213, %256 : vector<8x128xi32>
    %cst_50 = arith.constant 1.000000e+00 : f32
    %cst_51 = arith.constant 0xFF800000 : f32
    %258 = vector.broadcast %cst_50 : f32 to vector<8x128xf32>
    %259 = vector.broadcast %cst_51 : f32 to vector<8x128xf32>
    %260 = arith.select %257, %258, %259 : vector<8x128xi1>, vector<8x128xf32>
    %cst_52 = arith.constant dense<0xFF800000> : vector<8xf32>
    %261 = vector.multi_reduction <maximumf>, %260, %cst_52 [1] : vector<8x128xf32> to vector<8xf32>
    %262 = vector.shape_cast %261 : vector<8xf32> to vector<8x1xf32>
    %263 = vector.broadcast %262 : vector<8x1xf32> to vector<8x128xf32>
    %264 = arith.cmpf oeq, %260, %263 : vector<8x128xf32>
    %c128_i32_53 = arith.constant 128 : i32
    %265 = vector.broadcast %c128_i32_53 : i32 to vector<8x128xi32>
    %266 = arith.select %264, %213, %265 : vector<8x128xi1>, vector<8x128xi32>
    %cst_54 = arith.constant dense<2147483647> : vector<8xi32>
    %267 = vector.multi_reduction <minsi>, %266, %cst_54 [1] : vector<8x128xi32> to vector<8xi32>
    %268 = vector.shape_cast %267 : vector<8xi32> to vector<8x1xi32>
    %269 = vector.broadcast %262 : vector<8x1xf32> to vector<8x128xf32>
    %270 = arith.subf %260, %269 : vector<8x128xf32>
    %271 = math.exp %270 : vector<8x128xf32>
    %cst_55 = arith.constant dense<0.000000e+00> : vector<8xf32>
    %272 = vector.multi_reduction <add>, %271, %cst_55 [1] : vector<8x128xf32> to vector<8xf32>
    %273 = vector.shape_cast %272 : vector<8xf32> to vector<8x1xf32>
    %274 = math.log %273 : vector<8x1xf32>
    %275 = vector.broadcast %268 : vector<8x1xi32> to vector<8x128xi32>
    %276 = arith.cmpi eq, %213, %275 : vector<8x128xi32>
    %277 = vector.broadcast %274 : vector<8x1xf32> to vector<8x128xf32>
    %278 = arith.subf %270, %277 : vector<8x128xf32>
    %cst_56 = arith.constant 0.000000e+00 : f32
    %279 = vector.broadcast %cst_56 : f32 to vector<8x128xf32>
    %280 = arith.select %276, %278, %279 : vector<8x128xi1>, vector<8x128xf32>
    %cst_57 = arith.constant dense<0.000000e+00> : vector<8xf32>
    %281 = vector.multi_reduction <add>, %280, %cst_57 [1] : vector<8x128xf32> to vector<8xf32>
    %282 = vector.shape_cast %281 : vector<8xf32> to vector<8x1xf32>
    %c0_i32_58 = arith.constant 0 : i32
    %283 = vector.broadcast %c0_i32_58 : i32 to vector<8x8xi32>
    %284 = arith.cmpi eq, %214, %283 : vector<8x8xi32>
    %285 = arith.sitofp %268 : vector<8x1xi32> to vector<8x1xf32>
    %286 = vector.shape_cast %285 : vector<8x1xf32> to vector<8x1xf32>
    %287 = vector.broadcast %286 : vector<8x1xf32> to vector<8x8xf32>
    %288 = arith.select %284, %287, %215 : vector<8x8xi1>, vector<8x8xf32>
    %289 = vector.shape_cast %282 : vector<8x1xf32> to vector<8x1xf32>
    %290 = vector.broadcast %289 : vector<8x1xf32> to vector<8x8xf32>
    %291 = arith.select %284, %290, %216 : vector<8x8xi1>, vector<8x8xf32>
    %292 = vector.broadcast %255 : vector<8x1xf32> to vector<8x128xf32>
    %293 = vector.broadcast %5 : vector<1x128xf32> to vector<8x128xf32>
    %294 = arith.mulf %292, %293 : vector<8x128xf32>
    %295 = vector.broadcast %6 : vector<1x128xf32> to vector<8x128xf32>
    %296 = arith.addf %294, %295 : vector<8x128xf32>
    %cst_59 = arith.constant 0.000000e+00 : f32
    %297 = vector.broadcast %cst_59 : f32 to vector<8x128xf32>
    %298 = arith.maximumf %296, %297 : vector<8x128xf32>
    %299 = tpu.concatenate %298, %243 in 1 : vector<8x128xf32>, vector<8x128xf32> -> vector<8x256xf32>
    %cst_60 = arith.constant dense<0.000000e+00> : vector<8x512xf32>
    %300 = tpu.matmul %299, %7, %cst_60 {dimension_numbers = #tpu.dot_dimension_numbers<[1], [0], [0], [1], [0, 0, 1, 1], [], []>} : vector<8x256xf32>, vector<256x512xf32>, vector<8x512xf32> -> vector<8x512xf32>
    %301 = vector.broadcast %8 : vector<1x512xf32> to vector<8x512xf32>
    %302 = arith.addf %300, %301 : vector<8x512xf32>
    %303 = vector.extract_strided_slice %302 {offsets = [0, 0], sizes = [8, 384], strides = [1, 1]} : vector<8x512xf32> to vector<8x384xf32>
    %304 = arith.negf %303 : vector<8x384xf32>
    %305 = math.exp %304 : vector<8x384xf32>
    %cst_61 = arith.constant 1.000000e+00 : f32
    %306 = vector.broadcast %cst_61 : f32 to vector<8x384xf32>
    %307 = arith.addf %306, %305 : vector<8x384xf32>
    %308 = arith.divf %306, %307 : vector<8x384xf32>
    %309 = vector.extract_strided_slice %308 {offsets = [0, 0], sizes = [8, 128], strides = [1, 1]} : vector<8x384xf32> to vector<8x128xf32>
    %310 = vector.extract_strided_slice %308 {offsets = [0, 128], sizes = [8, 128], strides = [1, 1]} : vector<8x384xf32> to vector<8x128xf32>
    %311 = vector.extract_strided_slice %308 {offsets = [0, 256], sizes = [8, 128], strides = [1, 1]} : vector<8x384xf32> to vector<8x128xf32>
    %312 = vector.extract_strided_slice %302 {offsets = [0, 384], sizes = [8, 128], strides = [1, 1]} : vector<8x512xf32> to vector<8x128xf32>
    %313 = math.tanh %312 : vector<8x128xf32>
    %314 = arith.mulf %310, %241 : vector<8x128xf32>
    %315 = arith.mulf %309, %313 : vector<8x128xf32>
    %316 = arith.addf %314, %315 : vector<8x128xf32>
    %317 = math.tanh %316 : vector<8x128xf32>
    %318 = arith.mulf %311, %317 : vector<8x128xf32>
    %cst_62 = arith.constant dense<0.000000e+00> : vector<8x128xf32>
    %319 = tpu.matmul %318, %9, %cst_62 {dimension_numbers = #tpu.dot_dimension_numbers<[1], [0], [0], [1], [0, 0, 1, 1], [], []>} : vector<8x128xf32>, vector<128x128xf32>, vector<8x128xf32> -> vector<8x128xf32>
    %320 = vector.broadcast %10 : vector<1x128xf32> to vector<8x128xf32>
    %321 = arith.addf %319, %320 : vector<8x128xf32>
    %cst_63 = arith.constant dense<0xFF800000> : vector<8xf32>
    %322 = vector.multi_reduction <maximumf>, %321, %cst_63 [1] : vector<8x128xf32> to vector<8xf32>
    %323 = vector.shape_cast %322 : vector<8xf32> to vector<8x1xf32>
    %324 = vector.broadcast %323 : vector<8x1xf32> to vector<8x128xf32>
    %325 = arith.cmpf oeq, %321, %324 : vector<8x128xf32>
    %c128_i32_64 = arith.constant 128 : i32
    %326 = vector.broadcast %c128_i32_64 : i32 to vector<8x128xi32>
    %327 = arith.select %325, %213, %326 : vector<8x128xi1>, vector<8x128xi32>
    %cst_65 = arith.constant dense<2147483647> : vector<8xi32>
    %328 = vector.multi_reduction <minsi>, %327, %cst_65 [1] : vector<8x128xi32> to vector<8xi32>
    %329 = vector.shape_cast %328 : vector<8xi32> to vector<8x1xi32>
    %330 = arith.sitofp %329 : vector<8x1xi32> to vector<8x1xf32>
    %331 = vector.broadcast %268 : vector<8x1xi32> to vector<8x128xi32>
    %332 = arith.cmpi eq, %213, %331 : vector<8x128xi32>
    %cst_66 = arith.constant 1.000000e+00 : f32
    %333 = vector.broadcast %cst_66 : f32 to vector<8x128xf32>
    %334 = arith.select %332, %333, %212 : vector<8x128xi1>, vector<8x128xf32>
    %cst_67 = arith.constant 5.000000e-01 : f32
    %335 = vector.broadcast %cst_67 : f32 to vector<8x128xf32>
    %336 = arith.cmpf ogt, %334, %335 : vector<8x128xf32>
    %cst_68 = arith.constant 0xFF800000 : f32
    %337 = vector.broadcast %cst_68 : f32 to vector<8x128xf32>
    %338 = arith.select %336, %337, %321 : vector<8x128xi1>, vector<8x128xf32>
    %cst_69 = arith.constant dense<0xFF800000> : vector<8xf32>
    %339 = vector.multi_reduction <maximumf>, %338, %cst_69 [1] : vector<8x128xf32> to vector<8xf32>
    %340 = vector.shape_cast %339 : vector<8xf32> to vector<8x1xf32>
    %341 = vector.broadcast %340 : vector<8x1xf32> to vector<8x128xf32>
    %342 = arith.cmpf oeq, %338, %341 : vector<8x128xf32>
    %c128_i32_70 = arith.constant 128 : i32
    %343 = vector.broadcast %c128_i32_70 : i32 to vector<8x128xi32>
    %344 = arith.select %342, %213, %343 : vector<8x128xi1>, vector<8x128xi32>
    %cst_71 = arith.constant dense<2147483647> : vector<8xi32>
    %345 = vector.multi_reduction <minsi>, %344, %cst_71 [1] : vector<8x128xi32> to vector<8xi32>
    %346 = vector.shape_cast %345 : vector<8xi32> to vector<8x1xi32>
    %347 = vector.broadcast %340 : vector<8x1xf32> to vector<8x128xf32>
    %348 = arith.subf %338, %347 : vector<8x128xf32>
    %349 = math.exp %348 : vector<8x128xf32>
    %cst_72 = arith.constant dense<0.000000e+00> : vector<8xf32>
    %350 = vector.multi_reduction <add>, %349, %cst_72 [1] : vector<8x128xf32> to vector<8xf32>
    %351 = vector.shape_cast %350 : vector<8xf32> to vector<8x1xf32>
    %352 = math.log %351 : vector<8x1xf32>
    %353 = vector.broadcast %346 : vector<8x1xi32> to vector<8x128xi32>
    %354 = arith.cmpi eq, %213, %353 : vector<8x128xi32>
    %355 = vector.broadcast %352 : vector<8x1xf32> to vector<8x128xf32>
    %356 = arith.subf %348, %355 : vector<8x128xf32>
    %cst_73 = arith.constant 0.000000e+00 : f32
    %357 = vector.broadcast %cst_73 : f32 to vector<8x128xf32>
    %358 = arith.select %354, %356, %357 : vector<8x128xi1>, vector<8x128xf32>
    %cst_74 = arith.constant dense<0.000000e+00> : vector<8xf32>
    %359 = vector.multi_reduction <add>, %358, %cst_74 [1] : vector<8x128xf32> to vector<8xf32>
    %360 = vector.shape_cast %359 : vector<8xf32> to vector<8x1xf32>
    %c1_i32 = arith.constant 1 : i32
    %361 = vector.broadcast %c1_i32 : i32 to vector<8x8xi32>
    %362 = arith.cmpi eq, %214, %361 : vector<8x8xi32>
    %363 = arith.sitofp %346 : vector<8x1xi32> to vector<8x1xf32>
    %364 = vector.shape_cast %363 : vector<8x1xf32> to vector<8x1xf32>
    %365 = vector.broadcast %364 : vector<8x1xf32> to vector<8x8xf32>
    %366 = arith.select %362, %365, %288 : vector<8x8xi1>, vector<8x8xf32>
    %367 = vector.shape_cast %360 : vector<8x1xf32> to vector<8x1xf32>
    %368 = vector.broadcast %367 : vector<8x1xf32> to vector<8x8xf32>
    %369 = arith.select %362, %368, %291 : vector<8x8xi1>, vector<8x8xf32>
    %370 = vector.broadcast %330 : vector<8x1xf32> to vector<8x128xf32>
    %371 = vector.broadcast %5 : vector<1x128xf32> to vector<8x128xf32>
    %372 = arith.mulf %370, %371 : vector<8x128xf32>
    %373 = vector.broadcast %6 : vector<1x128xf32> to vector<8x128xf32>
    %374 = arith.addf %372, %373 : vector<8x128xf32>
    %cst_75 = arith.constant 0.000000e+00 : f32
    %375 = vector.broadcast %cst_75 : f32 to vector<8x128xf32>
    %376 = arith.maximumf %374, %375 : vector<8x128xf32>
    %377 = tpu.concatenate %376, %318 in 1 : vector<8x128xf32>, vector<8x128xf32> -> vector<8x256xf32>
    %cst_76 = arith.constant dense<0.000000e+00> : vector<8x512xf32>
    %378 = tpu.matmul %377, %7, %cst_76 {dimension_numbers = #tpu.dot_dimension_numbers<[1], [0], [0], [1], [0, 0, 1, 1], [], []>} : vector<8x256xf32>, vector<256x512xf32>, vector<8x512xf32> -> vector<8x512xf32>
    %379 = vector.broadcast %8 : vector<1x512xf32> to vector<8x512xf32>
    %380 = arith.addf %378, %379 : vector<8x512xf32>
    %381 = vector.extract_strided_slice %380 {offsets = [0, 0], sizes = [8, 384], strides = [1, 1]} : vector<8x512xf32> to vector<8x384xf32>
    %382 = arith.negf %381 : vector<8x384xf32>
    %383 = math.exp %382 : vector<8x384xf32>
    %cst_77 = arith.constant 1.000000e+00 : f32
    %384 = vector.broadcast %cst_77 : f32 to vector<8x384xf32>
    %385 = arith.addf %384, %383 : vector<8x384xf32>
    %386 = arith.divf %384, %385 : vector<8x384xf32>
    %387 = vector.extract_strided_slice %386 {offsets = [0, 0], sizes = [8, 128], strides = [1, 1]} : vector<8x384xf32> to vector<8x128xf32>
    %388 = vector.extract_strided_slice %386 {offsets = [0, 128], sizes = [8, 128], strides = [1, 1]} : vector<8x384xf32> to vector<8x128xf32>
    %389 = vector.extract_strided_slice %386 {offsets = [0, 256], sizes = [8, 128], strides = [1, 1]} : vector<8x384xf32> to vector<8x128xf32>
    %390 = vector.extract_strided_slice %380 {offsets = [0, 384], sizes = [8, 128], strides = [1, 1]} : vector<8x512xf32> to vector<8x128xf32>
    %391 = math.tanh %390 : vector<8x128xf32>
    %392 = arith.mulf %388, %316 : vector<8x128xf32>
    %393 = arith.mulf %387, %391 : vector<8x128xf32>
    %394 = arith.addf %392, %393 : vector<8x128xf32>
    %395 = math.tanh %394 : vector<8x128xf32>
    %396 = arith.mulf %389, %395 : vector<8x128xf32>
    %cst_78 = arith.constant dense<0.000000e+00> : vector<8x128xf32>
    %397 = tpu.matmul %396, %9, %cst_78 {dimension_numbers = #tpu.dot_dimension_numbers<[1], [0], [0], [1], [0, 0, 1, 1], [], []>} : vector<8x128xf32>, vector<128x128xf32>, vector<8x128xf32> -> vector<8x128xf32>
    %398 = vector.broadcast %10 : vector<1x128xf32> to vector<8x128xf32>
    %399 = arith.addf %397, %398 : vector<8x128xf32>
    %cst_79 = arith.constant dense<0xFF800000> : vector<8xf32>
    %400 = vector.multi_reduction <maximumf>, %399, %cst_79 [1] : vector<8x128xf32> to vector<8xf32>
    %401 = vector.shape_cast %400 : vector<8xf32> to vector<8x1xf32>
    %402 = vector.broadcast %401 : vector<8x1xf32> to vector<8x128xf32>
    %403 = arith.cmpf oeq, %399, %402 : vector<8x128xf32>
    %c128_i32_80 = arith.constant 128 : i32
    %404 = vector.broadcast %c128_i32_80 : i32 to vector<8x128xi32>
    %405 = arith.select %403, %213, %404 : vector<8x128xi1>, vector<8x128xi32>
    %cst_81 = arith.constant dense<2147483647> : vector<8xi32>
    %406 = vector.multi_reduction <minsi>, %405, %cst_81 [1] : vector<8x128xi32> to vector<8xi32>
    %407 = vector.shape_cast %406 : vector<8xi32> to vector<8x1xi32>
    %408 = arith.sitofp %407 : vector<8x1xi32> to vector<8x1xf32>
    %409 = vector.broadcast %346 : vector<8x1xi32> to vector<8x128xi32>
    %410 = arith.cmpi eq, %213, %409 : vector<8x128xi32>
    %cst_82 = arith.constant 1.000000e+00 : f32
    %411 = vector.broadcast %cst_82 : f32 to vector<8x128xf32>
    %412 = arith.select %410, %411, %334 : vector<8x128xi1>, vector<8x128xf32>
    %cst_83 = arith.constant 5.000000e-01 : f32
    %413 = vector.broadcast %cst_83 : f32 to vector<8x128xf32>
    %414 = arith.cmpf ogt, %412, %413 : vector<8x128xf32>
    %cst_84 = arith.constant 0xFF800000 : f32
    %415 = vector.broadcast %cst_84 : f32 to vector<8x128xf32>
    %416 = arith.select %414, %415, %399 : vector<8x128xi1>, vector<8x128xf32>
    %cst_85 = arith.constant dense<0xFF800000> : vector<8xf32>
    %417 = vector.multi_reduction <maximumf>, %416, %cst_85 [1] : vector<8x128xf32> to vector<8xf32>
    %418 = vector.shape_cast %417 : vector<8xf32> to vector<8x1xf32>
    %419 = vector.broadcast %418 : vector<8x1xf32> to vector<8x128xf32>
    %420 = arith.cmpf oeq, %416, %419 : vector<8x128xf32>
    %c128_i32_86 = arith.constant 128 : i32
    %421 = vector.broadcast %c128_i32_86 : i32 to vector<8x128xi32>
    %422 = arith.select %420, %213, %421 : vector<8x128xi1>, vector<8x128xi32>
    %cst_87 = arith.constant dense<2147483647> : vector<8xi32>
    %423 = vector.multi_reduction <minsi>, %422, %cst_87 [1] : vector<8x128xi32> to vector<8xi32>
    %424 = vector.shape_cast %423 : vector<8xi32> to vector<8x1xi32>
    %425 = vector.broadcast %418 : vector<8x1xf32> to vector<8x128xf32>
    %426 = arith.subf %416, %425 : vector<8x128xf32>
    %427 = math.exp %426 : vector<8x128xf32>
    %cst_88 = arith.constant dense<0.000000e+00> : vector<8xf32>
    %428 = vector.multi_reduction <add>, %427, %cst_88 [1] : vector<8x128xf32> to vector<8xf32>
    %429 = vector.shape_cast %428 : vector<8xf32> to vector<8x1xf32>
    %430 = math.log %429 : vector<8x1xf32>
    %431 = vector.broadcast %424 : vector<8x1xi32> to vector<8x128xi32>
    %432 = arith.cmpi eq, %213, %431 : vector<8x128xi32>
    %433 = vector.broadcast %430 : vector<8x1xf32> to vector<8x128xf32>
    %434 = arith.subf %426, %433 : vector<8x128xf32>
    %cst_89 = arith.constant 0.000000e+00 : f32
    %435 = vector.broadcast %cst_89 : f32 to vector<8x128xf32>
    %436 = arith.select %432, %434, %435 : vector<8x128xi1>, vector<8x128xf32>
    %cst_90 = arith.constant dense<0.000000e+00> : vector<8xf32>
    %437 = vector.multi_reduction <add>, %436, %cst_90 [1] : vector<8x128xf32> to vector<8xf32>
    %438 = vector.shape_cast %437 : vector<8xf32> to vector<8x1xf32>
    %c2_i32 = arith.constant 2 : i32
    %439 = vector.broadcast %c2_i32 : i32 to vector<8x8xi32>
    %440 = arith.cmpi eq, %214, %439 : vector<8x8xi32>
    %441 = arith.sitofp %424 : vector<8x1xi32> to vector<8x1xf32>
    %442 = vector.shape_cast %441 : vector<8x1xf32> to vector<8x1xf32>
    %443 = vector.broadcast %442 : vector<8x1xf32> to vector<8x8xf32>
    %444 = arith.select %440, %443, %366 : vector<8x8xi1>, vector<8x8xf32>
    %445 = vector.shape_cast %438 : vector<8x1xf32> to vector<8x1xf32>
    %446 = vector.broadcast %445 : vector<8x1xf32> to vector<8x8xf32>
    %447 = arith.select %440, %446, %369 : vector<8x8xi1>, vector<8x8xf32>
    %448 = vector.broadcast %408 : vector<8x1xf32> to vector<8x128xf32>
    %449 = vector.broadcast %5 : vector<1x128xf32> to vector<8x128xf32>
    %450 = arith.mulf %448, %449 : vector<8x128xf32>
    %451 = vector.broadcast %6 : vector<1x128xf32> to vector<8x128xf32>
    %452 = arith.addf %450, %451 : vector<8x128xf32>
    %cst_91 = arith.constant 0.000000e+00 : f32
    %453 = vector.broadcast %cst_91 : f32 to vector<8x128xf32>
    %454 = arith.maximumf %452, %453 : vector<8x128xf32>
    %455 = tpu.concatenate %454, %396 in 1 : vector<8x128xf32>, vector<8x128xf32> -> vector<8x256xf32>
    %cst_92 = arith.constant dense<0.000000e+00> : vector<8x512xf32>
    %456 = tpu.matmul %455, %7, %cst_92 {dimension_numbers = #tpu.dot_dimension_numbers<[1], [0], [0], [1], [0, 0, 1, 1], [], []>} : vector<8x256xf32>, vector<256x512xf32>, vector<8x512xf32> -> vector<8x512xf32>
    %457 = vector.broadcast %8 : vector<1x512xf32> to vector<8x512xf32>
    %458 = arith.addf %456, %457 : vector<8x512xf32>
    %459 = vector.extract_strided_slice %458 {offsets = [0, 0], sizes = [8, 384], strides = [1, 1]} : vector<8x512xf32> to vector<8x384xf32>
    %460 = arith.negf %459 : vector<8x384xf32>
    %461 = math.exp %460 : vector<8x384xf32>
    %cst_93 = arith.constant 1.000000e+00 : f32
    %462 = vector.broadcast %cst_93 : f32 to vector<8x384xf32>
    %463 = arith.addf %462, %461 : vector<8x384xf32>
    %464 = arith.divf %462, %463 : vector<8x384xf32>
    %465 = vector.extract_strided_slice %464 {offsets = [0, 0], sizes = [8, 128], strides = [1, 1]} : vector<8x384xf32> to vector<8x128xf32>
    %466 = vector.extract_strided_slice %464 {offsets = [0, 128], sizes = [8, 128], strides = [1, 1]} : vector<8x384xf32> to vector<8x128xf32>
    %467 = vector.extract_strided_slice %464 {offsets = [0, 256], sizes = [8, 128], strides = [1, 1]} : vector<8x384xf32> to vector<8x128xf32>
    %468 = vector.extract_strided_slice %458 {offsets = [0, 384], sizes = [8, 128], strides = [1, 1]} : vector<8x512xf32> to vector<8x128xf32>
    %469 = math.tanh %468 : vector<8x128xf32>
    %470 = arith.mulf %466, %394 : vector<8x128xf32>
    %471 = arith.mulf %465, %469 : vector<8x128xf32>
    %472 = arith.addf %470, %471 : vector<8x128xf32>
    %473 = math.tanh %472 : vector<8x128xf32>
    %474 = arith.mulf %467, %473 : vector<8x128xf32>
    %cst_94 = arith.constant dense<0.000000e+00> : vector<8x128xf32>
    %475 = tpu.matmul %474, %9, %cst_94 {dimension_numbers = #tpu.dot_dimension_numbers<[1], [0], [0], [1], [0, 0, 1, 1], [], []>} : vector<8x128xf32>, vector<128x128xf32>, vector<8x128xf32> -> vector<8x128xf32>
    %476 = vector.broadcast %10 : vector<1x128xf32> to vector<8x128xf32>
    %477 = arith.addf %475, %476 : vector<8x128xf32>
    %cst_95 = arith.constant dense<0xFF800000> : vector<8xf32>
    %478 = vector.multi_reduction <maximumf>, %477, %cst_95 [1] : vector<8x128xf32> to vector<8xf32>
    %479 = vector.shape_cast %478 : vector<8xf32> to vector<8x1xf32>
    %480 = vector.broadcast %479 : vector<8x1xf32> to vector<8x128xf32>
    %481 = arith.cmpf oeq, %477, %480 : vector<8x128xf32>
    %c128_i32_96 = arith.constant 128 : i32
    %482 = vector.broadcast %c128_i32_96 : i32 to vector<8x128xi32>
    %483 = arith.select %481, %213, %482 : vector<8x128xi1>, vector<8x128xi32>
    %cst_97 = arith.constant dense<2147483647> : vector<8xi32>
    %484 = vector.multi_reduction <minsi>, %483, %cst_97 [1] : vector<8x128xi32> to vector<8xi32>
    %485 = vector.shape_cast %484 : vector<8xi32> to vector<8x1xi32>
    %486 = arith.sitofp %485 : vector<8x1xi32> to vector<8x1xf32>
    %487 = vector.broadcast %424 : vector<8x1xi32> to vector<8x128xi32>
    %488 = arith.cmpi eq, %213, %487 : vector<8x128xi32>
    %cst_98 = arith.constant 1.000000e+00 : f32
    %489 = vector.broadcast %cst_98 : f32 to vector<8x128xf32>
    %490 = arith.select %488, %489, %412 : vector<8x128xi1>, vector<8x128xf32>
    %cst_99 = arith.constant 5.000000e-01 : f32
    %491 = vector.broadcast %cst_99 : f32 to vector<8x128xf32>
    %492 = arith.cmpf ogt, %490, %491 : vector<8x128xf32>
    %cst_100 = arith.constant 0xFF800000 : f32
    %493 = vector.broadcast %cst_100 : f32 to vector<8x128xf32>
    %494 = arith.select %492, %493, %477 : vector<8x128xi1>, vector<8x128xf32>
    %cst_101 = arith.constant dense<0xFF800000> : vector<8xf32>
    %495 = vector.multi_reduction <maximumf>, %494, %cst_101 [1] : vector<8x128xf32> to vector<8xf32>
    %496 = vector.shape_cast %495 : vector<8xf32> to vector<8x1xf32>
    %497 = vector.broadcast %496 : vector<8x1xf32> to vector<8x128xf32>
    %498 = arith.cmpf oeq, %494, %497 : vector<8x128xf32>
    %c128_i32_102 = arith.constant 128 : i32
    %499 = vector.broadcast %c128_i32_102 : i32 to vector<8x128xi32>
    %500 = arith.select %498, %213, %499 : vector<8x128xi1>, vector<8x128xi32>
    %cst_103 = arith.constant dense<2147483647> : vector<8xi32>
    %501 = vector.multi_reduction <minsi>, %500, %cst_103 [1] : vector<8x128xi32> to vector<8xi32>
    %502 = vector.shape_cast %501 : vector<8xi32> to vector<8x1xi32>
    %503 = vector.broadcast %496 : vector<8x1xf32> to vector<8x128xf32>
    %504 = arith.subf %494, %503 : vector<8x128xf32>
    %505 = math.exp %504 : vector<8x128xf32>
    %cst_104 = arith.constant dense<0.000000e+00> : vector<8xf32>
    %506 = vector.multi_reduction <add>, %505, %cst_104 [1] : vector<8x128xf32> to vector<8xf32>
    %507 = vector.shape_cast %506 : vector<8xf32> to vector<8x1xf32>
    %508 = math.log %507 : vector<8x1xf32>
    %509 = vector.broadcast %502 : vector<8x1xi32> to vector<8x128xi32>
    %510 = arith.cmpi eq, %213, %509 : vector<8x128xi32>
    %511 = vector.broadcast %508 : vector<8x1xf32> to vector<8x128xf32>
    %512 = arith.subf %504, %511 : vector<8x128xf32>
    %cst_105 = arith.constant 0.000000e+00 : f32
    %513 = vector.broadcast %cst_105 : f32 to vector<8x128xf32>
    %514 = arith.select %510, %512, %513 : vector<8x128xi1>, vector<8x128xf32>
    %cst_106 = arith.constant dense<0.000000e+00> : vector<8xf32>
    %515 = vector.multi_reduction <add>, %514, %cst_106 [1] : vector<8x128xf32> to vector<8xf32>
    %516 = vector.shape_cast %515 : vector<8xf32> to vector<8x1xf32>
    %c3_i32 = arith.constant 3 : i32
    %517 = vector.broadcast %c3_i32 : i32 to vector<8x8xi32>
    %518 = arith.cmpi eq, %214, %517 : vector<8x8xi32>
    %519 = arith.sitofp %502 : vector<8x1xi32> to vector<8x1xf32>
    %520 = vector.shape_cast %519 : vector<8x1xf32> to vector<8x1xf32>
    %521 = vector.broadcast %520 : vector<8x1xf32> to vector<8x8xf32>
    %522 = arith.select %518, %521, %444 : vector<8x8xi1>, vector<8x8xf32>
    %523 = vector.shape_cast %516 : vector<8x1xf32> to vector<8x1xf32>
    %524 = vector.broadcast %523 : vector<8x1xf32> to vector<8x8xf32>
    %525 = arith.select %518, %524, %447 : vector<8x8xi1>, vector<8x8xf32>
    %526 = vector.broadcast %486 : vector<8x1xf32> to vector<8x128xf32>
    %527 = vector.broadcast %5 : vector<1x128xf32> to vector<8x128xf32>
    %528 = arith.mulf %526, %527 : vector<8x128xf32>
    %529 = vector.broadcast %6 : vector<1x128xf32> to vector<8x128xf32>
    %530 = arith.addf %528, %529 : vector<8x128xf32>
    %cst_107 = arith.constant 0.000000e+00 : f32
    %531 = vector.broadcast %cst_107 : f32 to vector<8x128xf32>
    %532 = arith.maximumf %530, %531 : vector<8x128xf32>
    %533 = tpu.concatenate %532, %474 in 1 : vector<8x128xf32>, vector<8x128xf32> -> vector<8x256xf32>
    %cst_108 = arith.constant dense<0.000000e+00> : vector<8x512xf32>
    %534 = tpu.matmul %533, %7, %cst_108 {dimension_numbers = #tpu.dot_dimension_numbers<[1], [0], [0], [1], [0, 0, 1, 1], [], []>} : vector<8x256xf32>, vector<256x512xf32>, vector<8x512xf32> -> vector<8x512xf32>
    %535 = vector.broadcast %8 : vector<1x512xf32> to vector<8x512xf32>
    %536 = arith.addf %534, %535 : vector<8x512xf32>
    %537 = vector.extract_strided_slice %536 {offsets = [0, 0], sizes = [8, 384], strides = [1, 1]} : vector<8x512xf32> to vector<8x384xf32>
    %538 = arith.negf %537 : vector<8x384xf32>
    %539 = math.exp %538 : vector<8x384xf32>
    %cst_109 = arith.constant 1.000000e+00 : f32
    %540 = vector.broadcast %cst_109 : f32 to vector<8x384xf32>
    %541 = arith.addf %540, %539 : vector<8x384xf32>
    %542 = arith.divf %540, %541 : vector<8x384xf32>
    %543 = vector.extract_strided_slice %542 {offsets = [0, 0], sizes = [8, 128], strides = [1, 1]} : vector<8x384xf32> to vector<8x128xf32>
    %544 = vector.extract_strided_slice %542 {offsets = [0, 128], sizes = [8, 128], strides = [1, 1]} : vector<8x384xf32> to vector<8x128xf32>
    %545 = vector.extract_strided_slice %542 {offsets = [0, 256], sizes = [8, 128], strides = [1, 1]} : vector<8x384xf32> to vector<8x128xf32>
    %546 = vector.extract_strided_slice %536 {offsets = [0, 384], sizes = [8, 128], strides = [1, 1]} : vector<8x512xf32> to vector<8x128xf32>
    %547 = math.tanh %546 : vector<8x128xf32>
    %548 = arith.mulf %544, %472 : vector<8x128xf32>
    %549 = arith.mulf %543, %547 : vector<8x128xf32>
    %550 = arith.addf %548, %549 : vector<8x128xf32>
    %551 = math.tanh %550 : vector<8x128xf32>
    %552 = arith.mulf %545, %551 : vector<8x128xf32>
    %cst_110 = arith.constant dense<0.000000e+00> : vector<8x128xf32>
    %553 = tpu.matmul %552, %9, %cst_110 {dimension_numbers = #tpu.dot_dimension_numbers<[1], [0], [0], [1], [0, 0, 1, 1], [], []>} : vector<8x128xf32>, vector<128x128xf32>, vector<8x128xf32> -> vector<8x128xf32>
    %554 = vector.broadcast %10 : vector<1x128xf32> to vector<8x128xf32>
    %555 = arith.addf %553, %554 : vector<8x128xf32>
    %cst_111 = arith.constant dense<0xFF800000> : vector<8xf32>
    %556 = vector.multi_reduction <maximumf>, %555, %cst_111 [1] : vector<8x128xf32> to vector<8xf32>
    %557 = vector.shape_cast %556 : vector<8xf32> to vector<8x1xf32>
    %558 = vector.broadcast %557 : vector<8x1xf32> to vector<8x128xf32>
    %559 = arith.cmpf oeq, %555, %558 : vector<8x128xf32>
    %c128_i32_112 = arith.constant 128 : i32
    %560 = vector.broadcast %c128_i32_112 : i32 to vector<8x128xi32>
    %561 = arith.select %559, %213, %560 : vector<8x128xi1>, vector<8x128xi32>
    %cst_113 = arith.constant dense<2147483647> : vector<8xi32>
    %562 = vector.multi_reduction <minsi>, %561, %cst_113 [1] : vector<8x128xi32> to vector<8xi32>
    %563 = vector.shape_cast %562 : vector<8xi32> to vector<8x1xi32>
    %564 = arith.sitofp %563 : vector<8x1xi32> to vector<8x1xf32>
    %565 = vector.broadcast %502 : vector<8x1xi32> to vector<8x128xi32>
    %566 = arith.cmpi eq, %213, %565 : vector<8x128xi32>
    %cst_114 = arith.constant 1.000000e+00 : f32
    %567 = vector.broadcast %cst_114 : f32 to vector<8x128xf32>
    %568 = arith.select %566, %567, %490 : vector<8x128xi1>, vector<8x128xf32>
    %cst_115 = arith.constant 5.000000e-01 : f32
    %569 = vector.broadcast %cst_115 : f32 to vector<8x128xf32>
    %570 = arith.cmpf ogt, %568, %569 : vector<8x128xf32>
    %cst_116 = arith.constant 0xFF800000 : f32
    %571 = vector.broadcast %cst_116 : f32 to vector<8x128xf32>
    %572 = arith.select %570, %571, %555 : vector<8x128xi1>, vector<8x128xf32>
    %cst_117 = arith.constant dense<0xFF800000> : vector<8xf32>
    %573 = vector.multi_reduction <maximumf>, %572, %cst_117 [1] : vector<8x128xf32> to vector<8xf32>
    %574 = vector.shape_cast %573 : vector<8xf32> to vector<8x1xf32>
    %575 = vector.broadcast %574 : vector<8x1xf32> to vector<8x128xf32>
    %576 = arith.cmpf oeq, %572, %575 : vector<8x128xf32>
    %c128_i32_118 = arith.constant 128 : i32
    %577 = vector.broadcast %c128_i32_118 : i32 to vector<8x128xi32>
    %578 = arith.select %576, %213, %577 : vector<8x128xi1>, vector<8x128xi32>
    %cst_119 = arith.constant dense<2147483647> : vector<8xi32>
    %579 = vector.multi_reduction <minsi>, %578, %cst_119 [1] : vector<8x128xi32> to vector<8xi32>
    %580 = vector.shape_cast %579 : vector<8xi32> to vector<8x1xi32>
    %581 = vector.broadcast %574 : vector<8x1xf32> to vector<8x128xf32>
    %582 = arith.subf %572, %581 : vector<8x128xf32>
    %583 = math.exp %582 : vector<8x128xf32>
    %cst_120 = arith.constant dense<0.000000e+00> : vector<8xf32>
    %584 = vector.multi_reduction <add>, %583, %cst_120 [1] : vector<8x128xf32> to vector<8xf32>
    %585 = vector.shape_cast %584 : vector<8xf32> to vector<8x1xf32>
    %586 = math.log %585 : vector<8x1xf32>
    %587 = vector.broadcast %580 : vector<8x1xi32> to vector<8x128xi32>
    %588 = arith.cmpi eq, %213, %587 : vector<8x128xi32>
    %589 = vector.broadcast %586 : vector<8x1xf32> to vector<8x128xf32>
    %590 = arith.subf %582, %589 : vector<8x128xf32>
    %cst_121 = arith.constant 0.000000e+00 : f32
    %591 = vector.broadcast %cst_121 : f32 to vector<8x128xf32>
    %592 = arith.select %588, %590, %591 : vector<8x128xi1>, vector<8x128xf32>
    %cst_122 = arith.constant dense<0.000000e+00> : vector<8xf32>
    %593 = vector.multi_reduction <add>, %592, %cst_122 [1] : vector<8x128xf32> to vector<8xf32>
    %594 = vector.shape_cast %593 : vector<8xf32> to vector<8x1xf32>
    %c4_i32 = arith.constant 4 : i32
    %595 = vector.broadcast %c4_i32 : i32 to vector<8x8xi32>
    %596 = arith.cmpi eq, %214, %595 : vector<8x8xi32>
    %597 = arith.sitofp %580 : vector<8x1xi32> to vector<8x1xf32>
    %598 = vector.shape_cast %597 : vector<8x1xf32> to vector<8x1xf32>
    %599 = vector.broadcast %598 : vector<8x1xf32> to vector<8x8xf32>
    %600 = arith.select %596, %599, %522 : vector<8x8xi1>, vector<8x8xf32>
    %601 = vector.shape_cast %594 : vector<8x1xf32> to vector<8x1xf32>
    %602 = vector.broadcast %601 : vector<8x1xf32> to vector<8x8xf32>
    %603 = arith.select %596, %602, %525 : vector<8x8xi1>, vector<8x8xf32>
    %604 = vector.broadcast %564 : vector<8x1xf32> to vector<8x128xf32>
    %605 = vector.broadcast %5 : vector<1x128xf32> to vector<8x128xf32>
    %606 = arith.mulf %604, %605 : vector<8x128xf32>
    %607 = vector.broadcast %6 : vector<1x128xf32> to vector<8x128xf32>
    %608 = arith.addf %606, %607 : vector<8x128xf32>
    %cst_123 = arith.constant 0.000000e+00 : f32
    %609 = vector.broadcast %cst_123 : f32 to vector<8x128xf32>
    %610 = arith.maximumf %608, %609 : vector<8x128xf32>
    %611 = tpu.concatenate %610, %552 in 1 : vector<8x128xf32>, vector<8x128xf32> -> vector<8x256xf32>
    %cst_124 = arith.constant dense<0.000000e+00> : vector<8x512xf32>
    %612 = tpu.matmul %611, %7, %cst_124 {dimension_numbers = #tpu.dot_dimension_numbers<[1], [0], [0], [1], [0, 0, 1, 1], [], []>} : vector<8x256xf32>, vector<256x512xf32>, vector<8x512xf32> -> vector<8x512xf32>
    %613 = vector.broadcast %8 : vector<1x512xf32> to vector<8x512xf32>
    %614 = arith.addf %612, %613 : vector<8x512xf32>
    %615 = vector.extract_strided_slice %614 {offsets = [0, 0], sizes = [8, 384], strides = [1, 1]} : vector<8x512xf32> to vector<8x384xf32>
    %616 = arith.negf %615 : vector<8x384xf32>
    %617 = math.exp %616 : vector<8x384xf32>
    %cst_125 = arith.constant 1.000000e+00 : f32
    %618 = vector.broadcast %cst_125 : f32 to vector<8x384xf32>
    %619 = arith.addf %618, %617 : vector<8x384xf32>
    %620 = arith.divf %618, %619 : vector<8x384xf32>
    %621 = vector.extract_strided_slice %620 {offsets = [0, 0], sizes = [8, 128], strides = [1, 1]} : vector<8x384xf32> to vector<8x128xf32>
    %622 = vector.extract_strided_slice %620 {offsets = [0, 128], sizes = [8, 128], strides = [1, 1]} : vector<8x384xf32> to vector<8x128xf32>
    %623 = vector.extract_strided_slice %620 {offsets = [0, 256], sizes = [8, 128], strides = [1, 1]} : vector<8x384xf32> to vector<8x128xf32>
    %624 = vector.extract_strided_slice %614 {offsets = [0, 384], sizes = [8, 128], strides = [1, 1]} : vector<8x512xf32> to vector<8x128xf32>
    %625 = math.tanh %624 : vector<8x128xf32>
    %626 = arith.mulf %622, %550 : vector<8x128xf32>
    %627 = arith.mulf %621, %625 : vector<8x128xf32>
    %628 = arith.addf %626, %627 : vector<8x128xf32>
    %629 = math.tanh %628 : vector<8x128xf32>
    %630 = arith.mulf %623, %629 : vector<8x128xf32>
    %cst_126 = arith.constant dense<0.000000e+00> : vector<8x128xf32>
    %631 = tpu.matmul %630, %9, %cst_126 {dimension_numbers = #tpu.dot_dimension_numbers<[1], [0], [0], [1], [0, 0, 1, 1], [], []>} : vector<8x128xf32>, vector<128x128xf32>, vector<8x128xf32> -> vector<8x128xf32>
    %632 = vector.broadcast %10 : vector<1x128xf32> to vector<8x128xf32>
    %633 = arith.addf %631, %632 : vector<8x128xf32>
    %cst_127 = arith.constant dense<0xFF800000> : vector<8xf32>
    %634 = vector.multi_reduction <maximumf>, %633, %cst_127 [1] : vector<8x128xf32> to vector<8xf32>
    %635 = vector.shape_cast %634 : vector<8xf32> to vector<8x1xf32>
    %636 = vector.broadcast %635 : vector<8x1xf32> to vector<8x128xf32>
    %637 = arith.cmpf oeq, %633, %636 : vector<8x128xf32>
    %c128_i32_128 = arith.constant 128 : i32
    %638 = vector.broadcast %c128_i32_128 : i32 to vector<8x128xi32>
    %639 = arith.select %637, %213, %638 : vector<8x128xi1>, vector<8x128xi32>
    %cst_129 = arith.constant dense<2147483647> : vector<8xi32>
    %640 = vector.multi_reduction <minsi>, %639, %cst_129 [1] : vector<8x128xi32> to vector<8xi32>
    %641 = vector.shape_cast %640 : vector<8xi32> to vector<8x1xi32>
    %642 = arith.sitofp %641 : vector<8x1xi32> to vector<8x1xf32>
    %643 = vector.broadcast %580 : vector<8x1xi32> to vector<8x128xi32>
    %644 = arith.cmpi eq, %213, %643 : vector<8x128xi32>
    %cst_130 = arith.constant 1.000000e+00 : f32
    %645 = vector.broadcast %cst_130 : f32 to vector<8x128xf32>
    %646 = arith.select %644, %645, %568 : vector<8x128xi1>, vector<8x128xf32>
    %cst_131 = arith.constant 5.000000e-01 : f32
    %647 = vector.broadcast %cst_131 : f32 to vector<8x128xf32>
    %648 = arith.cmpf ogt, %646, %647 : vector<8x128xf32>
    %cst_132 = arith.constant 0xFF800000 : f32
    %649 = vector.broadcast %cst_132 : f32 to vector<8x128xf32>
    %650 = arith.select %648, %649, %633 : vector<8x128xi1>, vector<8x128xf32>
    %cst_133 = arith.constant dense<0xFF800000> : vector<8xf32>
    %651 = vector.multi_reduction <maximumf>, %650, %cst_133 [1] : vector<8x128xf32> to vector<8xf32>
    %652 = vector.shape_cast %651 : vector<8xf32> to vector<8x1xf32>
    %653 = vector.broadcast %652 : vector<8x1xf32> to vector<8x128xf32>
    %654 = arith.cmpf oeq, %650, %653 : vector<8x128xf32>
    %c128_i32_134 = arith.constant 128 : i32
    %655 = vector.broadcast %c128_i32_134 : i32 to vector<8x128xi32>
    %656 = arith.select %654, %213, %655 : vector<8x128xi1>, vector<8x128xi32>
    %cst_135 = arith.constant dense<2147483647> : vector<8xi32>
    %657 = vector.multi_reduction <minsi>, %656, %cst_135 [1] : vector<8x128xi32> to vector<8xi32>
    %658 = vector.shape_cast %657 : vector<8xi32> to vector<8x1xi32>
    %659 = vector.broadcast %652 : vector<8x1xf32> to vector<8x128xf32>
    %660 = arith.subf %650, %659 : vector<8x128xf32>
    %661 = math.exp %660 : vector<8x128xf32>
    %cst_136 = arith.constant dense<0.000000e+00> : vector<8xf32>
    %662 = vector.multi_reduction <add>, %661, %cst_136 [1] : vector<8x128xf32> to vector<8xf32>
    %663 = vector.shape_cast %662 : vector<8xf32> to vector<8x1xf32>
    %664 = math.log %663 : vector<8x1xf32>
    %665 = vector.broadcast %658 : vector<8x1xi32> to vector<8x128xi32>
    %666 = arith.cmpi eq, %213, %665 : vector<8x128xi32>
    %667 = vector.broadcast %664 : vector<8x1xf32> to vector<8x128xf32>
    %668 = arith.subf %660, %667 : vector<8x128xf32>
    %cst_137 = arith.constant 0.000000e+00 : f32
    %669 = vector.broadcast %cst_137 : f32 to vector<8x128xf32>
    %670 = arith.select %666, %668, %669 : vector<8x128xi1>, vector<8x128xf32>
    %cst_138 = arith.constant dense<0.000000e+00> : vector<8xf32>
    %671 = vector.multi_reduction <add>, %670, %cst_138 [1] : vector<8x128xf32> to vector<8xf32>
    %672 = vector.shape_cast %671 : vector<8xf32> to vector<8x1xf32>
    %c5_i32 = arith.constant 5 : i32
    %673 = vector.broadcast %c5_i32 : i32 to vector<8x8xi32>
    %674 = arith.cmpi eq, %214, %673 : vector<8x8xi32>
    %675 = arith.sitofp %658 : vector<8x1xi32> to vector<8x1xf32>
    %676 = vector.shape_cast %675 : vector<8x1xf32> to vector<8x1xf32>
    %677 = vector.broadcast %676 : vector<8x1xf32> to vector<8x8xf32>
    %678 = arith.select %674, %677, %600 : vector<8x8xi1>, vector<8x8xf32>
    %679 = vector.shape_cast %672 : vector<8x1xf32> to vector<8x1xf32>
    %680 = vector.broadcast %679 : vector<8x1xf32> to vector<8x8xf32>
    %681 = arith.select %674, %680, %603 : vector<8x8xi1>, vector<8x8xf32>
    %682 = vector.broadcast %642 : vector<8x1xf32> to vector<8x128xf32>
    %683 = vector.broadcast %5 : vector<1x128xf32> to vector<8x128xf32>
    %684 = arith.mulf %682, %683 : vector<8x128xf32>
    %685 = vector.broadcast %6 : vector<1x128xf32> to vector<8x128xf32>
    %686 = arith.addf %684, %685 : vector<8x128xf32>
    %cst_139 = arith.constant 0.000000e+00 : f32
    %687 = vector.broadcast %cst_139 : f32 to vector<8x128xf32>
    %688 = arith.maximumf %686, %687 : vector<8x128xf32>
    %689 = tpu.concatenate %688, %630 in 1 : vector<8x128xf32>, vector<8x128xf32> -> vector<8x256xf32>
    %cst_140 = arith.constant dense<0.000000e+00> : vector<8x512xf32>
    %690 = tpu.matmul %689, %7, %cst_140 {dimension_numbers = #tpu.dot_dimension_numbers<[1], [0], [0], [1], [0, 0, 1, 1], [], []>} : vector<8x256xf32>, vector<256x512xf32>, vector<8x512xf32> -> vector<8x512xf32>
    %691 = vector.broadcast %8 : vector<1x512xf32> to vector<8x512xf32>
    %692 = arith.addf %690, %691 : vector<8x512xf32>
    %693 = vector.extract_strided_slice %692 {offsets = [0, 0], sizes = [8, 384], strides = [1, 1]} : vector<8x512xf32> to vector<8x384xf32>
    %694 = arith.negf %693 : vector<8x384xf32>
    %695 = math.exp %694 : vector<8x384xf32>
    %cst_141 = arith.constant 1.000000e+00 : f32
    %696 = vector.broadcast %cst_141 : f32 to vector<8x384xf32>
    %697 = arith.addf %696, %695 : vector<8x384xf32>
    %698 = arith.divf %696, %697 : vector<8x384xf32>
    %699 = vector.extract_strided_slice %698 {offsets = [0, 0], sizes = [8, 128], strides = [1, 1]} : vector<8x384xf32> to vector<8x128xf32>
    %700 = vector.extract_strided_slice %698 {offsets = [0, 128], sizes = [8, 128], strides = [1, 1]} : vector<8x384xf32> to vector<8x128xf32>
    %701 = vector.extract_strided_slice %698 {offsets = [0, 256], sizes = [8, 128], strides = [1, 1]} : vector<8x384xf32> to vector<8x128xf32>
    %702 = vector.extract_strided_slice %692 {offsets = [0, 384], sizes = [8, 128], strides = [1, 1]} : vector<8x512xf32> to vector<8x128xf32>
    %703 = math.tanh %702 : vector<8x128xf32>
    %704 = arith.mulf %700, %628 : vector<8x128xf32>
    %705 = arith.mulf %699, %703 : vector<8x128xf32>
    %706 = arith.addf %704, %705 : vector<8x128xf32>
    %707 = math.tanh %706 : vector<8x128xf32>
    %708 = arith.mulf %701, %707 : vector<8x128xf32>
    %cst_142 = arith.constant dense<0.000000e+00> : vector<8x128xf32>
    %709 = tpu.matmul %708, %9, %cst_142 {dimension_numbers = #tpu.dot_dimension_numbers<[1], [0], [0], [1], [0, 0, 1, 1], [], []>} : vector<8x128xf32>, vector<128x128xf32>, vector<8x128xf32> -> vector<8x128xf32>
    %710 = vector.broadcast %10 : vector<1x128xf32> to vector<8x128xf32>
    %711 = arith.addf %709, %710 : vector<8x128xf32>
    %cst_143 = arith.constant dense<0xFF800000> : vector<8xf32>
    %712 = vector.multi_reduction <maximumf>, %711, %cst_143 [1] : vector<8x128xf32> to vector<8xf32>
    %713 = vector.shape_cast %712 : vector<8xf32> to vector<8x1xf32>
    %714 = vector.broadcast %713 : vector<8x1xf32> to vector<8x128xf32>
    %715 = arith.cmpf oeq, %711, %714 : vector<8x128xf32>
    %c128_i32_144 = arith.constant 128 : i32
    %716 = vector.broadcast %c128_i32_144 : i32 to vector<8x128xi32>
    %717 = arith.select %715, %213, %716 : vector<8x128xi1>, vector<8x128xi32>
    %cst_145 = arith.constant dense<2147483647> : vector<8xi32>
    %718 = vector.multi_reduction <minsi>, %717, %cst_145 [1] : vector<8x128xi32> to vector<8xi32>
    %719 = vector.shape_cast %718 : vector<8xi32> to vector<8x1xi32>
    %720 = arith.sitofp %719 : vector<8x1xi32> to vector<8x1xf32>
    %721 = vector.broadcast %658 : vector<8x1xi32> to vector<8x128xi32>
    %722 = arith.cmpi eq, %213, %721 : vector<8x128xi32>
    %cst_146 = arith.constant 1.000000e+00 : f32
    %723 = vector.broadcast %cst_146 : f32 to vector<8x128xf32>
    %724 = arith.select %722, %723, %646 : vector<8x128xi1>, vector<8x128xf32>
    %cst_147 = arith.constant 5.000000e-01 : f32
    %725 = vector.broadcast %cst_147 : f32 to vector<8x128xf32>
    %726 = arith.cmpf ogt, %724, %725 : vector<8x128xf32>
    %cst_148 = arith.constant 0xFF800000 : f32
    %727 = vector.broadcast %cst_148 : f32 to vector<8x128xf32>
    %728 = arith.select %726, %727, %711 : vector<8x128xi1>, vector<8x128xf32>
    %cst_149 = arith.constant dense<0xFF800000> : vector<8xf32>
    %729 = vector.multi_reduction <maximumf>, %728, %cst_149 [1] : vector<8x128xf32> to vector<8xf32>
    %730 = vector.shape_cast %729 : vector<8xf32> to vector<8x1xf32>
    %731 = vector.broadcast %730 : vector<8x1xf32> to vector<8x128xf32>
    %732 = arith.cmpf oeq, %728, %731 : vector<8x128xf32>
    %c128_i32_150 = arith.constant 128 : i32
    %733 = vector.broadcast %c128_i32_150 : i32 to vector<8x128xi32>
    %734 = arith.select %732, %213, %733 : vector<8x128xi1>, vector<8x128xi32>
    %cst_151 = arith.constant dense<2147483647> : vector<8xi32>
    %735 = vector.multi_reduction <minsi>, %734, %cst_151 [1] : vector<8x128xi32> to vector<8xi32>
    %736 = vector.shape_cast %735 : vector<8xi32> to vector<8x1xi32>
    %737 = vector.broadcast %730 : vector<8x1xf32> to vector<8x128xf32>
    %738 = arith.subf %728, %737 : vector<8x128xf32>
    %739 = math.exp %738 : vector<8x128xf32>
    %cst_152 = arith.constant dense<0.000000e+00> : vector<8xf32>
    %740 = vector.multi_reduction <add>, %739, %cst_152 [1] : vector<8x128xf32> to vector<8xf32>
    %741 = vector.shape_cast %740 : vector<8xf32> to vector<8x1xf32>
    %742 = math.log %741 : vector<8x1xf32>
    %743 = vector.broadcast %736 : vector<8x1xi32> to vector<8x128xi32>
    %744 = arith.cmpi eq, %213, %743 : vector<8x128xi32>
    %745 = vector.broadcast %742 : vector<8x1xf32> to vector<8x128xf32>
    %746 = arith.subf %738, %745 : vector<8x128xf32>
    %cst_153 = arith.constant 0.000000e+00 : f32
    %747 = vector.broadcast %cst_153 : f32 to vector<8x128xf32>
    %748 = arith.select %744, %746, %747 : vector<8x128xi1>, vector<8x128xf32>
    %cst_154 = arith.constant dense<0.000000e+00> : vector<8xf32>
    %749 = vector.multi_reduction <add>, %748, %cst_154 [1] : vector<8x128xf32> to vector<8xf32>
    %750 = vector.shape_cast %749 : vector<8xf32> to vector<8x1xf32>
    %c6_i32 = arith.constant 6 : i32
    %751 = vector.broadcast %c6_i32 : i32 to vector<8x8xi32>
    %752 = arith.cmpi eq, %214, %751 : vector<8x8xi32>
    %753 = arith.sitofp %736 : vector<8x1xi32> to vector<8x1xf32>
    %754 = vector.shape_cast %753 : vector<8x1xf32> to vector<8x1xf32>
    %755 = vector.broadcast %754 : vector<8x1xf32> to vector<8x8xf32>
    %756 = arith.select %752, %755, %678 : vector<8x8xi1>, vector<8x8xf32>
    %757 = vector.shape_cast %750 : vector<8x1xf32> to vector<8x1xf32>
    %758 = vector.broadcast %757 : vector<8x1xf32> to vector<8x8xf32>
    %759 = arith.select %752, %758, %681 : vector<8x8xi1>, vector<8x8xf32>
    %760 = vector.broadcast %720 : vector<8x1xf32> to vector<8x128xf32>
    %761 = vector.broadcast %5 : vector<1x128xf32> to vector<8x128xf32>
    %762 = arith.mulf %760, %761 : vector<8x128xf32>
    %763 = vector.broadcast %6 : vector<1x128xf32> to vector<8x128xf32>
    %764 = arith.addf %762, %763 : vector<8x128xf32>
    %cst_155 = arith.constant 0.000000e+00 : f32
    %765 = vector.broadcast %cst_155 : f32 to vector<8x128xf32>
    %766 = arith.maximumf %764, %765 : vector<8x128xf32>
    %767 = tpu.concatenate %766, %708 in 1 : vector<8x128xf32>, vector<8x128xf32> -> vector<8x256xf32>
    %cst_156 = arith.constant dense<0.000000e+00> : vector<8x512xf32>
    %768 = tpu.matmul %767, %7, %cst_156 {dimension_numbers = #tpu.dot_dimension_numbers<[1], [0], [0], [1], [0, 0, 1, 1], [], []>} : vector<8x256xf32>, vector<256x512xf32>, vector<8x512xf32> -> vector<8x512xf32>
    %769 = vector.broadcast %8 : vector<1x512xf32> to vector<8x512xf32>
    %770 = arith.addf %768, %769 : vector<8x512xf32>
    %771 = vector.extract_strided_slice %770 {offsets = [0, 0], sizes = [8, 384], strides = [1, 1]} : vector<8x512xf32> to vector<8x384xf32>
    %772 = arith.negf %771 : vector<8x384xf32>
    %773 = math.exp %772 : vector<8x384xf32>
    %cst_157 = arith.constant 1.000000e+00 : f32
    %774 = vector.broadcast %cst_157 : f32 to vector<8x384xf32>
    %775 = arith.addf %774, %773 : vector<8x384xf32>
    %776 = arith.divf %774, %775 : vector<8x384xf32>
    %777 = vector.extract_strided_slice %776 {offsets = [0, 0], sizes = [8, 128], strides = [1, 1]} : vector<8x384xf32> to vector<8x128xf32>
    %778 = vector.extract_strided_slice %776 {offsets = [0, 128], sizes = [8, 128], strides = [1, 1]} : vector<8x384xf32> to vector<8x128xf32>
    %779 = vector.extract_strided_slice %776 {offsets = [0, 256], sizes = [8, 128], strides = [1, 1]} : vector<8x384xf32> to vector<8x128xf32>
    %780 = vector.extract_strided_slice %770 {offsets = [0, 384], sizes = [8, 128], strides = [1, 1]} : vector<8x512xf32> to vector<8x128xf32>
    %781 = math.tanh %780 : vector<8x128xf32>
    %782 = arith.mulf %778, %706 : vector<8x128xf32>
    %783 = arith.mulf %777, %781 : vector<8x128xf32>
    %784 = arith.addf %782, %783 : vector<8x128xf32>
    %785 = math.tanh %784 : vector<8x128xf32>
    %786 = arith.mulf %779, %785 : vector<8x128xf32>
    %cst_158 = arith.constant dense<0.000000e+00> : vector<8x128xf32>
    %787 = tpu.matmul %786, %9, %cst_158 {dimension_numbers = #tpu.dot_dimension_numbers<[1], [0], [0], [1], [0, 0, 1, 1], [], []>} : vector<8x128xf32>, vector<128x128xf32>, vector<8x128xf32> -> vector<8x128xf32>
    %788 = vector.broadcast %10 : vector<1x128xf32> to vector<8x128xf32>
    %789 = arith.addf %787, %788 : vector<8x128xf32>
    %790 = vector.broadcast %736 : vector<8x1xi32> to vector<8x128xi32>
    %791 = arith.cmpi eq, %213, %790 : vector<8x128xi32>
    %cst_159 = arith.constant 1.000000e+00 : f32
    %792 = vector.broadcast %cst_159 : f32 to vector<8x128xf32>
    %793 = arith.select %791, %792, %724 : vector<8x128xi1>, vector<8x128xf32>
    %cst_160 = arith.constant 5.000000e-01 : f32
    %794 = vector.broadcast %cst_160 : f32 to vector<8x128xf32>
    %795 = arith.cmpf ogt, %793, %794 : vector<8x128xf32>
    %cst_161 = arith.constant 0xFF800000 : f32
    %796 = vector.broadcast %cst_161 : f32 to vector<8x128xf32>
    %797 = arith.select %795, %796, %789 : vector<8x128xi1>, vector<8x128xf32>
    %cst_162 = arith.constant dense<0xFF800000> : vector<8xf32>
    %798 = vector.multi_reduction <maximumf>, %797, %cst_162 [1] : vector<8x128xf32> to vector<8xf32>
    %799 = vector.shape_cast %798 : vector<8xf32> to vector<8x1xf32>
    %800 = vector.broadcast %799 : vector<8x1xf32> to vector<8x128xf32>
    %801 = arith.cmpf oeq, %797, %800 : vector<8x128xf32>
    %c128_i32_163 = arith.constant 128 : i32
    %802 = vector.broadcast %c128_i32_163 : i32 to vector<8x128xi32>
    %803 = arith.select %801, %213, %802 : vector<8x128xi1>, vector<8x128xi32>
    %cst_164 = arith.constant dense<2147483647> : vector<8xi32>
    %804 = vector.multi_reduction <minsi>, %803, %cst_164 [1] : vector<8x128xi32> to vector<8xi32>
    %805 = vector.shape_cast %804 : vector<8xi32> to vector<8x1xi32>
    %806 = vector.broadcast %799 : vector<8x1xf32> to vector<8x128xf32>
    %807 = arith.subf %797, %806 : vector<8x128xf32>
    %808 = math.exp %807 : vector<8x128xf32>
    %cst_165 = arith.constant dense<0.000000e+00> : vector<8xf32>
    %809 = vector.multi_reduction <add>, %808, %cst_165 [1] : vector<8x128xf32> to vector<8xf32>
    %810 = vector.shape_cast %809 : vector<8xf32> to vector<8x1xf32>
    %811 = math.log %810 : vector<8x1xf32>
    %812 = vector.broadcast %805 : vector<8x1xi32> to vector<8x128xi32>
    %813 = arith.cmpi eq, %213, %812 : vector<8x128xi32>
    %814 = vector.broadcast %811 : vector<8x1xf32> to vector<8x128xf32>
    %815 = arith.subf %807, %814 : vector<8x128xf32>
    %cst_166 = arith.constant 0.000000e+00 : f32
    %816 = vector.broadcast %cst_166 : f32 to vector<8x128xf32>
    %817 = arith.select %813, %815, %816 : vector<8x128xi1>, vector<8x128xf32>
    %cst_167 = arith.constant dense<0.000000e+00> : vector<8xf32>
    %818 = vector.multi_reduction <add>, %817, %cst_167 [1] : vector<8x128xf32> to vector<8xf32>
    %819 = vector.shape_cast %818 : vector<8xf32> to vector<8x1xf32>
    %c7_i32 = arith.constant 7 : i32
    %820 = vector.broadcast %c7_i32 : i32 to vector<8x8xi32>
    %821 = arith.cmpi eq, %214, %820 : vector<8x8xi32>
    %822 = arith.sitofp %805 : vector<8x1xi32> to vector<8x1xf32>
    %823 = vector.shape_cast %822 : vector<8x1xf32> to vector<8x1xf32>
    %824 = vector.broadcast %823 : vector<8x1xf32> to vector<8x8xf32>
    %825 = arith.select %821, %824, %756 : vector<8x8xi1>, vector<8x8xf32>
    %826 = vector.shape_cast %819 : vector<8x1xf32> to vector<8x1xf32>
    %827 = vector.broadcast %826 : vector<8x1xf32> to vector<8x8xf32>
    %828 = arith.select %821, %827, %759 : vector<8x8xi1>, vector<8x8xf32>
    %c0_168 = arith.constant 0 : index
    %c0_169 = arith.constant 0 : index
    %829 = vector.load %arg12[%c0_168, %c0_169] : memref<8x8xf32, #tpu.memory_space<vmem>>, vector<8x8xf32>
    tpu.vector_store %arg12[%c0_168, %c0_169], %825 {strides = array<i32>} : memref<8x8xf32, #tpu.memory_space<vmem>>, vector<8x8xf32>,
    %c0_170 = arith.constant 0 : index
    %c0_171 = arith.constant 0 : index
    %830 = vector.load %arg13[%c0_170, %c0_171] : memref<8x8xf32, #tpu.memory_space<vmem>>, vector<8x8xf32>
    tpu.vector_store %arg13[%c0_170, %c0_171], %828 {strides = array<i32>} : memref<8x8xf32, #tpu.memory_space<vmem>>, vector<8x8xf32>,
    return
  }
  func.func @transform_0(%arg0: i32) -> (i32, i32) {
    %c0_i32 = arith.constant 0 : i32
    %c0_i32_0 = arith.constant 0 : i32
    return %arg0, %c0_i32 : i32, i32
  }
  func.func @transform_1(%arg0: i32) -> (i32, i32) {
    %c0_i32 = arith.constant 0 : i32
    %c0_i32_0 = arith.constant 0 : i32
    %c0_i32_1 = arith.constant 0 : i32
    return %c0_i32, %c0_i32_0 : i32, i32
  }
  func.func @transform_2(%arg0: i32) -> (i32, i32) {
    %c0_i32 = arith.constant 0 : i32
    %c0_i32_0 = arith.constant 0 : i32
    %c0_i32_1 = arith.constant 0 : i32
    return %c0_i32, %c0_i32_0 : i32, i32
  }
  func.func @transform_3(%arg0: i32) -> (i32, i32) {
    %c0_i32 = arith.constant 0 : i32
    %c0_i32_0 = arith.constant 0 : i32
    %c0_i32_1 = arith.constant 0 : i32
    return %c0_i32, %c0_i32_0 : i32, i32
  }
  func.func @transform_4(%arg0: i32) -> (i32, i32) {
    %c0_i32 = arith.constant 0 : i32
    %c0_i32_0 = arith.constant 0 : i32
    %c0_i32_1 = arith.constant 0 : i32
    return %c0_i32, %c0_i32_0 : i32, i32
  }
  func.func @transform_5(%arg0: i32) -> (i32, i32) {
    %c0_i32 = arith.constant 0 : i32
    %c0_i32_0 = arith.constant 0 : i32
    %c0_i32_1 = arith.constant 0 : i32
    return %c0_i32, %c0_i32_0 : i32, i32
  }
  func.func @transform_6(%arg0: i32) -> (i32, i32) {
    %c0_i32 = arith.constant 0 : i32
    %c0_i32_0 = arith.constant 0 : i32
    %c0_i32_1 = arith.constant 0 : i32
    return %c0_i32, %c0_i32_0 : i32, i32
  }
  func.func @transform_7(%arg0: i32) -> (i32, i32) {
    %c0_i32 = arith.constant 0 : i32
    %c0_i32_0 = arith.constant 0 : i32
    %c0_i32_1 = arith.constant 0 : i32
    return %c0_i32, %c0_i32_0 : i32, i32
  }
  func.func @transform_8(%arg0: i32) -> (i32, i32) {
    %c0_i32 = arith.constant 0 : i32
    %c0_i32_0 = arith.constant 0 : i32
    %c0_i32_1 = arith.constant 0 : i32
    return %c0_i32, %c0_i32_0 : i32, i32
  }
  func.func @transform_9(%arg0: i32) -> (i32, i32) {
    %c0_i32 = arith.constant 0 : i32
    %c0_i32_0 = arith.constant 0 : i32
    %c0_i32_1 = arith.constant 0 : i32
    return %c0_i32, %c0_i32_0 : i32, i32
  }
  func.func @transform_10(%arg0: i32) -> (i32, i32) {
    %c0_i32 = arith.constant 0 : i32
    %c0_i32_0 = arith.constant 0 : i32
    %c0_i32_1 = arith.constant 0 : i32
    return %c0_i32, %c0_i32_0 : i32, i32
  }
  func.func @transform_11(%arg0: i32) -> (i32, i32) {
    %c0_i32 = arith.constant 0 : i32
    %c0_i32_0 = arith.constant 0 : i32
    return %arg0, %c0_i32 : i32, i32
  }
  func.func @transform_12(%arg0: i32) -> (i32, i32) {
    %c0_i32 = arith.constant 0 : i32
    %c0_i32_0 = arith.constant 0 : i32
    return %arg0, %c0_i32 : i32, i32
  }
}

</mosaic_0001>

<llo_original>
// kernel: tpu_custom_call.1
$region0: #{tpu_custom_call.1}
  #allocation0 [shape = 'u32[]', space=smem, size = 0x4, offset = 0x4, fixed_abs, tag = 'smem constant byte address 0x4 - core index']
  #allocation1 [shape = 'u32[144,128]{1,0:T(1,128)}', space=vmem, size = 0x12000, scoped, tag = 'internal scratch']
  %s0 = inlined_call_operand.hbm [shape: s32[8,8], index: 0, kind: input, shape index: {}]
  %s1 = inlined_call_operand.hbm [shape: f32[128,128], index: 1, kind: input, shape index: {}]
  %s2 = inlined_call_operand.hbm [shape: f32[128,512], index: 2, kind: input, shape index: {}]
  %s3 = inlined_call_operand.hbm [shape: f32[128,512], index: 3, kind: input, shape index: {}]
  %s4 = inlined_call_operand.vmem [shape: f32[1,512], index: 4, kind: input, shape index: {}]
  %s5 = inlined_call_operand.vmem [shape: f32[1,128], index: 5, kind: input, shape index: {}]
  %s6 = inlined_call_operand.vmem [shape: f32[1,128], index: 6, kind: input, shape index: {}]
  %s7 = inlined_call_operand.hbm [shape: f32[256,512], index: 7, kind: input, shape index: {}]
  %s8 = inlined_call_operand.vmem [shape: f32[1,512], index: 8, kind: input, shape index: {}]
  %s9 = inlined_call_operand.hbm [shape: f32[128,128], index: 9, kind: input, shape index: {}]
  %s10 = inlined_call_operand.vmem [shape: f32[1,128], index: 10, kind: input, shape index: {}]
  %s11 = inlined_call_operand.hbm [shape: f32[8,8], index: 11, kind: output, shape index: {0}]
  %s12 = inlined_call_operand.hbm [shape: f32[8,8], index: 12, kind: output, shape index: {1}]
  %13 = xla_tuple %s11, %s12
  %s14 = sld [smem:[#allocation0]]
  $region86: #{tpu_custom_call.1} parent=0
    _
  %s16 = ssub.s32 1, %s14
  %s17 = scalar_select 0, %s16, %s14
  $region1: #{tpu_custom_call.1} parent=0
    #allocation2 [shape = 'u8[4096]{0}', space=vmem, size = 0x1000, scoped, tag = 'input window, operand 0, single buffered']
    #allocation3 [shape = 's32[1]{0}', space=sflag, size = 0x4, scoped, tag = 'scoped memory for tpu_custom_call.1']
    #allocation4 [shape = 's32[1]{0}', space=sflag, size = 0x4, scoped, tag = 'scoped memory for tpu_custom_call.1']
    #allocation5 [shape = 'u8[65536]{0}', space=vmem, size = 0x10000, scoped, tag = 'input window, operand 1, single buffered']
    #allocation6 [shape = 's32[1]{0}', space=sflag, size = 0x4, scoped, tag = 'scoped memory for tpu_custom_call.1']
    #allocation7 [shape = 'u8[262144]{0}', space=vmem, size = 0x40000, scoped, tag = 'input window, operand 2, single buffered']
    #allocation8 [shape = 'u8[262144]{0}', space=vmem, size = 0x40000, scoped, tag = 'input window, operand 3, single buffered']
    #allocation9 [shape = 's32[1]{0}', space=sflag, size = 0x4, scoped, tag = 'scoped memory for tpu_custom_call.1']
    #allocation10 [shape = 'u8[524288]{0}', space=vmem, size = 0x80000, scoped, tag = 'input window, operand 7, single buffered']
    #allocation11 [shape = 'u8[65536]{0}', space=vmem, size = 0x10000, scoped, tag = 'input window, operand 9, single buffered']
    #allocation12 [shape = 's32[1]{0}', space=sflag, size = 0x4, scoped, tag = 'scoped memory for tpu_custom_call.1']
    #allocation13 [shape = 'u8[4096]{0}', space=vmem, size = 0x1000, scoped, tag = 'output window, operand 0, single buffered']
    #allocation14 [shape = 'u8[4096]{0}', space=vmem, size = 0x1000, scoped, tag = 'output window, operand 1, single buffered']
    #allocation15 [shape = 's32[1]{0}', space=sflag, size = 0x4, scoped, tag = 'scoped memory for tpu_custom_call.1']
    %18 = vsyncpa [#allocation3], 0
    %19 = vsyncpa [#allocation6], 0
    %20 = vsyncpa [#allocation9], 0
    %21 = vsyncpa [#allocation12], 0
    %22 = vsyncpa [#allocation4], 0
    %23 = vsyncpa [#allocation15], 0
    // Predicated region
    $region2: #{tpu_custom_call.1} parent=1 // pred_check
      _
    $region3: #{tpu_custom_call.1} parent=1 // pred_check_branch
      %25 = sbr.rel (0) target = $region5
    $region4: #{tpu_custom_call.1} parent=1 // pred_region
      %s27 = ssub.s32 128, 128
      %28 = vsyncadd [#allocation3], %s27
      %s30 = sshll.u32 [#allocation2], 4
      %s31 = int_to_ptr.vmem [resolvable:$true] %s30
      %33 = dma.hbm_to_vmem [thread:$0]  %s0, 128, %s31, [#allocation3]
    $region5: #{tpu_custom_call.1} parent=1 // pred_fallthru
      _
    // Predicated region
    $region6: #{tpu_custom_call.1} parent=1 // pred_check
      _
    $region7: #{tpu_custom_call.1} parent=1 // pred_check_branch
      %35 = sbr.rel (0) target = $region9
    $region8: #{tpu_custom_call.1} parent=1 // pred_region
      %s37 = ssub.s32 2048, 2048
      %38 = vsyncadd [#allocation6], %s37
      %s39 = sshll.u32 [#allocation5], 4
      %s40 = int_to_ptr.vmem [resolvable:$true] %s39
      %45 = dma.hbm_to_vmem [thread:$0]  %s1, 2048, %s40, [#allocation6], 128, 128, 8
    $region9: #{tpu_custom_call.1} parent=1 // pred_fallthru
      _
    // Predicated region
    $region10: #{tpu_custom_call.1} parent=1 // pred_check
      _
    $region11: #{tpu_custom_call.1} parent=1 // pred_check_branch
      %47 = sbr.rel (0) target = $region13
    $region12: #{tpu_custom_call.1} parent=1 // pred_region
      %s49 = ssub.s32 8192, 8192
      %50 = vsyncadd [#allocation6], %s49
      %s51 = sshll.u32 [#allocation7], 4
      %s52 = int_to_ptr.vmem [resolvable:$true] %s51
      %57 = dma.hbm_to_vmem [thread:$0]  %s2, 8192, %s52, [#allocation6], 512, 512, 32
    $region13: #{tpu_custom_call.1} parent=1 // pred_fallthru
      _
    // Predicated region
    $region14: #{tpu_custom_call.1} parent=1 // pred_check
      _
    $region15: #{tpu_custom_call.1} parent=1 // pred_check_branch
      %59 = sbr.rel (0) target = $region17
    $region16: #{tpu_custom_call.1} parent=1 // pred_region
      %s61 = ssub.s32 8192, 8192
      %62 = vsyncadd [#allocation9], %s61
      %s63 = sshll.u32 [#allocation8], 4
      %s64 = int_to_ptr.vmem [resolvable:$true] %s63
      %69 = dma.hbm_to_vmem [thread:$0]  %s3, 8192, %s64, [#allocation9], 512, 512, 32
    $region17: #{tpu_custom_call.1} parent=1 // pred_fallthru
      _
    // Predicated region
    $region18: #{tpu_custom_call.1} parent=1 // pred_check
      _
    $region19: #{tpu_custom_call.1} parent=1 // pred_check_branch
      %71 = sbr.rel (0) target = $region21
    $region20: #{tpu_custom_call.1} parent=1 // pred_region
      _
    $region21: #{tpu_custom_call.1} parent=1 // pred_fallthru
      _
    // Predicated region
    $region22: #{tpu_custom_call.1} parent=1 // pred_check
      _
    $region23: #{tpu_custom_call.1} parent=1 // pred_check_branch
      %73 = sbr.rel (0) target = $region25
    $region24: #{tpu_custom_call.1} parent=1 // pred_region
      _
    $region25: #{tpu_custom_call.1} parent=1 // pred_fallthru
      _
    // Predicated region
    $region26: #{tpu_custom_call.1} parent=1 // pred_check
      _
    $region27: #{tpu_custom_call.1} parent=1 // pred_check_branch
      %75 = sbr.rel (0) target = $region29
    $region28: #{tpu_custom_call.1} parent=1 // pred_region
      _
    $region29: #{tpu_custom_call.1} parent=1 // pred_fallthru
      _
    // Predicated region
    $region30: #{tpu_custom_call.1} parent=1 // pred_check
      _
    $region31: #{tpu_custom_call.1} parent=1 // pred_check_branch
      %77 = sbr.rel (0) target = $region33
    $region32: #{tpu_custom_call.1} parent=1 // pred_region
      %s79 = ssub.s32 16384, 16384
      %80 = vsyncadd [#allocation9], %s79
      %s81 = sshll.u32 [#allocation10], 4
      %s82 = int_to_ptr.vmem [resolvable:$true] %s81
      %87 = dma.hbm_to_vmem [thread:$0]  %s7, 16384, %s82, [#allocation9], 512, 512, 32
    $region33: #{tpu_custom_call.1} parent=1 // pred_fallthru
      _
    // Predicated region
    $region34: #{tpu_custom_call.1} parent=1 // pred_check
      _
    $region35: #{tpu_custom_call.1} parent=1 // pred_check_branch
      %89 = sbr.rel (0) target = $region37
    $region36: #{tpu_custom_call.1} parent=1 // pred_region
      _
    $region37: #{tpu_custom_call.1} parent=1 // pred_fallthru
      _
    // Predicated region
    $region38: #{tpu_custom_call.1} parent=1 // pred_check
      _
    $region39: #{tpu_custom_call.1} parent=1 // pred_check_branch
      %91 = sbr.rel (0) target = $region41
    $region40: #{tpu_custom_call.1} parent=1 // pred_region
      %s93 = ssub.s32 2048, 2048
      %94 = vsyncadd [#allocation12], %s93
      %s95 = sshll.u32 [#allocation11], 4
      %s96 = int_to_ptr.vmem [resolvable:$true] %s95
      %101 = dma.hbm_to_vmem [thread:$0]  %s9, 2048, %s96, [#allocation12], 128, 128, 8
    $region41: #{tpu_custom_call.1} parent=1 // pred_fallthru
      _
    // Predicated region
    $region42: #{tpu_custom_call.1} parent=1 // pred_check
      _
    $region43: #{tpu_custom_call.1} parent=1 // pred_check_branch
      %103 = sbr.rel (0) target = $region45
    $region44: #{tpu_custom_call.1} parent=1 // pred_region
      _
    $region45: #{tpu_custom_call.1} parent=1 // pred_fallthru
      _
    // Predicated region
    $region46: #{tpu_custom_call.1} parent=1 // pred_check
      _
    $region47: #{tpu_custom_call.1} parent=1 // pred_check_branch
      %105 = sbr.rel (0) target = $region49
    $region48: #{tpu_custom_call.1} parent=1 // pred_region
      %106 = dma.done [#allocation3], 128
    $region49: #{tpu_custom_call.1} parent=1 // pred_fallthru
      _
    // Predicated region
    $region50: #{tpu_custom_call.1} parent=1 // pred_check
      _
    $region51: #{tpu_custom_call.1} parent=1 // pred_check_branch
      %108 = sbr.rel (0) target = $region53
    $region52: #{tpu_custom_call.1} parent=1 // pred_region
      %109 = dma.done [#allocation6], 2048
    $region53: #{tpu_custom_call.1} parent=1 // pred_fallthru
      _
    // Predicated region
    $region54: #{tpu_custom_call.1} parent=1 // pred_check
      _
    $region55: #{tpu_custom_call.1} parent=1 // pred_check_branch
      %111 = sbr.rel (0) target = $region57
    $region56: #{tpu_custom_call.1} parent=1 // pred_region
      %112 = dma.done [#allocation6], 8192
    $region57: #{tpu_custom_call.1} parent=1 // pred_fallthru
      _
    // Predicated region
    $region58: #{tpu_custom_call.1} parent=1 // pred_check
      _
    $region59: #{tpu_custom_call.1} parent=1 // pred_check_branch
      %114 = sbr.rel (0) target = $region61
    $region60: #{tpu_custom_call.1} parent=1 // pred_region
      %115 = dma.done [#allocation9], 8192
    $region61: #{tpu_custom_call.1} parent=1 // pred_fallthru
      _
    // Predicated region
    $region62: #{tpu_custom_call.1} parent=1 // pred_check
      _
    $region63: #{tpu_custom_call.1} parent=1 // pred_check_branch
      %117 = sbr.rel (0) target = $region65
    $region64: #{tpu_custom_call.1} parent=1 // pred_region
      %118 = dma.done [#allocation9], 16384
    $region65: #{tpu_custom_call.1} parent=1 // pred_fallthru
      _
    // Predicated region
    $region66: #{tpu_custom_call.1} parent=1 // pred_check
      _
    $region67: #{tpu_custom_call.1} parent=1 // pred_check_branch
      %120 = sbr.rel (0) target = $region69
    $region68: #{tpu_custom_call.1} parent=1 // pred_region
      %121 = dma.done [#allocation12], 2048
    $region69: #{tpu_custom_call.1} parent=1 // pred_fallthru
      _
    %v122 = vld [vmem:[#allocation2] sm:$0xff]
    %v123 = vld [vmem:[#allocation5] sm:$0xff]
    %v124 = vld [vmem:[#allocation5 + $0x8] sm:$0xff]
    %v125 = vld [vmem:[#allocation5 + $0x10] sm:$0xff]
    %v126 = vld [vmem:[#allocation5 + $0x18] sm:$0xff]
    %v127 = vld [vmem:[#allocation5 + $0x20] sm:$0xff]
    %v128 = vld [vmem:[#allocation5 + $0x28] sm:$0xff]
    %v129 = vld [vmem:[#allocation5 + $0x30] sm:$0xff]
    %v130 = vld [vmem:[#allocation5 + $0x38] sm:$0xff]
    %v131 = vld [vmem:[#allocation5 + $0x40] sm:$0xff]
    %v132 = vld [vmem:[#allocation5 + $0x48] sm:$0xff]
    %v133 = vld [vmem:[#allocation5 + $0x50] sm:$0xff]
    %v134 = vld [vmem:[#allocation5 + $0x58] sm:$0xff]
    %v135 = vld [vmem:[#allocation5 + $0x60] sm:$0xff]
    %v136 = vld [vmem:[#allocation5 + $0x68] sm:$0xff]
    %v137 = vld [vmem:[#allocation5 + $0x70] sm:$0xff]
    %v138 = vld [vmem:[#allocation5 + $0x78] sm:$0xff]
    %v139 = vld [vmem:[#allocation7] sm:$0xff]
    %v140 = vld [vmem:[#allocation7 + $0x8] sm:$0xff]
    %v141 = vld [vmem:[#allocation7 + $0x10] sm:$0xff]
    %v142 = vld [vmem:[#allocation7 + $0x18] sm:$0xff]
    %v143 = vld [vmem:[#allocation7 + $0x20] sm:$0xff]
    %v144 = vld [vmem:[#allocation7 + $0x28] sm:$0xff]
    %v145 = vld [vmem:[#allocation7 + $0x30] sm:$0xff]
    %v146 = vld [vmem:[#allocation7 + $0x38] sm:$0xff]
    %v147 = vld [vmem:[#allocation7 + $0x40] sm:$0xff]
    %v148 = vld [vmem:[#allocation7 + $0x48] sm:$0xff]
    %v149 = vld [vmem:[#allocation7 + $0x50] sm:$0xff]
    %v150 = vld [vmem:[#allocation7 + $0x58] sm:$0xff]
    %v151 = vld [vmem:[#allocation7 + $0x60] sm:$0xff]
    %v152 = vld [vmem:[#allocation7 + $0x68] sm:$0xff]
    %v153 = vld [vmem:[#allocation7 + $0x70] sm:$0xff]
    %v154 = vld [vmem:[#allocation7 + $0x78] sm:$0xff]
    %v155 = vld [vmem:[#allocation7 + $0x80] sm:$0xff]
    %v156 = vld [vmem:[#allocation7 + $0x88] sm:$0xff]
    %v157 = vld [vmem:[#allocation7 + $0x90] sm:$0xff]
    %v158 = vld [vmem:[#allocation7 + $0x98] sm:$0xff]
    %v159 = vld [vmem:[#allocation7 + $0xa0] sm:$0xff]
    %v160 = vld [vmem:[#allocation7 + $0xa8] sm:$0xff]
    %v161 = vld [vmem:[#allocation7 + $0xb0] sm:$0xff]
    %v162 = vld [vmem:[#allocation7 + $0xb8] sm:$0xff]
    %v163 = vld [vmem:[#allocation7 + $0xc0] sm:$0xff]
    %v164 = vld [vmem:[#allocation7 + $0xc8] sm:$0xff]
    %v165 = vld [vmem:[#allocation7 + $0xd0] sm:$0xff]
    %v166 = vld [vmem:[#allocation7 + $0xd8] sm:$0xff]
    %v167 = vld [vmem:[#allocation7 + $0xe0] sm:$0xff]
    %v168 = vld [vmem:[#allocation7 + $0xe8] sm:$0xff]
    %v169 = vld [vmem:[#allocation7 + $0xf0] sm:$0xff]
    %v170 = vld [vmem:[#allocation7 + $0xf8] sm:$0xff]
    %v171 = vld [vmem:[#allocation7 + $0x100] sm:$0xff]
    %v172 = vld [vmem:[#allocation7 + $0x108] sm:$0xff]
    %v173 = vld [vmem:[#allocation7 + $0x110] sm:$0xff]
    %v174 = vld [vmem:[#allocation7 + $0x118] sm:$0xff]
    %v175 = vld [vmem:[#allocation7 + $0x120] sm:$0xff]
    %v176 = vld [vmem:[#allocation7 + $0x128] sm:$0xff]
    %v177 = vld [vmem:[#allocation7 + $0x130] sm:$0xff]
    %v178 = vld [vmem:[#allocation7 + $0x138] sm:$0xff]
    %v179 = vld [vmem:[#allocation7 + $0x140] sm:$0xff]
    %v180 = vld [vmem:[#allocation7 + $0x148] sm:$0xff]
    %v181 = vld [vmem:[#allocation7 + $0x150] sm:$0xff]
    %v182 = vld [vmem:[#allocation7 + $0x158] sm:$0xff]
    %v183 = vld [vmem:[#allocation7 + $0x160] sm:$0xff]
    %v184 = vld [vmem:[#allocation7 + $0x168] sm:$0xff]
    %v185 = vld [vmem:[#allocation7 + $0x170] sm:$0xff]
    %v186 = vld [vmem:[#allocation7 + $0x178] sm:$0xff]
    %v187 = vld [vmem:[#allocation7 + $0x180] sm:$0xff]
    %v188 = vld [vmem:[#allocation7 + $0x188] sm:$0xff]
    %v189 = vld [vmem:[#allocation7 + $0x190] sm:$0xff]
    %v190 = vld [vmem:[#allocation7 + $0x198] sm:$0xff]
    %v191 = vld [vmem:[#allocation7 + $0x1a0] sm:$0xff]
    %v192 = vld [vmem:[#allocation7 + $0x1a8] sm:$0xff]
    %v193 = vld [vmem:[#allocation7 + $0x1b0] sm:$0xff]
    %v194 = vld [vmem:[#allocation7 + $0x1b8] sm:$0xff]
    %v195 = vld [vmem:[#allocation7 + $0x1c0] sm:$0xff]
    %v196 = vld [vmem:[#allocation7 + $0x1c8] sm:$0xff]
    %v197 = vld [vmem:[#allocation7 + $0x1d0] sm:$0xff]
    %v198 = vld [vmem:[#allocation7 + $0x1d8] sm:$0xff]
    %v199 = vld [vmem:[#allocation7 + $0x1e0] sm:$0xff]
    %v200 = vld [vmem:[#allocation7 + $0x1e8] sm:$0xff]
    %v201 = vld [vmem:[#allocation7 + $0x1f0] sm:$0xff]
    %v202 = vld [vmem:[#allocation7 + $0x1f8] sm:$0xff]
    %v203 = vld [vmem:[#allocation8] sm:$0xff]
    %v204 = vld [vmem:[#allocation8 + $0x8] sm:$0xff]
    %v205 = vld [vmem:[#allocation8 + $0x10] sm:$0xff]
    %v206 = vld [vmem:[#allocation8 + $0x18] sm:$0xff]
    %v207 = vld [vmem:[#allocation8 + $0x20] sm:$0xff]
    %v208 = vld [vmem:[#allocation8 + $0x28] sm:$0xff]
    %v209 = vld [vmem:[#allocation8 + $0x30] sm:$0xff]
    %v210 = vld [vmem:[#allocation8 + $0x38] sm:$0xff]
    %v211 = vld [vmem:[#allocation8 + $0x40] sm:$0xff]
    %v212 = vld [vmem:[#allocation8 + $0x48] sm:$0xff]
    %v213 = vld [vmem:[#allocation8 + $0x50] sm:$0xff]
    %v214 = vld [vmem:[#allocation8 + $0x58] sm:$0xff]
    %v215 = vld [vmem:[#allocation8 + $0x60] sm:$0xff]
    %v216 = vld [vmem:[#allocation8 + $0x68] sm:$0xff]
    %v217 = vld [vmem:[#allocation8 + $0x70] sm:$0xff]
    %v218 = vld [vmem:[#allocation8 + $0x78] sm:$0xff]
    %v219 = vld [vmem:[#allocation8 + $0x80] sm:$0xff]
    %v220 = vld [vmem:[#allocation8 + $0x88] sm:$0xff]
    %v221 = vld [vmem:[#allocation8 + $0x90] sm:$0xff]
    %v222 = vld [vmem:[#allocation8 + $0x98] sm:$0xff]
    %v223 = vld [vmem:[#allocation8 + $0xa0] sm:$0xff]
    %v224 = vld [vmem:[#allocation8 + $0xa8] sm:$0xff]
    %v225 = vld [vmem:[#allocation8 + $0xb0] sm:$0xff]
    %v226 = vld [vmem:[#allocation8 + $0xb8] sm:$0xff]
    %v227 = vld [vmem:[#allocation8 + $0xc0] sm:$0xff]
    %v228 = vld [vmem:[#allocation8 + $0xc8] sm:$0xff]
    %v229 = vld [vmem:[#allocation8 + $0xd0] sm:$0xff]
    %v230 = vld [vmem:[#allocation8 + $0xd8] sm:$0xff]
    %v231 = vld [vmem:[#allocation8 + $0xe0] sm:$0xff]
    %v232 = vld [vmem:[#allocation8 + $0xe8] sm:$0xff]
    %v233 = vld [vmem:[#allocation8 + $0xf0] sm:$0xff]
    %v234 = vld [vmem:[#allocation8 + $0xf8] sm:$0xff]
    %v235 = vld [vmem:[#allocation8 + $0x100] sm:$0xff]
    %v236 = vld [vmem:[#allocation8 + $0x108] sm:$0xff]
    %v237 = vld [vmem:[#allocation8 + $0x110] sm:$0xff]
    %v238 = vld [vmem:[#allocation8 + $0x118] sm:$0xff]
    %v239 = vld [vmem:[#allocation8 + $0x120] sm:$0xff]
    %v240 = vld [vmem:[#allocation8 + $0x128] sm:$0xff]
    %v241 = vld [vmem:[#allocation8 + $0x130] sm:$0xff]
    %v242 = vld [vmem:[#allocation8 + $0x138] sm:$0xff]
    %v243 = vld [vmem:[#allocation8 + $0x140] sm:$0xff]
    %v244 = vld [vmem:[#allocation8 + $0x148] sm:$0xff]
    %v245 = vld [vmem:[#allocation8 + $0x150] sm:$0xff]
    %v246 = vld [vmem:[#allocation8 + $0x158] sm:$0xff]
    %v247 = vld [vmem:[#allocation8 + $0x160] sm:$0xff]
    %v248 = vld [vmem:[#allocation8 + $0x168] sm:$0xff]
    %v249 = vld [vmem:[#allocation8 + $0x170] sm:$0xff]
    %v250 = vld [vmem:[#allocation8 + $0x178] sm:$0xff]
    %v251 = vld [vmem:[#allocation8 + $0x180] sm:$0xff]
    %v252 = vld [vmem:[#allocation8 + $0x188] sm:$0xff]
    %v253 = vld [vmem:[#allocation8 + $0x190] sm:$0xff]
    %v254 = vld [vmem:[#allocation8 + $0x198] sm:$0xff]
    %v255 = vld [vmem:[#allocation8 + $0x1a0] sm:$0xff]
    %v256 = vld [vmem:[#allocation8 + $0x1a8] sm:$0xff]
    %v257 = vld [vmem:[#allocation8 + $0x1b0] sm:$0xff]
    %v258 = vld [vmem:[#allocation8 + $0x1b8] sm:$0xff]
    %v259 = vld [vmem:[#allocation8 + $0x1c0] sm:$0xff]
    %v260 = vld [vmem:[#allocation8 + $0x1c8] sm:$0xff]
    %v261 = vld [vmem:[#allocation8 + $0x1d0] sm:$0xff]
    %v262 = vld [vmem:[#allocation8 + $0x1d8] sm:$0xff]
    %v263 = vld [vmem:[#allocation8 + $0x1e0] sm:$0xff]
    %v264 = vld [vmem:[#allocation8 + $0x1e8] sm:$0xff]
    %v265 = vld [vmem:[#allocation8 + $0x1f0] sm:$0xff]
    %v266 = vld [vmem:[#allocation8 + $0x1f8] sm:$0xff]
    %v267 = vld [vmem:[%s4] sm:$0xf]
    %v268 = vld [vmem:[%s5] sm:$0x1]
    %v269 = vld [vmem:[%s6] sm:$0x1]
    %v270 = vld [vmem:[#allocation10] sm:$0xff]
    %v271 = vld [vmem:[#allocation10 + $0x8] sm:$0xff]
    %v272 = vld [vmem:[#allocation10 + $0x10] sm:$0xff]
    %v273 = vld [vmem:[#allocation10 + $0x18] sm:$0xff]
    %v274 = vld [vmem:[#allocation10 + $0x20] sm:$0xff]
    %v275 = vld [vmem:[#allocation10 + $0x28] sm:$0xff]
    %v276 = vld [vmem:[#allocation10 + $0x30] sm:$0xff]
    %v277 = vld [vmem:[#allocation10 + $0x38] sm:$0xff]
    %v278 = vld [vmem:[#allocation10 + $0x40] sm:$0xff]
    %v279 = vld [vmem:[#allocation10 + $0x48] sm:$0xff]
    %v280 = vld [vmem:[#allocation10 + $0x50] sm:$0xff]
    %v281 = vld [vmem:[#allocation10 + $0x58] sm:$0xff]
    %v282 = vld [vmem:[#allocation10 + $0x60] sm:$0xff]
    %v283 = vld [vmem:[#allocation10 + $0x68] sm:$0xff]
    %v284 = vld [vmem:[#allocation10 + $0x70] sm:$0xff]
    %v285 = vld [vmem:[#allocation10 + $0x78] sm:$0xff]
    %v286 = vld [vmem:[#allocation10 + $0x80] sm:$0xff]
    %v287 = vld [vmem:[#allocation10 + $0x88] sm:$0xff]
    %v288 = vld [vmem:[#allocation10 + $0x90] sm:$0xff]
    %v289 = vld [vmem:[#allocation10 + $0x98] sm:$0xff]
    %v290 = vld [vmem:[#allocation10 + $0xa0] sm:$0xff]
    %v291 = vld [vmem:[#allocation10 + $0xa8] sm:$0xff]
    %v292 = vld [vmem:[#allocation10 + $0xb0] sm:$0xff]
    %v293 = vld [vmem:[#allocation10 + $0xb8] sm:$0xff]
    %v294 = vld [vmem:[#allocation10 + $0xc0] sm:$0xff]
    %v295 = vld [vmem:[#allocation10 + $0xc8] sm:$0xff]
    %v296 = vld [vmem:[#allocation10 + $0xd0] sm:$0xff]
    %v297 = vld [vmem:[#allocation10 + $0xd8] sm:$0xff]
    %v298 = vld [vmem:[#allocation10 + $0xe0] sm:$0xff]
    %v299 = vld [vmem:[#allocation10 + $0xe8] sm:$0xff]
    %v300 = vld [vmem:[#allocation10 + $0xf0] sm:$0xff]
    %v301 = vld [vmem:[#allocation10 + $0xf8] sm:$0xff]
    %v302 = vld [vmem:[#allocation10 + $0x100] sm:$0xff]
    %v303 = vld [vmem:[#allocation10 + $0x108] sm:$0xff]
    %v304 = vld [vmem:[#allocation10 + $0x110] sm:$0xff]
    %v305 = vld [vmem:[#allocation10 + $0x118] sm:$0xff]
    %v306 = vld [vmem:[#allocation10 + $0x120] sm:$0xff]
    %v307 = vld [vmem:[#allocation10 + $0x128] sm:$0xff]
    %v308 = vld [vmem:[#allocation10 + $0x130] sm:$0xff]
    %v309 = vld [vmem:[#allocation10 + $0x138] sm:$0xff]
    %v310 = vld [vmem:[#allocation10 + $0x140] sm:$0xff]
    %v311 = vld [vmem:[#allocation10 + $0x148] sm:$0xff]
    %v312 = vld [vmem:[#allocation10 + $0x150] sm:$0xff]
    %v313 = vld [vmem:[#allocation10 + $0x158] sm:$0xff]
    %v314 = vld [vmem:[#allocation10 + $0x160] sm:$0xff]
    %v315 = vld [vmem:[#allocation10 + $0x168] sm:$0xff]
    %v316 = vld [vmem:[#allocation10 + $0x170] sm:$0xff]
    %v317 = vld [vmem:[#allocation10 + $0x178] sm:$0xff]
    %v318 = vld [vmem:[#allocation10 + $0x180] sm:$0xff]
    %v319 = vld [vmem:[#allocation10 + $0x188] sm:$0xff]
    %v320 = vld [vmem:[#allocation10 + $0x190] sm:$0xff]
    %v321 = vld [vmem:[#allocation10 + $0x198] sm:$0xff]
    %v322 = vld [vmem:[#allocation10 + $0x1a0] sm:$0xff]
    %v323 = vld [vmem:[#allocation10 + $0x1a8] sm:$0xff]
    %v324 = vld [vmem:[#allocation10 + $0x1b0] sm:$0xff]
    %v325 = vld [vmem:[#allocation10 + $0x1b8] sm:$0xff]
    %v326 = vld [vmem:[#allocation10 + $0x1c0] sm:$0xff]
    %v327 = vld [vmem:[#allocation10 + $0x1c8] sm:$0xff]
    %v328 = vld [vmem:[#allocation10 + $0x1d0] sm:$0xff]
    %v329 = vld [vmem:[#allocation10 + $0x1d8] sm:$0xff]
    %v330 = vld [vmem:[#allocation10 + $0x1e0] sm:$0xff]
    %v331 = vld [vmem:[#allocation10 + $0x1e8] sm:$0xff]
    %v332 = vld [vmem:[#allocation10 + $0x1f0] sm:$0xff]
    %v333 = vld [vmem:[#allocation10 + $0x1f8] sm:$0xff]
    %v334 = vld [vmem:[#allocation10 + $0x200] sm:$0xff]
    %v335 = vld [vmem:[#allocation10 + $0x208] sm:$0xff]
    %v336 = vld [vmem:[#allocation10 + $0x210] sm:$0xff]
    %v337 = vld [vmem:[#allocation10 + $0x218] sm:$0xff]
    %v338 = vld [vmem:[#allocation10 + $0x220] sm:$0xff]
    %v339 = vld [vmem:[#allocation10 + $0x228] sm:$0xff]
    %v340 = vld [vmem:[#allocation10 + $0x230] sm:$0xff]
    %v341 = vld [vmem:[#allocation10 + $0x238] sm:$0xff]
    %v342 = vld [vmem:[#allocation10 + $0x240] sm:$0xff]
    %v343 = vld [vmem:[#allocation10 + $0x248] sm:$0xff]
    %v344 = vld [vmem:[#allocation10 + $0x250] sm:$0xff]
    %v345 = vld [vmem:[#allocation10 + $0x258] sm:$0xff]
    %v346 = vld [vmem:[#allocation10 + $0x260] sm:$0xff]
    %v347 = vld [vmem:[#allocation10 + $0x268] sm:$0xff]
    %v348 = vld [vmem:[#allocation10 + $0x270] sm:$0xff]
    %v349 = vld [vmem:[#allocation10 + $0x278] sm:$0xff]
    %v350 = vld [vmem:[#allocation10 + $0x280] sm:$0xff]
    %v351 = vld [vmem:[#allocation10 + $0x288] sm:$0xff]
    %v352 = vld [vmem:[#allocation10 + $0x290] sm:$0xff]
    %v353 = vld [vmem:[#allocation10 + $0x298] sm:$0xff]
    %v354 = vld [vmem:[#allocation10 + $0x2a0] sm:$0xff]
    %v355 = vld [vmem:[#allocation10 + $0x2a8] sm:$0xff]
    %v356 = vld [vmem:[#allocation10 + $0x2b0] sm:$0xff]
    %v357 = vld [vmem:[#allocation10 + $0x2b8] sm:$0xff]
    %v358 = vld [vmem:[#allocation10 + $0x2c0] sm:$0xff]
    %v359 = vld [vmem:[#allocation10 + $0x2c8] sm:$0xff]
    %v360 = vld [vmem:[#allocation10 + $0x2d0] sm:$0xff]
    %v361 = vld [vmem:[#allocation10 + $0x2d8] sm:$0xff]
    %v362 = vld [vmem:[#allocation10 + $0x2e0] sm:$0xff]
    %v363 = vld [vmem:[#allocation10 + $0x2e8] sm:$0xff]
    %v364 = vld [vmem:[#allocation10 + $0x2f0] sm:$0xff]
    %v365 = vld [vmem:[#allocation10 + $0x2f8] sm:$0xff]
    %v366 = vld [vmem:[#allocation10 + $0x300] sm:$0xff]
    %v367 = vld [vmem:[#allocation10 + $0x308] sm:$0xff]
    %v368 = vld [vmem:[#allocation10 + $0x310] sm:$0xff]
    %v369 = vld [vmem:[#allocation10 + $0x318] sm:$0xff]
    %v370 = vld [vmem:[#allocation10 + $0x320] sm:$0xff]
    %v371 = vld [vmem:[#allocation10 + $0x328] sm:$0xff]
    %v372 = vld [vmem:[#allocation10 + $0x330] sm:$0xff]
    %v373 = vld [vmem:[#allocation10 + $0x338] sm:$0xff]
    %v374 = vld [vmem:[#allocation10 + $0x340] sm:$0xff]
    %v375 = vld [vmem:[#allocation10 + $0x348] sm:$0xff]
    %v376 = vld [vmem:[#allocation10 + $0x350] sm:$0xff]
    %v377 = vld [vmem:[#allocation10 + $0x358] sm:$0xff]
    %v378 = vld [vmem:[#allocation10 + $0x360] sm:$0xff]
    %v379 = vld [vmem:[#allocation10 + $0x368] sm:$0xff]
    %v380 = vld [vmem:[#allocation10 + $0x370] sm:$0xff]
    %v381 = vld [vmem:[#allocation10 + $0x378] sm:$0xff]
    %v382 = vld [vmem:[#allocation10 + $0x380] sm:$0xff]
    %v383 = vld [vmem:[#allocation10 + $0x388] sm:$0xff]
    %v384 = vld [vmem:[#allocation10 + $0x390] sm:$0xff]
    %v385 = vld [vmem:[#allocation10 + $0x398] sm:$0xff]
    %v386 = vld [vmem:[#allocation10 + $0x3a0] sm:$0xff]
    %v387 = vld [vmem:[#allocation10 + $0x3a8] sm:$0xff]
    %v388 = vld [vmem:[#allocation10 + $0x3b0] sm:$0xff]
    %v389 = vld [vmem:[#allocation10 + $0x3b8] sm:$0xff]
    %v390 = vld [vmem:[#allocation10 + $0x3c0] sm:$0xff]
    %v391 = vld [vmem:[#allocation10 + $0x3c8] sm:$0xff]
    %v392 = vld [vmem:[#allocation10 + $0x3d0] sm:$0xff]
    %v393 = vld [vmem:[#allocation10 + $0x3d8] sm:$0xff]
    %v394 = vld [vmem:[#allocation10 + $0x3e0] sm:$0xff]
    %v395 = vld [vmem:[#allocation10 + $0x3e8] sm:$0xff]
    %v396 = vld [vmem:[#allocation10 + $0x3f0] sm:$0xff]
    %v397 = vld [vmem:[#allocation10 + $0x3f8] sm:$0xff]
    %v398 = vld [vmem:[%s8] sm:$0xf]
    %v399 = vld [vmem:[#allocation11] sm:$0xff]
    %v400 = vld [vmem:[#allocation11 + $0x8] sm:$0xff]
    %v401 = vld [vmem:[#allocation11 + $0x10] sm:$0xff]
    %v402 = vld [vmem:[#allocation11 + $0x18] sm:$0xff]
    %v403 = vld [vmem:[#allocation11 + $0x20] sm:$0xff]
    %v404 = vld [vmem:[#allocation11 + $0x28] sm:$0xff]
    %v405 = vld [vmem:[#allocation11 + $0x30] sm:$0xff]
    %v406 = vld [vmem:[#allocation11 + $0x38] sm:$0xff]
    %v407 = vld [vmem:[#allocation11 + $0x40] sm:$0xff]
    %v408 = vld [vmem:[#allocation11 + $0x48] sm:$0xff]
    %v409 = vld [vmem:[#allocation11 + $0x50] sm:$0xff]
    %v410 = vld [vmem:[#allocation11 + $0x58] sm:$0xff]
    %v411 = vld [vmem:[#allocation11 + $0x60] sm:$0xff]
    %v412 = vld [vmem:[#allocation11 + $0x68] sm:$0xff]
    %v413 = vld [vmem:[#allocation11 + $0x70] sm:$0xff]
    %v414 = vld [vmem:[#allocation11 + $0x78] sm:$0xff]
    %v415 = vld [vmem:[%s10] sm:$0x1]
    %v416 = vlaneseq
    %v417 = vand.u32 %v416, 127
    %418 = vset.pattern.permute.xlu0 0
    %419 = vperm.xlu0 %418, %v122
    %v420 = vpop.permute.xlu0 %419
    %vm421 = vcmp.eq.s32.totalorder %v417, %v420
    %v422 = vsel %vm421, 1, 0
    %v423 = vcvt.s32.f32 %v422
    %424 = vset.pattern.permute.xlu0 1
    %425 = vperm.xlu0 %424, %v122
    %v426 = vpop.permute.xlu0 %425
    %vm427 = vcmp.eq.s32.totalorder %v417, %v426
    %v428 = vsel %vm427, 1, 0
    %v429 = vcvt.s32.f32 %v428
    %430 = vset.pattern.permute.xlu0 2
    %431 = vperm.xlu0 %430, %v122
    %v432 = vpop.permute.xlu0 %431
    %vm433 = vcmp.eq.s32.totalorder %v417, %v432
    %v434 = vsel %vm433, 1, 0
    %v435 = vcvt.s32.f32 %v434
    %436 = vset.pattern.permute.xlu0 3
    %437 = vperm.xlu0 %436, %v122
    %v438 = vpop.permute.xlu0 %437
    %vm439 = vcmp.eq.s32.totalorder %v417, %v438
    %v440 = vsel %vm439, 1, 0
    %v441 = vcvt.s32.f32 %v440
    %442 = vset.pattern.permute.xlu0 4
    %443 = vperm.xlu0 %442, %v122
    %v444 = vpop.permute.xlu0 %443
    %vm445 = vcmp.eq.s32.totalorder %v417, %v444
    %v446 = vsel %vm445, 1, 0
    %v447 = vcvt.s32.f32 %v446
    %448 = vset.pattern.permute.xlu0 5
    %449 = vperm.xlu0 %448, %v122
    %v450 = vpop.permute.xlu0 %449
    %vm451 = vcmp.eq.s32.totalorder %v417, %v450
    %v452 = vsel %vm451, 1, 0
    %v453 = vcvt.s32.f32 %v452
    %454 = vset.pattern.permute.xlu0 6
    %455 = vperm.xlu0 %454, %v122
    %v456 = vpop.permute.xlu0 %455
    %vm457 = vcmp.eq.s32.totalorder %v417, %v456
    %v458 = vsel %vm457, 1, 0
    %v459 = vcvt.s32.f32 %v458
    %460 = vset.pattern.permute.xlu0 7
    %461 = vperm.xlu0 %460, %v122
    %v462 = vpop.permute.xlu0 %461
    %vm463 = vcmp.eq.s32.totalorder %v417, %v462
    %v464 = vsel %vm463, 1, 0
    %v465 = vcvt.s32.f32 %v464
    %466 = vmatprep.subr.mxu0 0.0
    %467 = vmatpush1.msra.mxu0 %v138
    %468 = vmatprep.subr.mxu0 0.0
    %469 = vmatpush1.msra.mxu0 %v137
    %470 = vmatprep.subr.mxu0 0.0
    %471 = vmatpush1.msra.mxu0 %v136
    %472 = vmatprep.subr.mxu0 0.0
    %473 = vmatpush1.msra.mxu0 %v135
    %474 = vmatprep.subr.mxu0 0.0
    %475 = vmatpush1.msra.mxu0 %v134
    %476 = vmatprep.subr.mxu0 0.0
    %477 = vmatpush1.msra.mxu0 %v133
    %478 = vmatprep.subr.mxu0 0.0
    %479 = vmatpush1.msra.mxu0 %v132
    %480 = vmatprep.subr.mxu0 0.0
    %481 = vmatpush1.msra.mxu0 %v131
    %482 = vmatprep.subr.mxu0 0.0
    %483 = vmatpush1.msra.mxu0 %v130
    %484 = vmatprep.subr.mxu0 0.0
    %485 = vmatpush1.msra.mxu0 %v129
    %486 = vmatprep.subr.mxu0 0.0
    %487 = vmatpush1.msra.mxu0 %v128
    %488 = vmatprep.subr.mxu0 0.0
    %489 = vmatpush1.msra.mxu0 %v127
    %490 = vmatprep.subr.mxu0 0.0
    %491 = vmatpush1.msra.mxu0 %v126
    %492 = vmatprep.subr.mxu0 0.0
    %493 = vmatpush1.msra.mxu0 %v125
    %494 = vmatprep.subr.mxu0 0.0
    %495 = vmatpush1.msra.mxu0 %v124
    %496 = vmatprep.subr.mxu0 0.0
    %497 = vmatpush1.msra.mxu0 %v123
    %498 = vmatprep.subr.mxu0 0.0
    %499 = vmatpush2.msra.mxu0 0.0
    %500 = vmatprep.subr.mxu0 0.0
    %501 = vmatpush2.msra.mxu0 0.0
    %502 = vmatprep.subr.mxu0 0.0
    %503 = vmatpush2.msra.mxu0 0.0
    %504 = vmatprep.subr.mxu0 0.0
    %505 = vmatpush2.msra.mxu0 0.0
    %506 = vmatprep.subr.mxu0 0.0
    %507 = vmatpush2.msra.mxu0 0.0
    %508 = vmatprep.subr.mxu0 0.0
    %509 = vmatpush2.msra.mxu0 0.0
    %510 = vmatprep.subr.mxu0 0.0
    %511 = vmatpush2.msra.mxu0 0.0
    %512 = vmatprep.subr.mxu0 0.0
    %513 = vmatpush2.msra.mxu0 0.0
    %514 = vmatprep.subr.mxu0 0.0
    %515 = vmatpush2.msra.mxu0 0.0
    %516 = vmatprep.subr.mxu0 0.0
    %517 = vmatpush2.msra.mxu0 0.0
    %518 = vmatprep.subr.mxu0 0.0
    %519 = vmatpush2.msra.mxu0 0.0
    %520 = vmatprep.subr.mxu0 0.0
    %521 = vmatpush2.msra.mxu0 0.0
    %522 = vmatprep.subr.mxu0 0.0
    %523 = vmatpush2.msra.mxu0 0.0
    %524 = vmatprep.subr.mxu0 0.0
    %525 = vmatpush2.msra.mxu0 0.0
    %526 = vmatprep.subr.mxu0 0.0
    %527 = vmatpush2.msra.mxu0 0.0
    %528 = vmatprep.subr.mxu0 0.0
    %529 = vmatpush2.msra.mxu0 0.0
    %530 = vmatprep.mubr.f32.mxu0 0.0
    %531 = vmatmul.mubr.f32.gmra.mxu0 %v423
    %v532 = vpop.f32.mrf.mxu0
    %v533 = vadd.f32 0.0, %v532
    %v534 = vpop.f32.mrf.mxu0
    %535 = vmatprep.mubr.f32.mxu0 0.0
    %536 = vmatmul.mubr.f32.gmra.mxu0 %v429
    %v537 = vpop.f32.mrf.mxu0
    %v538 = vadd.f32 0.0, %v537
    %v539 = vpop.f32.mrf.mxu0
    %540 = vmatprep.mubr.f32.mxu0 0.0
    %541 = vmatmul.mubr.f32.gmra.mxu0 %v435
    %v542 = vpop.f32.mrf.mxu0
    %v543 = vadd.f32 0.0, %v542
    %v544 = vpop.f32.mrf.mxu0
    %545 = vmatprep.mubr.f32.mxu0 0.0
    %546 = vmatmul.mubr.f32.gmra.mxu0 %v441
    %v547 = vpop.f32.mrf.mxu0
    %v548 = vadd.f32 0.0, %v547
    %v549 = vpop.f32.mrf.mxu0
    %550 = vmatprep.mubr.f32.mxu0 0.0
    %551 = vmatmul.mubr.f32.gmra.mxu0 %v447
    %v552 = vpop.f32.mrf.mxu0
    %v553 = vadd.f32 0.0, %v552
    %v554 = vpop.f32.mrf.mxu0
    %555 = vmatprep.mubr.f32.mxu0 0.0
    %556 = vmatmul.mubr.f32.gmra.mxu0 %v453
    %v557 = vpop.f32.mrf.mxu0
    %v558 = vadd.f32 0.0, %v557
    %v559 = vpop.f32.mrf.mxu0
    %560 = vmatprep.mubr.f32.mxu0 0.0
    %561 = vmatmul.mubr.f32.gmra.mxu0 %v459
    %v562 = vpop.f32.mrf.mxu0
    %v563 = vadd.f32 0.0, %v562
    %v564 = vpop.f32.mrf.mxu0
    %565 = vmatprep.mubr.f32.mxu0 0.0
    %566 = vmatmul.mubr.f32.gmra.mxu0 %v465
    %v567 = vpop.f32.mrf.mxu0
    %v568 = vadd.f32 0.0, %v567
    %v569 = vpop.f32.mrf.mxu0
    %570 = vdwg.mxu0
    %v572 = vlaneseq
    %v573 = vshrl.u32 %v572, 7
    %v574 = vsub.s32 0, %v573
    %v575 = vrot.slane %v267, %v574
    %v576 = vlaneseq
    %v577 = vshrl.u32 %v576, 7
    %v578 = vsub.s32 1, %v577
    %v579 = vrot.slane %v267, %v578
    %v580 = vlaneseq
    %v581 = vshrl.u32 %v580, 7
    %v582 = vsub.s32 2, %v581
    %v583 = vrot.slane %v267, %v582
    %v584 = vlaneseq
    %v585 = vshrl.u32 %v584, 7
    %v586 = vsub.s32 3, %v585
    %v587 = vrot.slane %v267, %v586
    %592 = vmatprep.subr.mxu0 %v200
    %593 = vmatpush1.msra.mxu0 %v199
    %594 = vmatprep.subr.mxu0 %v196
    %595 = vmatpush1.msra.mxu0 %v195
    %596 = vmatprep.subr.mxu0 %v192
    %597 = vmatpush1.msra.mxu0 %v191
    %598 = vmatprep.subr.mxu0 %v188
    %599 = vmatpush1.msra.mxu0 %v187
    %600 = vmatprep.subr.mxu0 %v184
    %601 = vmatpush1.msra.mxu0 %v183
    %602 = vmatprep.subr.mxu0 %v180
    %603 = vmatpush1.msra.mxu0 %v179
    %604 = vmatprep.subr.mxu0 %v176
    %605 = vmatpush1.msra.mxu0 %v175
    %606 = vmatprep.subr.mxu0 %v172
    %607 = vmatpush1.msra.mxu0 %v171
    %608 = vmatprep.subr.mxu0 %v168
    %609 = vmatpush1.msra.mxu0 %v167
    %610 = vmatprep.subr.mxu0 %v164
    %611 = vmatpush1.msra.mxu0 %v163
    %612 = vmatprep.subr.mxu0 %v160
    %613 = vmatpush1.msra.mxu0 %v159
    %614 = vmatprep.subr.mxu0 %v156
    %615 = vmatpush1.msra.mxu0 %v155
    %616 = vmatprep.subr.mxu0 %v152
    %617 = vmatpush1.msra.mxu0 %v151
    %618 = vmatprep.subr.mxu0 %v148
    %619 = vmatpush1.msra.mxu0 %v147
    %620 = vmatprep.subr.mxu0 %v144
    %621 = vmatpush1.msra.mxu0 %v143
    %622 = vmatprep.subr.mxu0 %v140
    %623 = vmatpush1.msra.mxu0 %v139
    %624 = vmatprep.subr.mxu0 0.0
    %625 = vmatpush2.msra.mxu0 0.0
    %626 = vmatprep.subr.mxu0 0.0
    %627 = vmatpush2.msra.mxu0 0.0
    %628 = vmatprep.subr.mxu0 0.0
    %629 = vmatpush2.msra.mxu0 0.0
    %630 = vmatprep.subr.mxu0 0.0
    %631 = vmatpush2.msra.mxu0 0.0
    %632 = vmatprep.subr.mxu0 0.0
    %633 = vmatpush2.msra.mxu0 0.0
    %634 = vmatprep.subr.mxu0 0.0
    %635 = vmatpush2.msra.mxu0 0.0
    %636 = vmatprep.subr.mxu0 0.0
    %637 = vmatpush2.msra.mxu0 0.0
    %638 = vmatprep.subr.mxu0 0.0
    %639 = vmatpush2.msra.mxu0 0.0
    %640 = vmatprep.subr.mxu0 0.0
    %641 = vmatpush2.msra.mxu0 0.0
    %642 = vmatprep.subr.mxu0 0.0
    %643 = vmatpush2.msra.mxu0 0.0
    %644 = vmatprep.subr.mxu0 0.0
    %645 = vmatpush2.msra.mxu0 0.0
    %646 = vmatprep.subr.mxu0 0.0
    %647 = vmatpush2.msra.mxu0 0.0
    %648 = vmatprep.subr.mxu0 0.0
    %649 = vmatpush2.msra.mxu0 0.0
    %650 = vmatprep.subr.mxu0 0.0
    %651 = vmatpush2.msra.mxu0 0.0
    %652 = vmatprep.subr.mxu0 0.0
    %653 = vmatpush2.msra.mxu0 0.0
    %654 = vmatprep.subr.mxu0 0.0
    %655 = vmatpush2.msra.mxu0 0.0
    %656 = vmatprep.mubr.f32.mxu0 0.0
    %657 = vmatmul.mubr.f32.gmra.mxu0 %v533
    %v658 = vpop.f32.mrf.mxu0
    %v659 = vadd.f32 %v575, %v658
    %v660 = vpop.f32.mrf.mxu0
    %v661 = vadd.f32 %v579, %v660
    %662 = vmatprep.mubr.f32.mxu0 0.0
    %663 = vmatmul.mubr.f32.gmra.mxu0 %v538
    %v664 = vpop.f32.mrf.mxu0
    %v665 = vadd.f32 %v575, %v664
    %v666 = vpop.f32.mrf.mxu0
    %v667 = vadd.f32 %v579, %v666
    %668 = vmatprep.mubr.f32.mxu0 0.0
    %669 = vmatmul.mubr.f32.gmra.mxu0 %v543
    %v670 = vpop.f32.mrf.mxu0
    %v671 = vadd.f32 %v575, %v670
    %v672 = vpop.f32.mrf.mxu0
    %v673 = vadd.f32 %v579, %v672
    %674 = vmatprep.mubr.f32.mxu0 0.0
    %675 = vmatmul.mubr.f32.gmra.mxu0 %v548
    %v676 = vpop.f32.mrf.mxu0
    %v677 = vadd.f32 %v575, %v676
    %v678 = vpop.f32.mrf.mxu0
    %v679 = vadd.f32 %v579, %v678
    %680 = vmatprep.mubr.f32.mxu0 0.0
    %681 = vmatmul.mubr.f32.gmra.mxu0 %v553
    %v682 = vpop.f32.mrf.mxu0
    %v683 = vadd.f32 %v575, %v682
    %v684 = vpop.f32.mrf.mxu0
    %v685 = vadd.f32 %v579, %v684
    %686 = vmatprep.mubr.f32.mxu0 0.0
    %687 = vmatmul.mubr.f32.gmra.mxu0 %v558
    %v688 = vpop.f32.mrf.mxu0
    %v689 = vadd.f32 %v575, %v688
    %v690 = vpop.f32.mrf.mxu0
    %v691 = vadd.f32 %v579, %v690
    %692 = vmatprep.mubr.f32.mxu0 0.0
    %693 = vmatmul.mubr.f32.gmra.mxu0 %v563
    %v694 = vpop.f32.mrf.mxu0
    %v695 = vadd.f32 %v575, %v694
    %v696 = vpop.f32.mrf.mxu0
    %v697 = vadd.f32 %v579, %v696
    %698 = vmatprep.mubr.f32.mxu0 0.0
    %699 = vmatmul.mubr.f32.gmra.mxu0 %v568
    %v700 = vpop.f32.mrf.mxu0
    %v701 = vadd.f32 %v575, %v700
    %v702 = vpop.f32.mrf.mxu0
    %v703 = vadd.f32 %v579, %v702
    %704 = vdwg.mxu0
    %705 = vmatprep.subr.mxu0 %v202
    %706 = vmatpush1.msra.mxu0 %v201
    %707 = vmatprep.subr.mxu0 %v198
    %708 = vmatpush1.msra.mxu0 %v197
    %709 = vmatprep.subr.mxu0 %v194
    %710 = vmatpush1.msra.mxu0 %v193
    %711 = vmatprep.subr.mxu0 %v190
    %712 = vmatpush1.msra.mxu0 %v189
    %713 = vmatprep.subr.mxu0 %v186
    %714 = vmatpush1.msra.mxu0 %v185
    %715 = vmatprep.subr.mxu0 %v182
    %716 = vmatpush1.msra.mxu0 %v181
    %717 = vmatprep.subr.mxu0 %v178
    %718 = vmatpush1.msra.mxu0 %v177
    %719 = vmatprep.subr.mxu0 %v174
    %720 = vmatpush1.msra.mxu0 %v173
    %721 = vmatprep.subr.mxu0 %v170
    %722 = vmatpush1.msra.mxu0 %v169
    %723 = vmatprep.subr.mxu0 %v166
    %724 = vmatpush1.msra.mxu0 %v165
    %725 = vmatprep.subr.mxu0 %v162
    %726 = vmatpush1.msra.mxu0 %v161
    %727 = vmatprep.subr.mxu0 %v158
    %728 = vmatpush1.msra.mxu0 %v157
    %729 = vmatprep.subr.mxu0 %v154
    %730 = vmatpush1.msra.mxu0 %v153
    %731 = vmatprep.subr.mxu0 %v150
    %732 = vmatpush1.msra.mxu0 %v149
    %733 = vmatprep.subr.mxu0 %v146
    %734 = vmatpush1.msra.mxu0 %v145
    %735 = vmatprep.subr.mxu0 %v142
    %736 = vmatpush1.msra.mxu0 %v141
    %737 = vmatprep.subr.mxu0 0.0
    %738 = vmatpush2.msra.mxu0 0.0
    %739 = vmatprep.subr.mxu0 0.0
    %740 = vmatpush2.msra.mxu0 0.0
    %741 = vmatprep.subr.mxu0 0.0
    %742 = vmatpush2.msra.mxu0 0.0
    %743 = vmatprep.subr.mxu0 0.0
    %744 = vmatpush2.msra.mxu0 0.0
    %745 = vmatprep.subr.mxu0 0.0
    %746 = vmatpush2.msra.mxu0 0.0
    %747 = vmatprep.subr.mxu0 0.0
    %748 = vmatpush2.msra.mxu0 0.0
    %749 = vmatprep.subr.mxu0 0.0
    %750 = vmatpush2.msra.mxu0 0.0
    %751 = vmatprep.subr.mxu0 0.0
    %752 = vmatpush2.msra.mxu0 0.0
    %753 = vmatprep.subr.mxu0 0.0
    %754 = vmatpush2.msra.mxu0 0.0
    %755 = vmatprep.subr.mxu0 0.0
    %756 = vmatpush2.msra.mxu0 0.0
    %757 = vmatprep.subr.mxu0 0.0
    %758 = vmatpush2.msra.mxu0 0.0
    %759 = vmatprep.subr.mxu0 0.0
    %760 = vmatpush2.msra.mxu0 0.0
    %761 = vmatprep.subr.mxu0 0.0
    %762 = vmatpush2.msra.mxu0 0.0
    %763 = vmatprep.subr.mxu0 0.0
    %764 = vmatpush2.msra.mxu0 0.0
    %765 = vmatprep.subr.mxu0 0.0
    %766 = vmatpush2.msra.mxu0 0.0
    %767 = vmatprep.subr.mxu0 0.0
    %768 = vmatpush2.msra.mxu0 0.0
    %769 = vmatprep.mubr.f32.mxu0 0.0
    %770 = vmatmul.mubr.f32.gmra.mxu0 %v533
    %v771 = vpop.f32.mrf.mxu0
    %v772 = vadd.f32 %v583, %v771
    %v773 = vpop.f32.mrf.mxu0
    %v774 = vadd.f32 %v587, %v773
    %775 = vmatprep.mubr.f32.mxu0 0.0
    %776 = vmatmul.mubr.f32.gmra.mxu0 %v538
    %v777 = vpop.f32.mrf.mxu0
    %v778 = vadd.f32 %v583, %v777
    %v779 = vpop.f32.mrf.mxu0
    %v780 = vadd.f32 %v587, %v779
    %781 = vmatprep.mubr.f32.mxu0 0.0
    %782 = vmatmul.mubr.f32.gmra.mxu0 %v543
    %v783 = vpop.f32.mrf.mxu0
    %v784 = vadd.f32 %v583, %v783
    %v785 = vpop.f32.mrf.mxu0
    %v786 = vadd.f32 %v587, %v785
    %787 = vmatprep.mubr.f32.mxu0 0.0
    %788 = vmatmul.mubr.f32.gmra.mxu0 %v548
    %v789 = vpop.f32.mrf.mxu0
    %v790 = vadd.f32 %v583, %v789
    %v791 = vpop.f32.mrf.mxu0
    %v792 = vadd.f32 %v587, %v791
    %793 = vmatprep.mubr.f32.mxu0 0.0
    %794 = vmatmul.mubr.f32.gmra.mxu0 %v553
    %v795 = vpop.f32.mrf.mxu0
    %v796 = vadd.f32 %v583, %v795
    %v797 = vpop.f32.mrf.mxu0
    %v798 = vadd.f32 %v587, %v797
    %799 = vmatprep.mubr.f32.mxu0 0.0
    %800 = vmatmul.mubr.f32.gmra.mxu0 %v558
    %v801 = vpop.f32.mrf.mxu0
    %v802 = vadd.f32 %v583, %v801
    %v803 = vpop.f32.mrf.mxu0
    %v804 = vadd.f32 %v587, %v803
    %805 = vmatprep.mubr.f32.mxu0 0.0
    %806 = vmatmul.mubr.f32.gmra.mxu0 %v563
    %v807 = vpop.f32.mrf.mxu0
    %v808 = vadd.f32 %v583, %v807
    %v809 = vpop.f32.mrf.mxu0
    %v810 = vadd.f32 %v587, %v809
    %811 = vmatprep.mubr.f32.mxu0 0.0
    %812 = vmatmul.mubr.f32.gmra.mxu0 %v568
    %v813 = vpop.f32.mrf.mxu0
    %v814 = vadd.f32 %v583, %v813
    %v815 = vpop.f32.mrf.mxu0
    %v816 = vadd.f32 %v587, %v815
    %817 = vdwg.mxu0
    %818 = vmatprep.subr.mxu0 %v264
    %819 = vmatpush1.msra.mxu0 %v263
    %820 = vmatprep.subr.mxu0 %v260
    %821 = vmatpush1.msra.mxu0 %v259
    %822 = vmatprep.subr.mxu0 %v256
    %823 = vmatpush1.msra.mxu0 %v255
    %824 = vmatprep.subr.mxu0 %v252
    %825 = vmatpush1.msra.mxu0 %v251
    %826 = vmatprep.subr.mxu0 %v248
    %827 = vmatpush1.msra.mxu0 %v247
    %828 = vmatprep.subr.mxu0 %v244
    %829 = vmatpush1.msra.mxu0 %v243
    %830 = vmatprep.subr.mxu0 %v240
    %831 = vmatpush1.msra.mxu0 %v239
    %832 = vmatprep.subr.mxu0 %v236
    %833 = vmatpush1.msra.mxu0 %v235
    %834 = vmatprep.subr.mxu0 %v232
    %835 = vmatpush1.msra.mxu0 %v231
    %836 = vmatprep.subr.mxu0 %v228
    %837 = vmatpush1.msra.mxu0 %v227
    %838 = vmatprep.subr.mxu0 %v224
    %839 = vmatpush1.msra.mxu0 %v223
    %840 = vmatprep.subr.mxu0 %v220
    %841 = vmatpush1.msra.mxu0 %v219
    %842 = vmatprep.subr.mxu0 %v216
    %843 = vmatpush1.msra.mxu0 %v215
    %844 = vmatprep.subr.mxu0 %v212
    %845 = vmatpush1.msra.mxu0 %v211
    %846 = vmatprep.subr.mxu0 %v208
    %847 = vmatpush1.msra.mxu0 %v207
    %848 = vmatprep.subr.mxu0 %v204
    %849 = vmatpush1.msra.mxu0 %v203
    %850 = vmatprep.subr.mxu0 0.0
    %851 = vmatpush2.msra.mxu0 0.0
    %852 = vmatprep.subr.mxu0 0.0
    %853 = vmatpush2.msra.mxu0 0.0
    %854 = vmatprep.subr.mxu0 0.0
    %855 = vmatpush2.msra.mxu0 0.0
    %856 = vmatprep.subr.mxu0 0.0
    %857 = vmatpush2.msra.mxu0 0.0
    %858 = vmatprep.subr.mxu0 0.0
    %859 = vmatpush2.msra.mxu0 0.0
    %860 = vmatprep.subr.mxu0 0.0
    %861 = vmatpush2.msra.mxu0 0.0
    %862 = vmatprep.subr.mxu0 0.0
    %863 = vmatpush2.msra.mxu0 0.0
    %864 = vmatprep.subr.mxu0 0.0
    %865 = vmatpush2.msra.mxu0 0.0
    %866 = vmatprep.subr.mxu0 0.0
    %867 = vmatpush2.msra.mxu0 0.0
    %868 = vmatprep.subr.mxu0 0.0
    %869 = vmatpush2.msra.mxu0 0.0
    %870 = vmatprep.subr.mxu0 0.0
    %871 = vmatpush2.msra.mxu0 0.0
    %872 = vmatprep.subr.mxu0 0.0
    %873 = vmatpush2.msra.mxu0 0.0
    %874 = vmatprep.subr.mxu0 0.0
    %875 = vmatpush2.msra.mxu0 0.0
    %876 = vmatprep.subr.mxu0 0.0
    %877 = vmatpush2.msra.mxu0 0.0
    %878 = vmatprep.subr.mxu0 0.0
    %879 = vmatpush2.msra.mxu0 0.0
    %880 = vmatprep.subr.mxu0 0.0
    %881 = vmatpush2.msra.mxu0 0.0
    %882 = vmatprep.mubr.f32.mxu0 0.0
    %883 = vmatmul.mubr.f32.gmra.mxu0 0.0
    %v884 = vpop.f32.mrf.mxu0
    %v885 = vadd.f32 0.0, %v884
    %v886 = vpop.f32.mrf.mxu0
    %v887 = vadd.f32 0.0, %v886
    %888 = vdwg.mxu0
    %889 = vmatprep.subr.mxu0 %v266
    %890 = vmatpush1.msra.mxu0 %v265
    %891 = vmatprep.subr.mxu0 %v262
    %892 = vmatpush1.msra.mxu0 %v261
    %893 = vmatprep.subr.mxu0 %v258
    %894 = vmatpush1.msra.mxu0 %v257
    %895 = vmatprep.subr.mxu0 %v254
    %896 = vmatpush1.msra.mxu0 %v253
    %897 = vmatprep.subr.mxu0 %v250
    %898 = vmatpush1.msra.mxu0 %v249
    %899 = vmatprep.subr.mxu0 %v246
    %900 = vmatpush1.msra.mxu0 %v245
    %901 = vmatprep.subr.mxu0 %v242
    %902 = vmatpush1.msra.mxu0 %v241
    %903 = vmatprep.subr.mxu0 %v238
    %904 = vmatpush1.msra.mxu0 %v237
    %905 = vmatprep.subr.mxu0 %v234
    %906 = vmatpush1.msra.mxu0 %v233
    %907 = vmatprep.subr.mxu0 %v230
    %908 = vmatpush1.msra.mxu0 %v229
    %909 = vmatprep.subr.mxu0 %v226
    %910 = vmatpush1.msra.mxu0 %v225
    %911 = vmatprep.subr.mxu0 %v222
    %912 = vmatpush1.msra.mxu0 %v221
    %913 = vmatprep.subr.mxu0 %v218
    %914 = vmatpush1.msra.mxu0 %v217
    %915 = vmatprep.subr.mxu0 %v214
    %916 = vmatpush1.msra.mxu0 %v213
    %917 = vmatprep.subr.mxu0 %v210
    %918 = vmatpush1.msra.mxu0 %v209
    %919 = vmatprep.subr.mxu0 %v206
    %920 = vmatpush1.msra.mxu0 %v205
    %921 = vmatprep.subr.mxu0 0.0
    %922 = vmatpush2.msra.mxu0 0.0
    %923 = vmatprep.subr.mxu0 0.0
    %924 = vmatpush2.msra.mxu0 0.0
    %925 = vmatprep.subr.mxu0 0.0
    %926 = vmatpush2.msra.mxu0 0.0
    %927 = vmatprep.subr.mxu0 0.0
    %928 = vmatpush2.msra.mxu0 0.0
    %929 = vmatprep.subr.mxu0 0.0
    %930 = vmatpush2.msra.mxu0 0.0
    %931 = vmatprep.subr.mxu0 0.0
    %932 = vmatpush2.msra.mxu0 0.0
    %933 = vmatprep.subr.mxu0 0.0
    %934 = vmatpush2.msra.mxu0 0.0
    %935 = vmatprep.subr.mxu0 0.0
    %936 = vmatpush2.msra.mxu0 0.0
    %937 = vmatprep.subr.mxu0 0.0
    %938 = vmatpush2.msra.mxu0 0.0
    %939 = vmatprep.subr.mxu0 0.0
    %940 = vmatpush2.msra.mxu0 0.0
    %941 = vmatprep.subr.mxu0 0.0
    %942 = vmatpush2.msra.mxu0 0.0
    %943 = vmatprep.subr.mxu0 0.0
    %944 = vmatpush2.msra.mxu0 0.0
    %945 = vmatprep.subr.mxu0 0.0
    %946 = vmatpush2.msra.mxu0 0.0
    %947 = vmatprep.subr.mxu0 0.0
    %948 = vmatpush2.msra.mxu0 0.0
    %949 = vmatprep.subr.mxu0 0.0
    %950 = vmatpush2.msra.mxu0 0.0
    %951 = vmatprep.subr.mxu0 0.0
    %952 = vmatpush2.msra.mxu0 0.0
    %953 = vmatprep.mubr.f32.mxu0 0.0
    %954 = vmatmul.mubr.f32.gmra.mxu0 0.0
    %v955 = vpop.f32.mrf.mxu0
    %v956 = vadd.f32 0.0, %v955
    %v957 = vpop.f32.mrf.mxu0
    %v958 = vadd.f32 0.0, %v957
    %959 = vdwg.mxu0
    %v960 = vadd.f32 %v659, %v885
    %v961 = vadd.f32 %v661, %v887
    %v962 = vadd.f32 %v772, %v956
    %v963 = vadd.f32 %v774, %v958
    %v964 = vxor.u32 %v960, 2147483648
    %v965 = vxor.u32 %v961, 2147483648
    %v966 = vxor.u32 %v962, 2147483648
    %v967 = vmul.f32 %v964, 1.442695
    %v968 = vpow.pop %v967
    %v969 = vmul.f32 %v965, 1.442695
    %v970 = vpow.pop %v969
    %v971 = vmul.f32 %v966, 1.442695
    %v972 = vpow.pop %v971
    %v973 = vadd.f32 %v968, 1.0
    %v974 = vadd.f32 %v970, 1.0
    %v975 = vadd.f32 %v972, 1.0
    %v976 = vrcp.pop %v973
    %v977 = vmul.f32 1.0, %v976
    %v978 = vrcp.pop %v974
    %v979 = vmul.f32 1.0, %v978
    %v980 = vrcp.pop %v975
    %v981 = vmul.f32 1.0, %v980
    %v982 = vtanh.pop %v963
    %v983 = vmul.f32 %v979, 0.0
    %v984 = vmul.f32 %v977, %v982
    %v985 = vadd.f32 %v983, %v984
    %v986 = vtanh.pop %v985
    %v987 = vmul.f32 %v981, %v986
    %988 = vmatprep.subr.mxu0 %v264
    %989 = vmatpush1.msra.mxu0 %v263
    %990 = vmatprep.subr.mxu0 %v260
    %991 = vmatpush1.msra.mxu0 %v259
    %992 = vmatprep.subr.mxu0 %v256
    %993 = vmatpush1.msra.mxu0 %v255
    %994 = vmatprep.subr.mxu0 %v252
    %995 = vmatpush1.msra.mxu0 %v251
    %996 = vmatprep.subr.mxu0 %v248
    %997 = vmatpush1.msra.mxu0 %v247
    %998 = vmatprep.subr.mxu0 %v244
    %999 = vmatpush1.msra.mxu0 %v243
    %1000 = vmatprep.subr.mxu0 %v240
    %1001 = vmatpush1.msra.mxu0 %v239
    %1002 = vmatprep.subr.mxu0 %v236
    %1003 = vmatpush1.msra.mxu0 %v235
    %1004 = vmatprep.subr.mxu0 %v232
    %1005 = vmatpush1.msra.mxu0 %v231
    %1006 = vmatprep.subr.mxu0 %v228
    %1007 = vmatpush1.msra.mxu0 %v227
    %1008 = vmatprep.subr.mxu0 %v224
    %1009 = vmatpush1.msra.mxu0 %v223
    %1010 = vmatprep.subr.mxu0 %v220
    %1011 = vmatpush1.msra.mxu0 %v219
    %1012 = vmatprep.subr.mxu0 %v216
    %1013 = vmatpush1.msra.mxu0 %v215
    %1014 = vmatprep.subr.mxu0 %v212
    %1015 = vmatpush1.msra.mxu0 %v211
    %1016 = vmatprep.subr.mxu0 %v208
    %1017 = vmatpush1.msra.mxu0 %v207
    %1018 = vmatprep.subr.mxu0 %v204
    %1019 = vmatpush1.msra.mxu0 %v203
    %1020 = vmatprep.subr.mxu0 0.0
    %1021 = vmatpush2.msra.mxu0 0.0
    %1022 = vmatprep.subr.mxu0 0.0
    %1023 = vmatpush2.msra.mxu0 0.0
    %1024 = vmatprep.subr.mxu0 0.0
    %1025 = vmatpush2.msra.mxu0 0.0
    %1026 = vmatprep.subr.mxu0 0.0
    %1027 = vmatpush2.msra.mxu0 0.0
    %1028 = vmatprep.subr.mxu0 0.0
    %1029 = vmatpush2.msra.mxu0 0.0
    %1030 = vmatprep.subr.mxu0 0.0
    %1031 = vmatpush2.msra.mxu0 0.0
    %1032 = vmatprep.subr.mxu0 0.0
    %1033 = vmatpush2.msra.mxu0 0.0
    %1034 = vmatprep.subr.mxu0 0.0
    %1035 = vmatpush2.msra.mxu0 0.0
    %1036 = vmatprep.subr.mxu0 0.0
    %1037 = vmatpush2.msra.mxu0 0.0
    %1038 = vmatprep.subr.mxu0 0.0
    %1039 = vmatpush2.msra.mxu0 0.0
    %1040 = vmatprep.subr.mxu0 0.0
    %1041 = vmatpush2.msra.mxu0 0.0
    %1042 = vmatprep.subr.mxu0 0.0
    %1043 = vmatpush2.msra.mxu0 0.0
    %1044 = vmatprep.subr.mxu0 0.0
    %1045 = vmatpush2.msra.mxu0 0.0
    %1046 = vmatprep.subr.mxu0 0.0
    %1047 = vmatpush2.msra.mxu0 0.0
    %1048 = vmatprep.subr.mxu0 0.0
    %1049 = vmatpush2.msra.mxu0 0.0
    %1050 = vmatprep.subr.mxu0 0.0
    %1051 = vmatpush2.msra.mxu0 0.0
    %1052 = vmatprep.mubr.f32.mxu0 0.0
    %1053 = vmatmul.mubr.f32.gmra.mxu0 %v987
    %v1054 = vpop.f32.mrf.mxu0
    %v1055 = vadd.f32 0.0, %v1054
    %v1056 = vpop.f32.mrf.mxu0
    %v1057 = vadd.f32 0.0, %v1056
    %1058 = vdwg.mxu0
    %1059 = vmatprep.subr.mxu0 %v266
    %1060 = vmatpush1.msra.mxu0 %v265
    %1061 = vmatprep.subr.mxu0 %v262
    %1062 = vmatpush1.msra.mxu0 %v261
    %1063 = vmatprep.subr.mxu0 %v258
    %1064 = vmatpush1.msra.mxu0 %v257
    %1065 = vmatprep.subr.mxu0 %v254
    %1066 = vmatpush1.msra.mxu0 %v253
    %1067 = vmatprep.subr.mxu0 %v250
    %1068 = vmatpush1.msra.mxu0 %v249
    %1069 = vmatprep.subr.mxu0 %v246
    %1070 = vmatpush1.msra.mxu0 %v245
    %1071 = vmatprep.subr.mxu0 %v242
    %1072 = vmatpush1.msra.mxu0 %v241
    %1073 = vmatprep.subr.mxu0 %v238
    %1074 = vmatpush1.msra.mxu0 %v237
    %1075 = vmatprep.subr.mxu0 %v234
    %1076 = vmatpush1.msra.mxu0 %v233
    %1077 = vmatprep.subr.mxu0 %v230
    %1078 = vmatpush1.msra.mxu0 %v229
    %1079 = vmatprep.subr.mxu0 %v226
    %1080 = vmatpush1.msra.mxu0 %v225
    %1081 = vmatprep.subr.mxu0 %v222
    %1082 = vmatpush1.msra.mxu0 %v221
    %1083 = vmatprep.subr.mxu0 %v218
    %1084 = vmatpush1.msra.mxu0 %v217
    %1085 = vmatprep.subr.mxu0 %v214
    %1086 = vmatpush1.msra.mxu0 %v213
    %1087 = vmatprep.subr.mxu0 %v210
    %1088 = vmatpush1.msra.mxu0 %v209
    %1089 = vmatprep.subr.mxu0 %v206
    %1090 = vmatpush1.msra.mxu0 %v205
    %1091 = vmatprep.subr.mxu0 0.0
    %1092 = vmatpush2.msra.mxu0 0.0
    %1093 = vmatprep.subr.mxu0 0.0
    %1094 = vmatpush2.msra.mxu0 0.0
    %1095 = vmatprep.subr.mxu0 0.0
    %1096 = vmatpush2.msra.mxu0 0.0
    %1097 = vmatprep.subr.mxu0 0.0
    %1098 = vmatpush2.msra.mxu0 0.0
    %1099 = vmatprep.subr.mxu0 0.0
    %1100 = vmatpush2.msra.mxu0 0.0
    %1101 = vmatprep.subr.mxu0 0.0
    %1102 = vmatpush2.msra.mxu0 0.0
    %1103 = vmatprep.subr.mxu0 0.0
    %1104 = vmatpush2.msra.mxu0 0.0
    %1105 = vmatprep.subr.mxu0 0.0
    %1106 = vmatpush2.msra.mxu0 0.0
    %1107 = vmatprep.subr.mxu0 0.0
    %1108 = vmatpush2.msra.mxu0 0.0
    %1109 = vmatprep.subr.mxu0 0.0
    %1110 = vmatpush2.msra.mxu0 0.0
    %1111 = vmatprep.subr.mxu0 0.0
    %1112 = vmatpush2.msra.mxu0 0.0
    %1113 = vmatprep.subr.mxu0 0.0
    %1114 = vmatpush2.msra.mxu0 0.0
    %1115 = vmatprep.subr.mxu0 0.0
    %1116 = vmatpush2.msra.mxu0 0.0
    %1117 = vmatprep.subr.mxu0 0.0
    %1118 = vmatpush2.msra.mxu0 0.0
    %1119 = vmatprep.subr.mxu0 0.0
    %1120 = vmatpush2.msra.mxu0 0.0
    %1121 = vmatprep.subr.mxu0 0.0
    %1122 = vmatpush2.msra.mxu0 0.0
    %1123 = vmatprep.mubr.f32.mxu0 0.0
    %1124 = vmatmul.mubr.f32.gmra.mxu0 %v987
    %v1125 = vpop.f32.mrf.mxu0
    %v1126 = vadd.f32 0.0, %v1125
    %v1127 = vpop.f32.mrf.mxu0
    %v1128 = vadd.f32 0.0, %v1127
    %1129 = vdwg.mxu0
    %v1130 = vadd.f32 %v665, %v1055
    %v1131 = vadd.f32 %v667, %v1057
    %v1132 = vadd.f32 %v778, %v1126
    %v1133 = vadd.f32 %v780, %v1128
    %v1134 = vxor.u32 %v1130, 2147483648
    %v1135 = vxor.u32 %v1131, 2147483648
    %v1136 = vxor.u32 %v1132, 2147483648
    %v1137 = vmul.f32 %v1134, 1.442695
    %v1138 = vpow.pop %v1137
    %v1139 = vmul.f32 %v1135, 1.442695
    %v1140 = vpow.pop %v1139
    %v1141 = vmul.f32 %v1136, 1.442695
    %v1142 = vpow.pop %v1141
    %v1143 = vadd.f32 %v1138, 1.0
    %v1144 = vadd.f32 %v1140, 1.0
    %v1145 = vadd.f32 %v1142, 1.0
    %v1146 = vrcp.pop %v1143
    %v1147 = vmul.f32 1.0, %v1146
    %v1148 = vrcp.pop %v1144
    %v1149 = vmul.f32 1.0, %v1148
    %v1150 = vrcp.pop %v1145
    %v1151 = vmul.f32 1.0, %v1150
    %v1152 = vtanh.pop %v1133
    %v1153 = vmul.f32 %v1149, %v985
    %v1154 = vmul.f32 %v1147, %v1152
    %v1155 = vadd.f32 %v1153, %v1154
    %v1156 = vtanh.pop %v1155
    %v1157 = vmul.f32 %v1151, %v1156
    %1158 = vmatprep.subr.mxu0 %v264
    %1159 = vmatpush1.msra.mxu0 %v263
    %1160 = vmatprep.subr.mxu0 %v260
    %1161 = vmatpush1.msra.mxu0 %v259
    %1162 = vmatprep.subr.mxu0 %v256
    %1163 = vmatpush1.msra.mxu0 %v255
    %1164 = vmatprep.subr.mxu0 %v252
    %1165 = vmatpush1.msra.mxu0 %v251
    %1166 = vmatprep.subr.mxu0 %v248
    %1167 = vmatpush1.msra.mxu0 %v247
    %1168 = vmatprep.subr.mxu0 %v244
    %1169 = vmatpush1.msra.mxu0 %v243
    %1170 = vmatprep.subr.mxu0 %v240
    %1171 = vmatpush1.msra.mxu0 %v239
    %1172 = vmatprep.subr.mxu0 %v236
    %1173 = vmatpush1.msra.mxu0 %v235
    %1174 = vmatprep.subr.mxu0 %v232
    %1175 = vmatpush1.msra.mxu0 %v231
    %1176 = vmatprep.subr.mxu0 %v228
    %1177 = vmatpush1.msra.mxu0 %v227
    %1178 = vmatprep.subr.mxu0 %v224
    %1179 = vmatpush1.msra.mxu0 %v223
    %1180 = vmatprep.subr.mxu0 %v220
    %1181 = vmatpush1.msra.mxu0 %v219
    %1182 = vmatprep.subr.mxu0 %v216
    %1183 = vmatpush1.msra.mxu0 %v215
    %1184 = vmatprep.subr.mxu0 %v212
    %1185 = vmatpush1.msra.mxu0 %v211
    %1186 = vmatprep.subr.mxu0 %v208
    %1187 = vmatpush1.msra.mxu0 %v207
    %1188 = vmatprep.subr.mxu0 %v204
    %1189 = vmatpush1.msra.mxu0 %v203
    %1190 = vmatprep.subr.mxu0 0.0
    %1191 = vmatpush2.msra.mxu0 0.0
    %1192 = vmatprep.subr.mxu0 0.0
    %1193 = vmatpush2.msra.mxu0 0.0
    %1194 = vmatprep.subr.mxu0 0.0
    %1195 = vmatpush2.msra.mxu0 0.0
    %1196 = vmatprep.subr.mxu0 0.0
    %1197 = vmatpush2.msra.mxu0 0.0
    %1198 = vmatprep.subr.mxu0 0.0
    %1199 = vmatpush2.msra.mxu0 0.0
    %1200 = vmatprep.subr.mxu0 0.0
    %1201 = vmatpush2.msra.mxu0 0.0
    %1202 = vmatprep.subr.mxu0 0.0
    %1203 = vmatpush2.msra.mxu0 0.0
    %1204 = vmatprep.subr.mxu0 0.0
    %1205 = vmatpush2.msra.mxu0 0.0
    %1206 = vmatprep.subr.mxu0 0.0
    %1207 = vmatpush2.msra.mxu0 0.0
    %1208 = vmatprep.subr.mxu0 0.0
    %1209 = vmatpush2.msra.mxu0 0.0
    %1210 = vmatprep.subr.mxu0 0.0
    %1211 = vmatpush2.msra.mxu0 0.0
    %1212 = vmatprep.subr.mxu0 0.0
    %1213 = vmatpush2.msra.mxu0 0.0
    %1214 = vmatprep.subr.mxu0 0.0
    %1215 = vmatpush2.msra.mxu0 0.0
    %1216 = vmatprep.subr.mxu0 0.0
    %1217 = vmatpush2.msra.mxu0 0.0
    %1218 = vmatprep.subr.mxu0 0.0
    %1219 = vmatpush2.msra.mxu0 0.0
    %1220 = vmatprep.subr.mxu0 0.0
    %1221 = vmatpush2.msra.mxu0 0.0
    %1222 = vmatprep.mubr.f32.mxu0 0.0
    %1223 = vmatmul.mubr.f32.gmra.mxu0 %v1157
    %v1224 = vpop.f32.mrf.mxu0
    %v1225 = vadd.f32 0.0, %v1224
    %v1226 = vpop.f32.mrf.mxu0
    %v1227 = vadd.f32 0.0, %v1226
    %1228 = vdwg.mxu0
    %1229 = vmatprep.subr.mxu0 %v266
    %1230 = vmatpush1.msra.mxu0 %v265
    %1231 = vmatprep.subr.mxu0 %v262
    %1232 = vmatpush1.msra.mxu0 %v261
    %1233 = vmatprep.subr.mxu0 %v258
    %1234 = vmatpush1.msra.mxu0 %v257
    %1235 = vmatprep.subr.mxu0 %v254
    %1236 = vmatpush1.msra.mxu0 %v253
    %1237 = vmatprep.subr.mxu0 %v250
    %1238 = vmatpush1.msra.mxu0 %v249
    %1239 = vmatprep.subr.mxu0 %v246
    %1240 = vmatpush1.msra.mxu0 %v245
    %1241 = vmatprep.subr.mxu0 %v242
    %1242 = vmatpush1.msra.mxu0 %v241
    %1243 = vmatprep.subr.mxu0 %v238
    %1244 = vmatpush1.msra.mxu0 %v237
    %1245 = vmatprep.subr.mxu0 %v234
    %1246 = vmatpush1.msra.mxu0 %v233
    %1247 = vmatprep.subr.mxu0 %v230
    %1248 = vmatpush1.msra.mxu0 %v229
    %1249 = vmatprep.subr.mxu0 %v226
    %1250 = vmatpush1.msra.mxu0 %v225
    %1251 = vmatprep.subr.mxu0 %v222
    %1252 = vmatpush1.msra.mxu0 %v221
    %1253 = vmatprep.subr.mxu0 %v218
    %1254 = vmatpush1.msra.mxu0 %v217
    %1255 = vmatprep.subr.mxu0 %v214
    %1256 = vmatpush1.msra.mxu0 %v213
    %1257 = vmatprep.subr.mxu0 %v210
    %1258 = vmatpush1.msra.mxu0 %v209
    %1259 = vmatprep.subr.mxu0 %v206
    %1260 = vmatpush1.msra.mxu0 %v205
    %1261 = vmatprep.subr.mxu0 0.0
    %1262 = vmatpush2.msra.mxu0 0.0
    %1263 = vmatprep.subr.mxu0 0.0
    %1264 = vmatpush2.msra.mxu0 0.0
    %1265 = vmatprep.subr.mxu0 0.0
    %1266 = vmatpush2.msra.mxu0 0.0
    %1267 = vmatprep.subr.mxu0 0.0
    %1268 = vmatpush2.msra.mxu0 0.0
    %1269 = vmatprep.subr.mxu0 0.0
    %1270 = vmatpush2.msra.mxu0 0.0
    %1271 = vmatprep.subr.mxu0 0.0
    %1272 = vmatpush2.msra.mxu0 0.0
    %1273 = vmatprep.subr.mxu0 0.0
    %1274 = vmatpush2.msra.mxu0 0.0
    %1275 = vmatprep.subr.mxu0 0.0
    %1276 = vmatpush2.msra.mxu0 0.0
    %1277 = vmatprep.subr.mxu0 0.0
    %1278 = vmatpush2.msra.mxu0 0.0
    %1279 = vmatprep.subr.mxu0 0.0
    %1280 = vmatpush2.msra.mxu0 0.0
    %1281 = vmatprep.subr.mxu0 0.0
    %1282 = vmatpush2.msra.mxu0 0.0
    %1283 = vmatprep.subr.mxu0 0.0
    %1284 = vmatpush2.msra.mxu0 0.0
    %1285 = vmatprep.subr.mxu0 0.0
    %1286 = vmatpush2.msra.mxu0 0.0
    %1287 = vmatprep.subr.mxu0 0.0
    %1288 = vmatpush2.msra.mxu0 0.0
    %1289 = vmatprep.subr.mxu0 0.0
    %1290 = vmatpush2.msra.mxu0 0.0
    %1291 = vmatprep.subr.mxu0 0.0
    %1292 = vmatpush2.msra.mxu0 0.0
    %1293 = vmatprep.mubr.f32.mxu0 0.0
    %1294 = vmatmul.mubr.f32.gmra.mxu0 %v1157
    %v1295 = vpop.f32.mrf.mxu0
    %v1296 = vadd.f32 0.0, %v1295
    %v1297 = vpop.f32.mrf.mxu0
    %v1298 = vadd.f32 0.0, %v1297
    %1299 = vdwg.mxu0
    %v1300 = vadd.f32 %v671, %v1225
    %v1301 = vadd.f32 %v673, %v1227
    %v1302 = vadd.f32 %v784, %v1296
    %v1303 = vadd.f32 %v786, %v1298
    %v1304 = vxor.u32 %v1300, 2147483648
    %v1305 = vxor.u32 %v1301, 2147483648
    %v1306 = vxor.u32 %v1302, 2147483648
    %v1307 = vmul.f32 %v1304, 1.442695
    %v1308 = vpow.pop %v1307
    %v1309 = vmul.f32 %v1305, 1.442695
    %v1310 = vpow.pop %v1309
    %v1311 = vmul.f32 %v1306, 1.442695
    %v1312 = vpow.pop %v1311
    %v1313 = vadd.f32 %v1308, 1.0
    %v1314 = vadd.f32 %v1310, 1.0
    %v1315 = vadd.f32 %v1312, 1.0
    %v1316 = vrcp.pop %v1313
    %v1317 = vmul.f32 1.0, %v1316
    %v1318 = vrcp.pop %v1314
    %v1319 = vmul.f32 1.0, %v1318
    %v1320 = vrcp.pop %v1315
    %v1321 = vmul.f32 1.0, %v1320
    %v1322 = vtanh.pop %v1303
    %v1323 = vmul.f32 %v1319, %v1155
    %v1324 = vmul.f32 %v1317, %v1322
    %v1325 = vadd.f32 %v1323, %v1324
    %v1326 = vtanh.pop %v1325
    %v1327 = vmul.f32 %v1321, %v1326
    %1328 = vmatprep.subr.mxu0 %v264
    %1329 = vmatpush1.msra.mxu0 %v263
    %1330 = vmatprep.subr.mxu0 %v260
    %1331 = vmatpush1.msra.mxu0 %v259
    %1332 = vmatprep.subr.mxu0 %v256
    %1333 = vmatpush1.msra.mxu0 %v255
    %1334 = vmatprep.subr.mxu0 %v252
    %1335 = vmatpush1.msra.mxu0 %v251
    %1336 = vmatprep.subr.mxu0 %v248
    %1337 = vmatpush1.msra.mxu0 %v247
    %1338 = vmatprep.subr.mxu0 %v244
    %1339 = vmatpush1.msra.mxu0 %v243
    %1340 = vmatprep.subr.mxu0 %v240
    %1341 = vmatpush1.msra.mxu0 %v239
    %1342 = vmatprep.subr.mxu0 %v236
    %1343 = vmatpush1.msra.mxu0 %v235
    %1344 = vmatprep.subr.mxu0 %v232
    %1345 = vmatpush1.msra.mxu0 %v231
    %1346 = vmatprep.subr.mxu0 %v228
    %1347 = vmatpush1.msra.mxu0 %v227
    %1348 = vmatprep.subr.mxu0 %v224
    %1349 = vmatpush1.msra.mxu0 %v223
    %1350 = vmatprep.subr.mxu0 %v220
    %1351 = vmatpush1.msra.mxu0 %v219
    %1352 = vmatprep.subr.mxu0 %v216
    %1353 = vmatpush1.msra.mxu0 %v215
    %1354 = vmatprep.subr.mxu0 %v212
    %1355 = vmatpush1.msra.mxu0 %v211
    %1356 = vmatprep.subr.mxu0 %v208
    %1357 = vmatpush1.msra.mxu0 %v207
    %1358 = vmatprep.subr.mxu0 %v204
    %1359 = vmatpush1.msra.mxu0 %v203
    %1360 = vmatprep.subr.mxu0 0.0
    %1361 = vmatpush2.msra.mxu0 0.0
    %1362 = vmatprep.subr.mxu0 0.0
    %1363 = vmatpush2.msra.mxu0 0.0
    %1364 = vmatprep.subr.mxu0 0.0
    %1365 = vmatpush2.msra.mxu0 0.0
    %1366 = vmatprep.subr.mxu0 0.0
    %1367 = vmatpush2.msra.mxu0 0.0
    %1368 = vmatprep.subr.mxu0 0.0
    %1369 = vmatpush2.msra.mxu0 0.0
    %1370 = vmatprep.subr.mxu0 0.0
    %1371 = vmatpush2.msra.mxu0 0.0
    %1372 = vmatprep.subr.mxu0 0.0
    %1373 = vmatpush2.msra.mxu0 0.0
    %1374 = vmatprep.subr.mxu0 0.0
    %1375 = vmatpush2.msra.mxu0 0.0
    %1376 = vmatprep.subr.mxu0 0.0
    %1377 = vmatpush2.msra.mxu0 0.0
    %1378 = vmatprep.subr.mxu0 0.0
    %1379 = vmatpush2.msra.mxu0 0.0
    %1380 = vmatprep.subr.mxu0 0.0
    %1381 = vmatpush2.msra.mxu0 0.0
    %1382 = vmatprep.subr.mxu0 0.0
    %1383 = vmatpush2.msra.mxu0 0.0
    %1384 = vmatprep.subr.mxu0 0.0
    %1385 = vmatpush2.msra.mxu0 0.0
    %1386 = vmatprep.subr.mxu0 0.0
    %1387 = vmatpush2.msra.mxu0 0.0
    %1388 = vmatprep.subr.mxu0 0.0
    %1389 = vmatpush2.msra.mxu0 0.0
    %1390 = vmatprep.subr.mxu0 0.0
    %1391 = vmatpush2.msra.mxu0 0.0
    %1392 = vmatprep.mubr.f32.mxu0 0.0
    %1393 = vmatmul.mubr.f32.gmra.mxu0 %v1327
    %v1394 = vpop.f32.mrf.mxu0
    %v1395 = vadd.f32 0.0, %v1394
    %v1396 = vpop.f32.mrf.mxu0
    %v1397 = vadd.f32 0.0, %v1396
    %1398 = vdwg.mxu0
    %1399 = vmatprep.subr.mxu0 %v266
    %1400 = vmatpush1.msra.mxu0 %v265
    %1401 = vmatprep.subr.mxu0 %v262
    %1402 = vmatpush1.msra.mxu0 %v261
    %1403 = vmatprep.subr.mxu0 %v258
    %1404 = vmatpush1.msra.mxu0 %v257
    %1405 = vmatprep.subr.mxu0 %v254
    %1406 = vmatpush1.msra.mxu0 %v253
    %1407 = vmatprep.subr.mxu0 %v250
    %1408 = vmatpush1.msra.mxu0 %v249
    %1409 = vmatprep.subr.mxu0 %v246
    %1410 = vmatpush1.msra.mxu0 %v245
    %1411 = vmatprep.subr.mxu0 %v242
    %1412 = vmatpush1.msra.mxu0 %v241
    %1413 = vmatprep.subr.mxu0 %v238
    %1414 = vmatpush1.msra.mxu0 %v237
    %1415 = vmatprep.subr.mxu0 %v234
    %1416 = vmatpush1.msra.mxu0 %v233
    %1417 = vmatprep.subr.mxu0 %v230
    %1418 = vmatpush1.msra.mxu0 %v229
    %1419 = vmatprep.subr.mxu0 %v226
    %1420 = vmatpush1.msra.mxu0 %v225
    %1421 = vmatprep.subr.mxu0 %v222
    %1422 = vmatpush1.msra.mxu0 %v221
    %1423 = vmatprep.subr.mxu0 %v218
    %1424 = vmatpush1.msra.mxu0 %v217
    %1425 = vmatprep.subr.mxu0 %v214
    %1426 = vmatpush1.msra.mxu0 %v213
    %1427 = vmatprep.subr.mxu0 %v210
    %1428 = vmatpush1.msra.mxu0 %v209
    %1429 = vmatprep.subr.mxu0 %v206
    %1430 = vmatpush1.msra.mxu0 %v205
    %1431 = vmatprep.subr.mxu0 0.0
    %1432 = vmatpush2.msra.mxu0 0.0
    %1433 = vmatprep.subr.mxu0 0.0
    %1434 = vmatpush2.msra.mxu0 0.0
    %1435 = vmatprep.subr.mxu0 0.0
    %1436 = vmatpush2.msra.mxu0 0.0
    %1437 = vmatprep.subr.mxu0 0.0
    %1438 = vmatpush2.msra.mxu0 0.0
    %1439 = vmatprep.subr.mxu0 0.0
    %1440 = vmatpush2.msra.mxu0 0.0
    %1441 = vmatprep.subr.mxu0 0.0
    %1442 = vmatpush2.msra.mxu0 0.0
    %1443 = vmatprep.subr.mxu0 0.0
    %1444 = vmatpush2.msra.mxu0 0.0
    %1445 = vmatprep.subr.mxu0 0.0
    %1446 = vmatpush2.msra.mxu0 0.0
    %1447 = vmatprep.subr.mxu0 0.0
    %1448 = vmatpush2.msra.mxu0 0.0
    %1449 = vmatprep.subr.mxu0 0.0
    %1450 = vmatpush2.msra.mxu0 0.0
    %1451 = vmatprep.subr.mxu0 0.0
    %1452 = vmatpush2.msra.mxu0 0.0
    %1453 = vmatprep.subr.mxu0 0.0
    %1454 = vmatpush2.msra.mxu0 0.0
    %1455 = vmatprep.subr.mxu0 0.0
    %1456 = vmatpush2.msra.mxu0 0.0
    %1457 = vmatprep.subr.mxu0 0.0
    %1458 = vmatpush2.msra.mxu0 0.0
    %1459 = vmatprep.subr.mxu0 0.0
    %1460 = vmatpush2.msra.mxu0 0.0
    %1461 = vmatprep.subr.mxu0 0.0
    %1462 = vmatpush2.msra.mxu0 0.0
    %1463 = vmatprep.mubr.f32.mxu0 0.0
    %1464 = vmatmul.mubr.f32.gmra.mxu0 %v1327
    %v1465 = vpop.f32.mrf.mxu0
    %v1466 = vadd.f32 0.0, %v1465
    %v1467 = vpop.f32.mrf.mxu0
    %v1468 = vadd.f32 0.0, %v1467
    %1469 = vdwg.mxu0
    %v1470 = vadd.f32 %v677, %v1395
    %v1471 = vadd.f32 %v679, %v1397
    %v1472 = vadd.f32 %v790, %v1466
    %v1473 = vadd.f32 %v792, %v1468
    %v1474 = vxor.u32 %v1470, 2147483648
    %v1475 = vxor.u32 %v1471, 2147483648
    %v1476 = vxor.u32 %v1472, 2147483648
    %v1477 = vmul.f32 %v1474, 1.442695
    %v1478 = vpow.pop %v1477
    %v1479 = vmul.f32 %v1475, 1.442695
    %v1480 = vpow.pop %v1479
    %v1481 = vmul.f32 %v1476, 1.442695
    %v1482 = vpow.pop %v1481
    %v1483 = vadd.f32 %v1478, 1.0
    %v1484 = vadd.f32 %v1480, 1.0
    %v1485 = vadd.f32 %v1482, 1.0
    %v1486 = vrcp.pop %v1483
    %v1487 = vmul.f32 1.0, %v1486
    %v1488 = vrcp.pop %v1484
    %v1489 = vmul.f32 1.0, %v1488
    %v1490 = vrcp.pop %v1485
    %v1491 = vmul.f32 1.0, %v1490
    %v1492 = vtanh.pop %v1473
    %v1493 = vmul.f32 %v1489, %v1325
    %v1494 = vmul.f32 %v1487, %v1492
    %v1495 = vadd.f32 %v1493, %v1494
    %v1496 = vtanh.pop %v1495
    %v1497 = vmul.f32 %v1491, %v1496
    %1498 = vmatprep.subr.mxu0 %v264
    %1499 = vmatpush1.msra.mxu0 %v263
    %1500 = vmatprep.subr.mxu0 %v260
    %1501 = vmatpush1.msra.mxu0 %v259
    %1502 = vmatprep.subr.mxu0 %v256
    %1503 = vmatpush1.msra.mxu0 %v255
    %1504 = vmatprep.subr.mxu0 %v252
    %1505 = vmatpush1.msra.mxu0 %v251
    %1506 = vmatprep.subr.mxu0 %v248
    %1507 = vmatpush1.msra.mxu0 %v247
    %1508 = vmatprep.subr.mxu0 %v244
    %1509 = vmatpush1.msra.mxu0 %v243
    %1510 = vmatprep.subr.mxu0 %v240
    %1511 = vmatpush1.msra.mxu0 %v239
    %1512 = vmatprep.subr.mxu0 %v236
    %1513 = vmatpush1.msra.mxu0 %v235
    %1514 = vmatprep.subr.mxu0 %v232
    %1515 = vmatpush1.msra.mxu0 %v231
    %1516 = vmatprep.subr.mxu0 %v228
    %1517 = vmatpush1.msra.mxu0 %v227
    %1518 = vmatprep.subr.mxu0 %v224
    %1519 = vmatpush1.msra.mxu0 %v223
    %1520 = vmatprep.subr.mxu0 %v220
    %1521 = vmatpush1.msra.mxu0 %v219
    %1522 = vmatprep.subr.mxu0 %v216
    %1523 = vmatpush1.msra.mxu0 %v215
    %1524 = vmatprep.subr.mxu0 %v212
    %1525 = vmatpush1.msra.mxu0 %v211
    %1526 = vmatprep.subr.mxu0 %v208
    %1527 = vmatpush1.msra.mxu0 %v207
    %1528 = vmatprep.subr.mxu0 %v204
    %1529 = vmatpush1.msra.mxu0 %v203
    %1530 = vmatprep.subr.mxu0 0.0
    %1531 = vmatpush2.msra.mxu0 0.0
    %1532 = vmatprep.subr.mxu0 0.0
    %1533 = vmatpush2.msra.mxu0 0.0
    %1534 = vmatprep.subr.mxu0 0.0
    %1535 = vmatpush2.msra.mxu0 0.0
    %1536 = vmatprep.subr.mxu0 0.0
    %1537 = vmatpush2.msra.mxu0 0.0
    %1538 = vmatprep.subr.mxu0 0.0
    %1539 = vmatpush2.msra.mxu0 0.0
    %1540 = vmatprep.subr.mxu0 0.0
    %1541 = vmatpush2.msra.mxu0 0.0
    %1542 = vmatprep.subr.mxu0 0.0
    %1543 = vmatpush2.msra.mxu0 0.0
    %1544 = vmatprep.subr.mxu0 0.0
    %1545 = vmatpush2.msra.mxu0 0.0
    %1546 = vmatprep.subr.mxu0 0.0
    %1547 = vmatpush2.msra.mxu0 0.0
    %1548 = vmatprep.subr.mxu0 0.0
    %1549 = vmatpush2.msra.mxu0 0.0
    %1550 = vmatprep.subr.mxu0 0.0
    %1551 = vmatpush2.msra.mxu0 0.0
    %1552 = vmatprep.subr.mxu0 0.0
    %1553 = vmatpush2.msra.mxu0 0.0
    %1554 = vmatprep.subr.mxu0 0.0
    %1555 = vmatpush2.msra.mxu0 0.0
    %1556 = vmatprep.subr.mxu0 0.0
    %1557 = vmatpush2.msra.mxu0 0.0
    %1558 = vmatprep.subr.mxu0 0.0
    %1559 = vmatpush2.msra.mxu0 0.0
    %1560 = vmatprep.subr.mxu0 0.0
    %1561 = vmatpush2.msra.mxu0 0.0
    %1562 = vmatprep.mubr.f32.mxu0 0.0
    %1563 = vmatmul.mubr.f32.gmra.mxu0 %v1497
    %v1564 = vpop.f32.mrf.mxu0
    %v1565 = vadd.f32 0.0, %v1564
    %v1566 = vpop.f32.mrf.mxu0
    %v1567 = vadd.f32 0.0, %v1566
    %1568 = vdwg.mxu0
    %1569 = vmatprep.subr.mxu0 %v266
    %1570 = vmatpush1.msra.mxu0 %v265
    %1571 = vmatprep.subr.mxu0 %v262
    %1572 = vmatpush1.msra.mxu0 %v261
    %1573 = vmatprep.subr.mxu0 %v258
    %1574 = vmatpush1.msra.mxu0 %v257
    %1575 = vmatprep.subr.mxu0 %v254
    %1576 = vmatpush1.msra.mxu0 %v253
    %1577 = vmatprep.subr.mxu0 %v250
    %1578 = vmatpush1.msra.mxu0 %v249
    %1579 = vmatprep.subr.mxu0 %v246
    %1580 = vmatpush1.msra.mxu0 %v245
    %1581 = vmatprep.subr.mxu0 %v242
    %1582 = vmatpush1.msra.mxu0 %v241
    %1583 = vmatprep.subr.mxu0 %v238
    %1584 = vmatpush1.msra.mxu0 %v237
    %1585 = vmatprep.subr.mxu0 %v234
    %1586 = vmatpush1.msra.mxu0 %v233
    %1587 = vmatprep.subr.mxu0 %v230
    %1588 = vmatpush1.msra.mxu0 %v229
    %1589 = vmatprep.subr.mxu0 %v226
    %1590 = vmatpush1.msra.mxu0 %v225
    %1591 = vmatprep.subr.mxu0 %v222
    %1592 = vmatpush1.msra.mxu0 %v221
    %1593 = vmatprep.subr.mxu0 %v218
    %1594 = vmatpush1.msra.mxu0 %v217
    %1595 = vmatprep.subr.mxu0 %v214
    %1596 = vmatpush1.msra.mxu0 %v213
    %1597 = vmatprep.subr.mxu0 %v210
    %1598 = vmatpush1.msra.mxu0 %v209
    %1599 = vmatprep.subr.mxu0 %v206
    %1600 = vmatpush1.msra.mxu0 %v205
    %1601 = vmatprep.subr.mxu0 0.0
    %1602 = vmatpush2.msra.mxu0 0.0
    %1603 = vmatprep.subr.mxu0 0.0
    %1604 = vmatpush2.msra.mxu0 0.0
    %1605 = vmatprep.subr.mxu0 0.0
    %1606 = vmatpush2.msra.mxu0 0.0
    %1607 = vmatprep.subr.mxu0 0.0
    %1608 = vmatpush2.msra.mxu0 0.0
    %1609 = vmatprep.subr.mxu0 0.0
    %1610 = vmatpush2.msra.mxu0 0.0
    %1611 = vmatprep.subr.mxu0 0.0
    %1612 = vmatpush2.msra.mxu0 0.0
    %1613 = vmatprep.subr.mxu0 0.0
    %1614 = vmatpush2.msra.mxu0 0.0
    %1615 = vmatprep.subr.mxu0 0.0
    %1616 = vmatpush2.msra.mxu0 0.0
    %1617 = vmatprep.subr.mxu0 0.0
    %1618 = vmatpush2.msra.mxu0 0.0
    %1619 = vmatprep.subr.mxu0 0.0
    %1620 = vmatpush2.msra.mxu0 0.0
    %1621 = vmatprep.subr.mxu0 0.0
    %1622 = vmatpush2.msra.mxu0 0.0
    %1623 = vmatprep.subr.mxu0 0.0
    %1624 = vmatpush2.msra.mxu0 0.0
    %1625 = vmatprep.subr.mxu0 0.0
    %1626 = vmatpush2.msra.mxu0 0.0
    %1627 = vmatprep.subr.mxu0 0.0
    %1628 = vmatpush2.msra.mxu0 0.0
    %1629 = vmatprep.subr.mxu0 0.0
    %1630 = vmatpush2.msra.mxu0 0.0
    %1631 = vmatprep.subr.mxu0 0.0
    %1632 = vmatpush2.msra.mxu0 0.0
    %1633 = vmatprep.mubr.f32.mxu0 0.0
    %1634 = vmatmul.mubr.f32.gmra.mxu0 %v1497
    %v1635 = vpop.f32.mrf.mxu0
    %v1636 = vadd.f32 0.0, %v1635
    %v1637 = vpop.f32.mrf.mxu0
    %v1638 = vadd.f32 0.0, %v1637
    %1639 = vdwg.mxu0
    %v1640 = vadd.f32 %v683, %v1565
    %v1641 = vadd.f32 %v685, %v1567
    %v1642 = vadd.f32 %v796, %v1636
    %v1643 = vadd.f32 %v798, %v1638
    %v1644 = vxor.u32 %v1640, 2147483648
    %v1645 = vxor.u32 %v1641, 2147483648
    %v1646 = vxor.u32 %v1642, 2147483648
    %v1647 = vmul.f32 %v1644, 1.442695
    %v1648 = vpow.pop %v1647
    %v1649 = vmul.f32 %v1645, 1.442695
    %v1650 = vpow.pop %v1649
    %v1651 = vmul.f32 %v1646, 1.442695
    %v1652 = vpow.pop %v1651
    %v1653 = vadd.f32 %v1648, 1.0
    %v1654 = vadd.f32 %v1650, 1.0
    %v1655 = vadd.f32 %v1652, 1.0
    %v1656 = vrcp.pop %v1653
    %v1657 = vmul.f32 1.0, %v1656
    %v1658 = vrcp.pop %v1654
    %v1659 = vmul.f32 1.0, %v1658
    %v1660 = vrcp.pop %v1655
    %v1661 = vmul.f32 1.0, %v1660
    %v1662 = vtanh.pop %v1643
    %v1663 = vmul.f32 %v1659, %v1495
    %v1664 = vmul.f32 %v1657, %v1662
    %v1665 = vadd.f32 %v1663, %v1664
    %v1666 = vtanh.pop %v1665
    %v1667 = vmul.f32 %v1661, %v1666
    %1668 = vmatprep.subr.mxu0 %v264
    %1669 = vmatpush1.msra.mxu0 %v263
    %1670 = vmatprep.subr.mxu0 %v260
    %1671 = vmatpush1.msra.mxu0 %v259
    %1672 = vmatprep.subr.mxu0 %v256
    %1673 = vmatpush1.msra.mxu0 %v255
    %1674 = vmatprep.subr.mxu0 %v252
    %1675 = vmatpush1.msra.mxu0 %v251
    %1676 = vmatprep.subr.mxu0 %v248
    %1677 = vmatpush1.msra.mxu0 %v247
    %1678 = vmatprep.subr.mxu0 %v244
    %1679 = vmatpush1.msra.mxu0 %v243
    %1680 = vmatprep.subr.mxu0 %v240
    %1681 = vmatpush1.msra.mxu0 %v239
    %1682 = vmatprep.subr.mxu0 %v236
    %1683 = vmatpush1.msra.mxu0 %v235
    %1684 = vmatprep.subr.mxu0 %v232
    %1685 = vmatpush1.msra.mxu0 %v231
    %1686 = vmatprep.subr.mxu0 %v228
    %1687 = vmatpush1.msra.mxu0 %v227
    %1688 = vmatprep.subr.mxu0 %v224
    %1689 = vmatpush1.msra.mxu0 %v223
    %1690 = vmatprep.subr.mxu0 %v220
    %1691 = vmatpush1.msra.mxu0 %v219
    %1692 = vmatprep.subr.mxu0 %v216
    %1693 = vmatpush1.msra.mxu0 %v215
    %1694 = vmatprep.subr.mxu0 %v212
    %1695 = vmatpush1.msra.mxu0 %v211
    %1696 = vmatprep.subr.mxu0 %v208
    %1697 = vmatpush1.msra.mxu0 %v207
    %1698 = vmatprep.subr.mxu0 %v204
    %1699 = vmatpush1.msra.mxu0 %v203
    %1700 = vmatprep.subr.mxu0 0.0
    %1701 = vmatpush2.msra.mxu0 0.0
    %1702 = vmatprep.subr.mxu0 0.0
    %1703 = vmatpush2.msra.mxu0 0.0
    %1704 = vmatprep.subr.mxu0 0.0
    %1705 = vmatpush2.msra.mxu0 0.0
    %1706 = vmatprep.subr.mxu0 0.0
    %1707 = vmatpush2.msra.mxu0 0.0
    %1708 = vmatprep.subr.mxu0 0.0
    %1709 = vmatpush2.msra.mxu0 0.0
    %1710 = vmatprep.subr.mxu0 0.0
    %1711 = vmatpush2.msra.mxu0 0.0
    %1712 = vmatprep.subr.mxu0 0.0
    %1713 = vmatpush2.msra.mxu0 0.0
    %1714 = vmatprep.subr.mxu0 0.0
    %1715 = vmatpush2.msra.mxu0 0.0
    %1716 = vmatprep.subr.mxu0 0.0
    %1717 = vmatpush2.msra.mxu0 0.0
    %1718 = vmatprep.subr.mxu0 0.0
    %1719 = vmatpush2.msra.mxu0 0.0
    %1720 = vmatprep.subr.mxu0 0.0
    %1721 = vmatpush2.msra.mxu0 0.0
    %1722 = vmatprep.subr.mxu0 0.0
    %1723 = vmatpush2.msra.mxu0 0.0
    %1724 = vmatprep.subr.mxu0 0.0
    %1725 = vmatpush2.msra.mxu0 0.0
    %1726 = vmatprep.subr.mxu0 0.0
    %1727 = vmatpush2.msra.mxu0 0.0
    %1728 = vmatprep.subr.mxu0 0.0
    %1729 = vmatpush2.msra.mxu0 0.0
    %1730 = vmatprep.subr.mxu0 0.0
    %1731 = vmatpush2.msra.mxu0 0.0
    %1732 = vmatprep.mubr.f32.mxu0 0.0
    %1733 = vmatmul.mubr.f32.gmra.mxu0 %v1667
    %v1734 = vpop.f32.mrf.mxu0
    %v1735 = vadd.f32 0.0, %v1734
    %v1736 = vpop.f32.mrf.mxu0
    %v1737 = vadd.f32 0.0, %v1736
    %1738 = vdwg.mxu0
    %1739 = vmatprep.subr.mxu0 %v266
    %1740 = vmatpush1.msra.mxu0 %v265
    %1741 = vmatprep.subr.mxu0 %v262
    %1742 = vmatpush1.msra.mxu0 %v261
    %1743 = vmatprep.subr.mxu0 %v258
    %1744 = vmatpush1.msra.mxu0 %v257
    %1745 = vmatprep.subr.mxu0 %v254
    %1746 = vmatpush1.msra.mxu0 %v253
    %1747 = vmatprep.subr.mxu0 %v250
    %1748 = vmatpush1.msra.mxu0 %v249
    %1749 = vmatprep.subr.mxu0 %v246
    %1750 = vmatpush1.msra.mxu0 %v245
    %1751 = vmatprep.subr.mxu0 %v242
    %1752 = vmatpush1.msra.mxu0 %v241
    %1753 = vmatprep.subr.mxu0 %v238
    %1754 = vmatpush1.msra.mxu0 %v237
    %1755 = vmatprep.subr.mxu0 %v234
    %1756 = vmatpush1.msra.mxu0 %v233
    %1757 = vmatprep.subr.mxu0 %v230
    %1758 = vmatpush1.msra.mxu0 %v229
    %1759 = vmatprep.subr.mxu0 %v226
    %1760 = vmatpush1.msra.mxu0 %v225
    %1761 = vmatprep.subr.mxu0 %v222
    %1762 = vmatpush1.msra.mxu0 %v221
    %1763 = vmatprep.subr.mxu0 %v218
    %1764 = vmatpush1.msra.mxu0 %v217
    %1765 = vmatprep.subr.mxu0 %v214
    %1766 = vmatpush1.msra.mxu0 %v213
    %1767 = vmatprep.subr.mxu0 %v210
    %1768 = vmatpush1.msra.mxu0 %v209
    %1769 = vmatprep.subr.mxu0 %v206
    %1770 = vmatpush1.msra.mxu0 %v205
    %1771 = vmatprep.subr.mxu0 0.0
    %1772 = vmatpush2.msra.mxu0 0.0
    %1773 = vmatprep.subr.mxu0 0.0
    %1774 = vmatpush2.msra.mxu0 0.0
    %1775 = vmatprep.subr.mxu0 0.0
    %1776 = vmatpush2.msra.mxu0 0.0
    %1777 = vmatprep.subr.mxu0 0.0
    %1778 = vmatpush2.msra.mxu0 0.0
    %1779 = vmatprep.subr.mxu0 0.0
    %1780 = vmatpush2.msra.mxu0 0.0
    %1781 = vmatprep.subr.mxu0 0.0
    %1782 = vmatpush2.msra.mxu0 0.0
    %1783 = vmatprep.subr.mxu0 0.0
    %1784 = vmatpush2.msra.mxu0 0.0
    %1785 = vmatprep.subr.mxu0 0.0
    %1786 = vmatpush2.msra.mxu0 0.0
    %1787 = vmatprep.subr.mxu0 0.0
    %1788 = vmatpush2.msra.mxu0 0.0
    %1789 = vmatprep.subr.mxu0 0.0
    %1790 = vmatpush2.msra.mxu0 0.0
    %1791 = vmatprep.subr.mxu0 0.0
    %1792 = vmatpush2.msra.mxu0 0.0
    %1793 = vmatprep.subr.mxu0 0.0
    %1794 = vmatpush2.msra.mxu0 0.0
    %1795 = vmatprep.subr.mxu0 0.0
    %1796 = vmatpush2.msra.mxu0 0.0
    %1797 = vmatprep.subr.mxu0 0.0
    %1798 = vmatpush2.msra.mxu0 0.0
    %1799 = vmatprep.subr.mxu0 0.0
    %1800 = vmatpush2.msra.mxu0 0.0
    %1801 = vmatprep.subr.mxu0 0.0
    %1802 = vmatpush2.msra.mxu0 0.0
    %1803 = vmatprep.mubr.f32.mxu0 0.0
    %1804 = vmatmul.mubr.f32.gmra.mxu0 %v1667
    %v1805 = vpop.f32.mrf.mxu0
    %v1806 = vadd.f32 0.0, %v1805
    %v1807 = vpop.f32.mrf.mxu0
    %v1808 = vadd.f32 0.0, %v1807
    %1809 = vdwg.mxu0
    %v1810 = vadd.f32 %v689, %v1735
    %v1811 = vadd.f32 %v691, %v1737
    %v1812 = vadd.f32 %v802, %v1806
    %v1813 = vadd.f32 %v804, %v1808
    %v1814 = vxor.u32 %v1810, 2147483648
    %v1815 = vxor.u32 %v1811, 2147483648
    %v1816 = vxor.u32 %v1812, 2147483648
    %v1817 = vmul.f32 %v1814, 1.442695
    %v1818 = vpow.pop %v1817
    %v1819 = vmul.f32 %v1815, 1.442695
    %v1820 = vpow.pop %v1819
    %v1821 = vmul.f32 %v1816, 1.442695
    %v1822 = vpow.pop %v1821
    %v1823 = vadd.f32 %v1818, 1.0
    %v1824 = vadd.f32 %v1820, 1.0
    %v1825 = vadd.f32 %v1822, 1.0
    %v1826 = vrcp.pop %v1823
    %v1827 = vmul.f32 1.0, %v1826
    %v1828 = vrcp.pop %v1824
    %v1829 = vmul.f32 1.0, %v1828
    %v1830 = vrcp.pop %v1825
    %v1831 = vmul.f32 1.0, %v1830
    %v1832 = vtanh.pop %v1813
    %v1833 = vmul.f32 %v1829, %v1665
    %v1834 = vmul.f32 %v1827, %v1832
    %v1835 = vadd.f32 %v1833, %v1834
    %v1836 = vtanh.pop %v1835
    %v1837 = vmul.f32 %v1831, %v1836
    %1838 = vmatprep.subr.mxu0 %v264
    %1839 = vmatpush1.msra.mxu0 %v263
    %1840 = vmatprep.subr.mxu0 %v260
    %1841 = vmatpush1.msra.mxu0 %v259
    %1842 = vmatprep.subr.mxu0 %v256
    %1843 = vmatpush1.msra.mxu0 %v255
    %1844 = vmatprep.subr.mxu0 %v252
    %1845 = vmatpush1.msra.mxu0 %v251
    %1846 = vmatprep.subr.mxu0 %v248
    %1847 = vmatpush1.msra.mxu0 %v247
    %1848 = vmatprep.subr.mxu0 %v244
    %1849 = vmatpush1.msra.mxu0 %v243
    %1850 = vmatprep.subr.mxu0 %v240
    %1851 = vmatpush1.msra.mxu0 %v239
    %1852 = vmatprep.subr.mxu0 %v236
    %1853 = vmatpush1.msra.mxu0 %v235
    %1854 = vmatprep.subr.mxu0 %v232
    %1855 = vmatpush1.msra.mxu0 %v231
    %1856 = vmatprep.subr.mxu0 %v228
    %1857 = vmatpush1.msra.mxu0 %v227
    %1858 = vmatprep.subr.mxu0 %v224
    %1859 = vmatpush1.msra.mxu0 %v223
    %1860 = vmatprep.subr.mxu0 %v220
    %1861 = vmatpush1.msra.mxu0 %v219
    %1862 = vmatprep.subr.mxu0 %v216
    %1863 = vmatpush1.msra.mxu0 %v215
    %1864 = vmatprep.subr.mxu0 %v212
    %1865 = vmatpush1.msra.mxu0 %v211
    %1866 = vmatprep.subr.mxu0 %v208
    %1867 = vmatpush1.msra.mxu0 %v207
    %1868 = vmatprep.subr.mxu0 %v204
    %1869 = vmatpush1.msra.mxu0 %v203
    %1870 = vmatprep.subr.mxu0 0.0
    %1871 = vmatpush2.msra.mxu0 0.0
    %1872 = vmatprep.subr.mxu0 0.0
    %1873 = vmatpush2.msra.mxu0 0.0
    %1874 = vmatprep.subr.mxu0 0.0
    %1875 = vmatpush2.msra.mxu0 0.0
    %1876 = vmatprep.subr.mxu0 0.0
    %1877 = vmatpush2.msra.mxu0 0.0
    %1878 = vmatprep.subr.mxu0 0.0
    %1879 = vmatpush2.msra.mxu0 0.0
    %1880 = vmatprep.subr.mxu0 0.0
    %1881 = vmatpush2.msra.mxu0 0.0
    %1882 = vmatprep.subr.mxu0 0.0
    %1883 = vmatpush2.msra.mxu0 0.0
    %1884 = vmatprep.subr.mxu0 0.0
    %1885 = vmatpush2.msra.mxu0 0.0
    %1886 = vmatprep.subr.mxu0 0.0
    %1887 = vmatpush2.msra.mxu0 0.0
    %1888 = vmatprep.subr.mxu0 0.0
    %1889 = vmatpush2.msra.mxu0 0.0
    %1890 = vmatprep.subr.mxu0 0.0
    %1891 = vmatpush2.msra.mxu0 0.0
    %1892 = vmatprep.subr.mxu0 0.0
    %1893 = vmatpush2.msra.mxu0 0.0
    %1894 = vmatprep.subr.mxu0 0.0
    %1895 = vmatpush2.msra.mxu0 0.0
    %1896 = vmatprep.subr.mxu0 0.0
    %1897 = vmatpush2.msra.mxu0 0.0
    %1898 = vmatprep.subr.mxu0 0.0
    %1899 = vmatpush2.msra.mxu0 0.0
    %1900 = vmatprep.subr.mxu0 0.0
    %1901 = vmatpush2.msra.mxu0 0.0
    %1902 = vmatprep.mubr.f32.mxu0 0.0
    %1903 = vmatmul.mubr.f32.gmra.mxu0 %v1837
    %v1904 = vpop.f32.mrf.mxu0
    %v1905 = vadd.f32 0.0, %v1904
    %v1906 = vpop.f32.mrf.mxu0
    %v1907 = vadd.f32 0.0, %v1906
    %1908 = vdwg.mxu0
    %1909 = vmatprep.subr.mxu0 %v266
    %1910 = vmatpush1.msra.mxu0 %v265
    %1911 = vmatprep.subr.mxu0 %v262
    %1912 = vmatpush1.msra.mxu0 %v261
    %1913 = vmatprep.subr.mxu0 %v258
    %1914 = vmatpush1.msra.mxu0 %v257
    %1915 = vmatprep.subr.mxu0 %v254
    %1916 = vmatpush1.msra.mxu0 %v253
    %1917 = vmatprep.subr.mxu0 %v250
    %1918 = vmatpush1.msra.mxu0 %v249
    %1919 = vmatprep.subr.mxu0 %v246
    %1920 = vmatpush1.msra.mxu0 %v245
    %1921 = vmatprep.subr.mxu0 %v242
    %1922 = vmatpush1.msra.mxu0 %v241
    %1923 = vmatprep.subr.mxu0 %v238
    %1924 = vmatpush1.msra.mxu0 %v237
    %1925 = vmatprep.subr.mxu0 %v234
    %1926 = vmatpush1.msra.mxu0 %v233
    %1927 = vmatprep.subr.mxu0 %v230
    %1928 = vmatpush1.msra.mxu0 %v229
    %1929 = vmatprep.subr.mxu0 %v226
    %1930 = vmatpush1.msra.mxu0 %v225
    %1931 = vmatprep.subr.mxu0 %v222
    %1932 = vmatpush1.msra.mxu0 %v221
    %1933 = vmatprep.subr.mxu0 %v218
    %1934 = vmatpush1.msra.mxu0 %v217
    %1935 = vmatprep.subr.mxu0 %v214
    %1936 = vmatpush1.msra.mxu0 %v213
    %1937 = vmatprep.subr.mxu0 %v210
    %1938 = vmatpush1.msra.mxu0 %v209
    %1939 = vmatprep.subr.mxu0 %v206
    %1940 = vmatpush1.msra.mxu0 %v205
    %1941 = vmatprep.subr.mxu0 0.0
    %1942 = vmatpush2.msra.mxu0 0.0
    %1943 = vmatprep.subr.mxu0 0.0
    %1944 = vmatpush2.msra.mxu0 0.0
    %1945 = vmatprep.subr.mxu0 0.0
    %1946 = vmatpush2.msra.mxu0 0.0
    %1947 = vmatprep.subr.mxu0 0.0
    %1948 = vmatpush2.msra.mxu0 0.0
    %1949 = vmatprep.subr.mxu0 0.0
    %1950 = vmatpush2.msra.mxu0 0.0
    %1951 = vmatprep.subr.mxu0 0.0
    %1952 = vmatpush2.msra.mxu0 0.0
    %1953 = vmatprep.subr.mxu0 0.0
    %1954 = vmatpush2.msra.mxu0 0.0
    %1955 = vmatprep.subr.mxu0 0.0
    %1956 = vmatpush2.msra.mxu0 0.0
    %1957 = vmatprep.subr.mxu0 0.0
    %1958 = vmatpush2.msra.mxu0 0.0
    %1959 = vmatprep.subr.mxu0 0.0
    %1960 = vmatpush2.msra.mxu0 0.0
    %1961 = vmatprep.subr.mxu0 0.0
    %1962 = vmatpush2.msra.mxu0 0.0
    %1963 = vmatprep.subr.mxu0 0.0
    %1964 = vmatpush2.msra.mxu0 0.0
    %1965 = vmatprep.subr.mxu0 0.0
    %1966 = vmatpush2.msra.mxu0 0.0
    %1967 = vmatprep.subr.mxu0 0.0
    %1968 = vmatpush2.msra.mxu0 0.0
    %1969 = vmatprep.subr.mxu0 0.0
    %1970 = vmatpush2.msra.mxu0 0.0
    %1971 = vmatprep.subr.mxu0 0.0
    %1972 = vmatpush2.msra.mxu0 0.0
    %1973 = vmatprep.mubr.f32.mxu0 0.0
    %1974 = vmatmul.mubr.f32.gmra.mxu0 %v1837
    %v1975 = vpop.f32.mrf.mxu0
    %v1976 = vadd.f32 0.0, %v1975
    %v1977 = vpop.f32.mrf.mxu0
    %v1978 = vadd.f32 0.0, %v1977
    %1979 = vdwg.mxu0
    %v1980 = vadd.f32 %v695, %v1905
    %v1981 = vadd.f32 %v697, %v1907
    %v1982 = vadd.f32 %v808, %v1976
    %v1983 = vadd.f32 %v810, %v1978
    %v1984 = vxor.u32 %v1980, 2147483648
    %v1985 = vxor.u32 %v1981, 2147483648
    %v1986 = vxor.u32 %v1982, 2147483648
    %v1987 = vmul.f32 %v1984, 1.442695
    %v1988 = vpow.pop %v1987
    %v1989 = vmul.f32 %v1985, 1.442695
    %v1990 = vpow.pop %v1989
    %v1991 = vmul.f32 %v1986, 1.442695
    %v1992 = vpow.pop %v1991
    %v1993 = vadd.f32 %v1988, 1.0
    %v1994 = vadd.f32 %v1990, 1.0
    %v1995 = vadd.f32 %v1992, 1.0
    %v1996 = vrcp.pop %v1993
    %v1997 = vmul.f32 1.0, %v1996
    %v1998 = vrcp.pop %v1994
    %v1999 = vmul.f32 1.0, %v1998
    %v2000 = vrcp.pop %v1995
    %v2001 = vmul.f32 1.0, %v2000
    %v2002 = vtanh.pop %v1983
    %v2003 = vmul.f32 %v1999, %v1835
    %v2004 = vmul.f32 %v1997, %v2002
    %v2005 = vadd.f32 %v2003, %v2004
    %v2006 = vtanh.pop %v2005
    %v2007 = vmul.f32 %v2001, %v2006
    %2008 = vmatprep.subr.mxu0 %v264
    %2009 = vmatpush1.msra.mxu0 %v263
    %2010 = vmatprep.subr.mxu0 %v260
    %2011 = vmatpush1.msra.mxu0 %v259
    %2012 = vmatprep.subr.mxu0 %v256
    %2013 = vmatpush1.msra.mxu0 %v255
    %2014 = vmatprep.subr.mxu0 %v252
    %2015 = vmatpush1.msra.mxu0 %v251
    %2016 = vmatprep.subr.mxu0 %v248
    %2017 = vmatpush1.msra.mxu0 %v247
    %2018 = vmatprep.subr.mxu0 %v244
    %2019 = vmatpush1.msra.mxu0 %v243
    %2020 = vmatprep.subr.mxu0 %v240
    %2021 = vmatpush1.msra.mxu0 %v239
    %2022 = vmatprep.subr.mxu0 %v236
    %2023 = vmatpush1.msra.mxu0 %v235
    %2024 = vmatprep.subr.mxu0 %v232
    %2025 = vmatpush1.msra.mxu0 %v231
    %2026 = vmatprep.subr.mxu0 %v228
    %2027 = vmatpush1.msra.mxu0 %v227
    %2028 = vmatprep.subr.mxu0 %v224
    %2029 = vmatpush1.msra.mxu0 %v223
    %2030 = vmatprep.subr.mxu0 %v220
    %2031 = vmatpush1.msra.mxu0 %v219
    %2032 = vmatprep.subr.mxu0 %v216
    %2033 = vmatpush1.msra.mxu0 %v215
    %2034 = vmatprep.subr.mxu0 %v212
    %2035 = vmatpush1.msra.mxu0 %v211
    %2036 = vmatprep.subr.mxu0 %v208
    %2037 = vmatpush1.msra.mxu0 %v207
    %2038 = vmatprep.subr.mxu0 %v204
    %2039 = vmatpush1.msra.mxu0 %v203
    %2040 = vmatprep.subr.mxu0 0.0
    %2041 = vmatpush2.msra.mxu0 0.0
    %2042 = vmatprep.subr.mxu0 0.0
    %2043 = vmatpush2.msra.mxu0 0.0
    %2044 = vmatprep.subr.mxu0 0.0
    %2045 = vmatpush2.msra.mxu0 0.0
    %2046 = vmatprep.subr.mxu0 0.0
    %2047 = vmatpush2.msra.mxu0 0.0
    %2048 = vmatprep.subr.mxu0 0.0
    %2049 = vmatpush2.msra.mxu0 0.0
    %2050 = vmatprep.subr.mxu0 0.0
    %2051 = vmatpush2.msra.mxu0 0.0
    %2052 = vmatprep.subr.mxu0 0.0
    %2053 = vmatpush2.msra.mxu0 0.0
    %2054 = vmatprep.subr.mxu0 0.0
    %2055 = vmatpush2.msra.mxu0 0.0
    %2056 = vmatprep.subr.mxu0 0.0
    %2057 = vmatpush2.msra.mxu0 0.0
    %2058 = vmatprep.subr.mxu0 0.0
    %2059 = vmatpush2.msra.mxu0 0.0
    %2060 = vmatprep.subr.mxu0 0.0
    %2061 = vmatpush2.msra.mxu0 0.0
    %2062 = vmatprep.subr.mxu0 0.0
    %2063 = vmatpush2.msra.mxu0 0.0
    %2064 = vmatprep.subr.mxu0 0.0
    %2065 = vmatpush2.msra.mxu0 0.0
    %2066 = vmatprep.subr.mxu0 0.0
    %2067 = vmatpush2.msra.mxu0 0.0
    %2068 = vmatprep.subr.mxu0 0.0
    %2069 = vmatpush2.msra.mxu0 0.0
    %2070 = vmatprep.subr.mxu0 0.0
    %2071 = vmatpush2.msra.mxu0 0.0
    %2072 = vmatprep.mubr.f32.mxu0 0.0
    %2073 = vmatmul.mubr.f32.gmra.mxu0 %v2007
    %v2074 = vpop.f32.mrf.mxu0
    %v2075 = vadd.f32 0.0, %v2074
    %v2076 = vpop.f32.mrf.mxu0
    %v2077 = vadd.f32 0.0, %v2076
    %2078 = vdwg.mxu0
    %2079 = vmatprep.subr.mxu0 %v266
    %2080 = vmatpush1.msra.mxu0 %v265
    %2081 = vmatprep.subr.mxu0 %v262
    %2082 = vmatpush1.msra.mxu0 %v261
    %2083 = vmatprep.subr.mxu0 %v258
    %2084 = vmatpush1.msra.mxu0 %v257
    %2085 = vmatprep.subr.mxu0 %v254
    %2086 = vmatpush1.msra.mxu0 %v253
    %2087 = vmatprep.subr.mxu0 %v250
    %2088 = vmatpush1.msra.mxu0 %v249
    %2089 = vmatprep.subr.mxu0 %v246
    %2090 = vmatpush1.msra.mxu0 %v245
    %2091 = vmatprep.subr.mxu0 %v242
    %2092 = vmatpush1.msra.mxu0 %v241
    %2093 = vmatprep.subr.mxu0 %v238
    %2094 = vmatpush1.msra.mxu0 %v237
    %2095 = vmatprep.subr.mxu0 %v234
    %2096 = vmatpush1.msra.mxu0 %v233
    %2097 = vmatprep.subr.mxu0 %v230
    %2098 = vmatpush1.msra.mxu0 %v229
    %2099 = vmatprep.subr.mxu0 %v226
    %2100 = vmatpush1.msra.mxu0 %v225
    %2101 = vmatprep.subr.mxu0 %v222
    %2102 = vmatpush1.msra.mxu0 %v221
    %2103 = vmatprep.subr.mxu0 %v218
    %2104 = vmatpush1.msra.mxu0 %v217
    %2105 = vmatprep.subr.mxu0 %v214
    %2106 = vmatpush1.msra.mxu0 %v213
    %2107 = vmatprep.subr.mxu0 %v210
    %2108 = vmatpush1.msra.mxu0 %v209
    %2109 = vmatprep.subr.mxu0 %v206
    %2110 = vmatpush1.msra.mxu0 %v205
    %2111 = vmatprep.subr.mxu0 0.0
    %2112 = vmatpush2.msra.mxu0 0.0
    %2113 = vmatprep.subr.mxu0 0.0
    %2114 = vmatpush2.msra.mxu0 0.0
    %2115 = vmatprep.subr.mxu0 0.0
    %2116 = vmatpush2.msra.mxu0 0.0
    %2117 = vmatprep.subr.mxu0 0.0
    %2118 = vmatpush2.msra.mxu0 0.0
    %2119 = vmatprep.subr.mxu0 0.0
    %2120 = vmatpush2.msra.mxu0 0.0
    %2121 = vmatprep.subr.mxu0 0.0
    %2122 = vmatpush2.msra.mxu0 0.0
    %2123 = vmatprep.subr.mxu0 0.0
    %2124 = vmatpush2.msra.mxu0 0.0
    %2125 = vmatprep.subr.mxu0 0.0
    %2126 = vmatpush2.msra.mxu0 0.0
    %2127 = vmatprep.subr.mxu0 0.0
    %2128 = vmatpush2.msra.mxu0 0.0
    %2129 = vmatprep.subr.mxu0 0.0
    %2130 = vmatpush2.msra.mxu0 0.0
    %2131 = vmatprep.subr.mxu0 0.0
    %2132 = vmatpush2.msra.mxu0 0.0
    %2133 = vmatprep.subr.mxu0 0.0
    %2134 = vmatpush2.msra.mxu0 0.0
    %2135 = vmatprep.subr.mxu0 0.0
    %2136 = vmatpush2.msra.mxu0 0.0
    %2137 = vmatprep.subr.mxu0 0.0
    %2138 = vmatpush2.msra.mxu0 0.0
    %2139 = vmatprep.subr.mxu0 0.0
    %2140 = vmatpush2.msra.mxu0 0.0
    %2141 = vmatprep.subr.mxu0 0.0
    %2142 = vmatpush2.msra.mxu0 0.0
    %2143 = vmatprep.mubr.f32.mxu0 0.0
    %2144 = vmatmul.mubr.f32.gmra.mxu0 %v2007
    %v2145 = vpop.f32.mrf.mxu0
    %v2146 = vadd.f32 0.0, %v2145
    %v2147 = vpop.f32.mrf.mxu0
    %v2148 = vadd.f32 0.0, %v2147
    %2149 = vdwg.mxu0
    %v2150 = vadd.f32 %v701, %v2075
    %v2151 = vadd.f32 %v703, %v2077
    %v2152 = vadd.f32 %v814, %v2146
    %v2153 = vadd.f32 %v816, %v2148
    %v2154 = vxor.u32 %v2150, 2147483648
    %v2155 = vxor.u32 %v2151, 2147483648
    %v2156 = vxor.u32 %v2152, 2147483648
    %v2157 = vmul.f32 %v2154, 1.442695
    %v2158 = vpow.pop %v2157
    %v2159 = vmul.f32 %v2155, 1.442695
    %v2160 = vpow.pop %v2159
    %v2161 = vmul.f32 %v2156, 1.442695
    %v2162 = vpow.pop %v2161
    %v2163 = vadd.f32 %v2158, 1.0
    %v2164 = vadd.f32 %v2160, 1.0
    %v2165 = vadd.f32 %v2162, 1.0
    %v2166 = vrcp.pop %v2163
    %v2167 = vmul.f32 1.0, %v2166
    %v2168 = vrcp.pop %v2164
    %v2169 = vmul.f32 1.0, %v2168
    %v2170 = vrcp.pop %v2165
    %v2171 = vmul.f32 1.0, %v2170
    %v2172 = vtanh.pop %v2153
    %v2173 = vmul.f32 %v2169, %v2005
    %v2174 = vmul.f32 %v2167, %v2172
    %v2175 = vadd.f32 %v2173, %v2174
    %v2176 = vtanh.pop %v2175
    %v2177 = vmul.f32 %v2171, %v2176
    %v2179 = vlaneseq
    %v2180 = vshrl.u32 %v2179, 7
    %v2181 = vsub.s32 0, %v2180
    %v2182 = vrot.slane %v268, %v2181
    %v2185 = vlaneseq
    %v2186 = vshrl.u32 %v2185, 7
    %v2187 = vsub.s32 0, %v2186
    %v2188 = vrot.slane %v269, %v2187
    %v2190 = vadd.f32 %v2182, %v2188
    %v2191 = vmax.f32 %v2190, 0.0
    %v2193 = vlaneseq
    %v2194 = vshrl.u32 %v2193, 7
    %v2195 = vsub.s32 0, %v2194
    %v2196 = vrot.slane %v398, %v2195
    %v2197 = vlaneseq
    %v2198 = vshrl.u32 %v2197, 7
    %v2199 = vsub.s32 1, %v2198
    %v2200 = vrot.slane %v398, %v2199
    %v2201 = vlaneseq
    %v2202 = vshrl.u32 %v2201, 7
    %v2203 = vsub.s32 2, %v2202
    %v2204 = vrot.slane %v398, %v2203
    %v2205 = vlaneseq
    %v2206 = vshrl.u32 %v2205, 7
    %v2207 = vsub.s32 3, %v2206
    %v2208 = vrot.slane %v398, %v2207
    %2213 = vmatprep.subr.mxu0 %v331
    %2214 = vmatpush1.msra.mxu0 %v330
    %2215 = vmatprep.subr.mxu0 %v327
    %2216 = vmatpush1.msra.mxu0 %v326
    %2217 = vmatprep.subr.mxu0 %v323
    %2218 = vmatpush1.msra.mxu0 %v322
    %2219 = vmatprep.subr.mxu0 %v319
    %2220 = vmatpush1.msra.mxu0 %v318
    %2221 = vmatprep.subr.mxu0 %v315
    %2222 = vmatpush1.msra.mxu0 %v314
    %2223 = vmatprep.subr.mxu0 %v311
    %2224 = vmatpush1.msra.mxu0 %v310
    %2225 = vmatprep.subr.mxu0 %v307
    %2226 = vmatpush1.msra.mxu0 %v306
    %2227 = vmatprep.subr.mxu0 %v303
    %2228 = vmatpush1.msra.mxu0 %v302
    %2229 = vmatprep.subr.mxu0 %v299
    %2230 = vmatpush1.msra.mxu0 %v298
    %2231 = vmatprep.subr.mxu0 %v295
    %2232 = vmatpush1.msra.mxu0 %v294
    %2233 = vmatprep.subr.mxu0 %v291
    %2234 = vmatpush1.msra.mxu0 %v290
    %2235 = vmatprep.subr.mxu0 %v287
    %2236 = vmatpush1.msra.mxu0 %v286
    %2237 = vmatprep.subr.mxu0 %v283
    %2238 = vmatpush1.msra.mxu0 %v282
    %2239 = vmatprep.subr.mxu0 %v279
    %2240 = vmatpush1.msra.mxu0 %v278
    %2241 = vmatprep.subr.mxu0 %v275
    %2242 = vmatpush1.msra.mxu0 %v274
    %2243 = vmatprep.subr.mxu0 %v271
    %2244 = vmatpush1.msra.mxu0 %v270
    %2245 = vmatprep.subr.mxu0 %v395
    %2246 = vmatpush2.msra.mxu0 %v394
    %2247 = vmatprep.subr.mxu0 %v391
    %2248 = vmatpush2.msra.mxu0 %v390
    %2249 = vmatprep.subr.mxu0 %v387
    %2250 = vmatpush2.msra.mxu0 %v386
    %2251 = vmatprep.subr.mxu0 %v383
    %2252 = vmatpush2.msra.mxu0 %v382
    %2253 = vmatprep.subr.mxu0 %v379
    %2254 = vmatpush2.msra.mxu0 %v378
    %2255 = vmatprep.subr.mxu0 %v375
    %2256 = vmatpush2.msra.mxu0 %v374
    %2257 = vmatprep.subr.mxu0 %v371
    %2258 = vmatpush2.msra.mxu0 %v370
    %2259 = vmatprep.subr.mxu0 %v367
    %2260 = vmatpush2.msra.mxu0 %v366
    %2261 = vmatprep.subr.mxu0 %v363
    %2262 = vmatpush2.msra.mxu0 %v362
    %2263 = vmatprep.subr.mxu0 %v359
    %2264 = vmatpush2.msra.mxu0 %v358
    %2265 = vmatprep.subr.mxu0 %v355
    %2266 = vmatpush2.msra.mxu0 %v354
    %2267 = vmatprep.subr.mxu0 %v351
    %2268 = vmatpush2.msra.mxu0 %v350
    %2269 = vmatprep.subr.mxu0 %v347
    %2270 = vmatpush2.msra.mxu0 %v346
    %2271 = vmatprep.subr.mxu0 %v343
    %2272 = vmatpush2.msra.mxu0 %v342
    %2273 = vmatprep.subr.mxu0 %v339
    %2274 = vmatpush2.msra.mxu0 %v338
    %2275 = vmatprep.subr.mxu0 %v335
    %2276 = vmatpush2.msra.mxu0 %v334
    %2277 = vmatprep.mubr.f32.mxu0 %v2177
    %2278 = vmatmul.mubr.f32.gmra.mxu0 %v2191
    %v2279 = vpop.f32.mrf.mxu0
    %v2280 = vadd.f32 %v2196, %v2279
    %v2281 = vpop.f32.mrf.mxu0
    %v2282 = vadd.f32 %v2200, %v2281
    %2283 = vdwg.mxu0
    %2284 = vmatprep.subr.mxu0 %v333
    %2285 = vmatpush1.msra.mxu0 %v332
    %2286 = vmatprep.subr.mxu0 %v329
    %2287 = vmatpush1.msra.mxu0 %v328
    %2288 = vmatprep.subr.mxu0 %v325
    %2289 = vmatpush1.msra.mxu0 %v324
    %2290 = vmatprep.subr.mxu0 %v321
    %2291 = vmatpush1.msra.mxu0 %v320
    %2292 = vmatprep.subr.mxu0 %v317
    %2293 = vmatpush1.msra.mxu0 %v316
    %2294 = vmatprep.subr.mxu0 %v313
    %2295 = vmatpush1.msra.mxu0 %v312
    %2296 = vmatprep.subr.mxu0 %v309
    %2297 = vmatpush1.msra.mxu0 %v308
    %2298 = vmatprep.subr.mxu0 %v305
    %2299 = vmatpush1.msra.mxu0 %v304
    %2300 = vmatprep.subr.mxu0 %v301
    %2301 = vmatpush1.msra.mxu0 %v300
    %2302 = vmatprep.subr.mxu0 %v297
    %2303 = vmatpush1.msra.mxu0 %v296
    %2304 = vmatprep.subr.mxu0 %v293
    %2305 = vmatpush1.msra.mxu0 %v292
    %2306 = vmatprep.subr.mxu0 %v289
    %2307 = vmatpush1.msra.mxu0 %v288
    %2308 = vmatprep.subr.mxu0 %v285
    %2309 = vmatpush1.msra.mxu0 %v284
    %2310 = vmatprep.subr.mxu0 %v281
    %2311 = vmatpush1.msra.mxu0 %v280
    %2312 = vmatprep.subr.mxu0 %v277
    %2313 = vmatpush1.msra.mxu0 %v276
    %2314 = vmatprep.subr.mxu0 %v273
    %2315 = vmatpush1.msra.mxu0 %v272
    %2316 = vmatprep.subr.mxu0 %v397
    %2317 = vmatpush2.msra.mxu0 %v396
    %2318 = vmatprep.subr.mxu0 %v393
    %2319 = vmatpush2.msra.mxu0 %v392
    %2320 = vmatprep.subr.mxu0 %v389
    %2321 = vmatpush2.msra.mxu0 %v388
    %2322 = vmatprep.subr.mxu0 %v385
    %2323 = vmatpush2.msra.mxu0 %v384
    %2324 = vmatprep.subr.mxu0 %v381
    %2325 = vmatpush2.msra.mxu0 %v380
    %2326 = vmatprep.subr.mxu0 %v377
    %2327 = vmatpush2.msra.mxu0 %v376
    %2328 = vmatprep.subr.mxu0 %v373
    %2329 = vmatpush2.msra.mxu0 %v372
    %2330 = vmatprep.subr.mxu0 %v369
    %2331 = vmatpush2.msra.mxu0 %v368
    %2332 = vmatprep.subr.mxu0 %v365
    %2333 = vmatpush2.msra.mxu0 %v364
    %2334 = vmatprep.subr.mxu0 %v361
    %2335 = vmatpush2.msra.mxu0 %v360
    %2336 = vmatprep.subr.mxu0 %v357
    %2337 = vmatpush2.msra.mxu0 %v356
    %2338 = vmatprep.subr.mxu0 %v353
    %2339 = vmatpush2.msra.mxu0 %v352
    %2340 = vmatprep.subr.mxu0 %v349
    %2341 = vmatpush2.msra.mxu0 %v348
    %2342 = vmatprep.subr.mxu0 %v345
    %2343 = vmatpush2.msra.mxu0 %v344
    %2344 = vmatprep.subr.mxu0 %v341
    %2345 = vmatpush2.msra.mxu0 %v340
    %2346 = vmatprep.subr.mxu0 %v337
    %2347 = vmatpush2.msra.mxu0 %v336
    %2348 = vmatprep.mubr.f32.mxu0 %v2177
    %2349 = vmatmul.mubr.f32.gmra.mxu0 %v2191
    %v2350 = vpop.f32.mrf.mxu0
    %v2351 = vadd.f32 %v2204, %v2350
    %v2352 = vpop.f32.mrf.mxu0
    %v2353 = vadd.f32 %v2208, %v2352
    %2354 = vdwg.mxu0
    %v2355 = vxor.u32 %v2280, 2147483648
    %v2356 = vxor.u32 %v2282, 2147483648
    %v2357 = vxor.u32 %v2351, 2147483648
    %v2358 = vmul.f32 %v2355, 1.442695
    %v2359 = vpow.pop %v2358
    %v2360 = vmul.f32 %v2356, 1.442695
    %v2361 = vpow.pop %v2360
    %v2362 = vmul.f32 %v2357, 1.442695
    %v2363 = vpow.pop %v2362
    %v2364 = vadd.f32 %v2359, 1.0
    %v2365 = vadd.f32 %v2361, 1.0
    %v2366 = vadd.f32 %v2363, 1.0
    %v2367 = vrcp.pop %v2364
    %v2368 = vmul.f32 1.0, %v2367
    %v2369 = vrcp.pop %v2365
    %v2370 = vmul.f32 1.0, %v2369
    %v2371 = vrcp.pop %v2366
    %v2372 = vmul.f32 1.0, %v2371
    %v2373 = vtanh.pop %v2353
    %v2374 = vmul.f32 %v2370, %v2175
    %v2375 = vmul.f32 %v2368, %v2373
    %v2376 = vadd.f32 %v2374, %v2375
    %v2377 = vtanh.pop %v2376
    %v2378 = vmul.f32 %v2372, %v2377
    %v2380 = vlaneseq
    %v2381 = vshrl.u32 %v2380, 7
    %v2382 = vsub.s32 0, %v2381
    %v2383 = vrot.slane %v415, %v2382
    %2385 = vmatprep.subr.mxu0 0.0
    %2386 = vmatpush1.msra.mxu0 %v414
    %2387 = vmatprep.subr.mxu0 0.0
    %2388 = vmatpush1.msra.mxu0 %v413
    %2389 = vmatprep.subr.mxu0 0.0
    %2390 = vmatpush1.msra.mxu0 %v412
    %2391 = vmatprep.subr.mxu0 0.0
    %2392 = vmatpush1.msra.mxu0 %v411
    %2393 = vmatprep.subr.mxu0 0.0
    %2394 = vmatpush1.msra.mxu0 %v410
    %2395 = vmatprep.subr.mxu0 0.0
    %2396 = vmatpush1.msra.mxu0 %v409
    %2397 = vmatprep.subr.mxu0 0.0
    %2398 = vmatpush1.msra.mxu0 %v408
    %2399 = vmatprep.subr.mxu0 0.0
    %2400 = vmatpush1.msra.mxu0 %v407
    %2401 = vmatprep.subr.mxu0 0.0
    %2402 = vmatpush1.msra.mxu0 %v406
    %2403 = vmatprep.subr.mxu0 0.0
    %2404 = vmatpush1.msra.mxu0 %v405
    %2405 = vmatprep.subr.mxu0 0.0
    %2406 = vmatpush1.msra.mxu0 %v404
    %2407 = vmatprep.subr.mxu0 0.0
    %2408 = vmatpush1.msra.mxu0 %v403
    %2409 = vmatprep.subr.mxu0 0.0
    %2410 = vmatpush1.msra.mxu0 %v402
    %2411 = vmatprep.subr.mxu0 0.0
    %2412 = vmatpush1.msra.mxu0 %v401
    %2413 = vmatprep.subr.mxu0 0.0
    %2414 = vmatpush1.msra.mxu0 %v400
    %2415 = vmatprep.subr.mxu0 0.0
    %2416 = vmatpush1.msra.mxu0 %v399
    %2417 = vmatprep.subr.mxu0 0.0
    %2418 = vmatpush2.msra.mxu0 0.0
    %2419 = vmatprep.subr.mxu0 0.0
    %2420 = vmatpush2.msra.mxu0 0.0
    %2421 = vmatprep.subr.mxu0 0.0
    %2422 = vmatpush2.msra.mxu0 0.0
    %2423 = vmatprep.subr.mxu0 0.0
    %2424 = vmatpush2.msra.mxu0 0.0
    %2425 = vmatprep.subr.mxu0 0.0
    %2426 = vmatpush2.msra.mxu0 0.0
    %2427 = vmatprep.subr.mxu0 0.0
    %2428 = vmatpush2.msra.mxu0 0.0
    %2429 = vmatprep.subr.mxu0 0.0
    %2430 = vmatpush2.msra.mxu0 0.0
    %2431 = vmatprep.subr.mxu0 0.0
    %2432 = vmatpush2.msra.mxu0 0.0
    %2433 = vmatprep.subr.mxu0 0.0
    %2434 = vmatpush2.msra.mxu0 0.0
    %2435 = vmatprep.subr.mxu0 0.0
    %2436 = vmatpush2.msra.mxu0 0.0
    %2437 = vmatprep.subr.mxu0 0.0
    %2438 = vmatpush2.msra.mxu0 0.0
    %2439 = vmatprep.subr.mxu0 0.0
    %2440 = vmatpush2.msra.mxu0 0.0
    %2441 = vmatprep.subr.mxu0 0.0
    %2442 = vmatpush2.msra.mxu0 0.0
    %2443 = vmatprep.subr.mxu0 0.0
    %2444 = vmatpush2.msra.mxu0 0.0
    %2445 = vmatprep.subr.mxu0 0.0
    %2446 = vmatpush2.msra.mxu0 0.0
    %2447 = vmatprep.subr.mxu0 0.0
    %2448 = vmatpush2.msra.mxu0 0.0
    %2449 = vmatprep.mubr.f32.mxu0 0.0
    %2450 = vmatmul.mubr.f32.gmra.mxu0 %v2378
    %v2451 = vpop.f32.mrf.mxu0
    %v2452 = vadd.f32 %v2383, %v2451
    %v2453 = vpop.f32.mrf.mxu0
    %2454 = vdwg.mxu0
    %2455 = vmax.xlane.f32.xlu0 %v2452
    %v2456 = vpop.xlane.xlu0 %2455
    %vm2457 = vcmp.eq.f32.partialorder %v2452, %v2456
    %v2458 = vsel %vm2457, %v417, 128
    %v2459 = vand.u32 %v2458, 65535
    %v2460 = vshra.s32 %v2458, 16
    %v2461 = vcvt.s32.f32 %v2459
    %v2462 = vcvt.s32.f32 %v2460
    %2463 = vmin.xlane.f32.xlu0 %v2462
    %v2464 = vpop.xlane.xlu0 %2463
    %vm2465 = vcmp.eq.f32.partialorder %v2462, %v2464
    %v2466 = vsel %vm2465, %v2461, inf
    %2467 = vmin.xlane.f32.xlu0 %v2466
    %v2468 = vpop.xlane.xlu0 %2467
    %v2469 = vcvt.f32.s32 %v2468
    %v2470 = vcvt.f32.s32 %v2464
    %v2471 = vshll.u32 %v2470, 16
    %v2472 = vadd.s32 %v2471, %v2469
    %v2473 = vcvt.s32.f32 %v2472
    %vm2474 = vcmp.eq.s32.totalorder %v417, 0
    %v2475 = vsel %vm2474, 1.0, -inf
    %2476 = vmax.xlane.f32.xlu0 %v2475
    %v2477 = vpop.xlane.xlu0 %2476
    %vm2478 = vcmp.eq.f32.partialorder %v2475, %v2477
    %v2479 = vsel %vm2478, %v417, 128
    %v2480 = vand.u32 %v2479, 65535
    %v2481 = vshra.s32 %v2479, 16
    %v2482 = vcvt.s32.f32 %v2480
    %v2483 = vcvt.s32.f32 %v2481
    %2484 = vmin.xlane.f32.xlu0 %v2483
    %v2485 = vpop.xlane.xlu0 %2484
    %vm2486 = vcmp.eq.f32.partialorder %v2483, %v2485
    %v2487 = vsel %vm2486, %v2482, inf
    %2488 = vmin.xlane.f32.xlu0 %v2487
    %v2489 = vpop.xlane.xlu0 %2488
    %v2490 = vcvt.f32.s32 %v2489
    %v2491 = vcvt.f32.s32 %v2485
    %v2492 = vshll.u32 %v2491, 16
    %v2493 = vadd.s32 %v2492, %v2490
    %v2494 = vsub.f32 %v2475, %v2477
    %v2495 = vmul.f32 %v2494, 1.442695
    %v2496 = vpow.pop %v2495
    %2497 = vadd.xlane.f32.xlu0 %v2496
    %v2498 = vpop.xlane.xlu0 %2497
    %v2499 = vlog2.pop %v2498
    %v2500 = vmul.f32 %v2499, 0.6931472
    %vm2501 = vcmp.eq.s32.totalorder %v417, %v2493
    %v2502 = vsub.f32 %v2494, %v2500
    %v2503 = vsel %vm2501, %v2502, 0.0
    %2504 = vadd.xlane.f32.xlu0 %v2503
    %v2505 = vpop.xlane.xlu0 %2504
    %v2506 = vcvt.s32.f32 %v2493
    %v2507 = vsel %vm2474, %v2506, 0.0
    %v2508 = vsel %vm2474, %v2505, 0.0
    %v2509 = vmul.f32 %v2473, %v2182
    %v2510 = vadd.f32 %v2509, %v2188
    %v2511 = vmax.f32 %v2510, 0.0
    %2512 = vmatprep.subr.mxu0 %v331
    %2513 = vmatpush1.msra.mxu0 %v330
    %2514 = vmatprep.subr.mxu0 %v327
    %2515 = vmatpush1.msra.mxu0 %v326
    %2516 = vmatprep.subr.mxu0 %v323
    %2517 = vmatpush1.msra.mxu0 %v322
    %2518 = vmatprep.subr.mxu0 %v319
    %2519 = vmatpush1.msra.mxu0 %v318
    %2520 = vmatprep.subr.mxu0 %v315
    %2521 = vmatpush1.msra.mxu0 %v314
    %2522 = vmatprep.subr.mxu0 %v311
    %2523 = vmatpush1.msra.mxu0 %v310
    %2524 = vmatprep.subr.mxu0 %v307
    %2525 = vmatpush1.msra.mxu0 %v306
    %2526 = vmatprep.subr.mxu0 %v303
    %2527 = vmatpush1.msra.mxu0 %v302
    %2528 = vmatprep.subr.mxu0 %v299
    %2529 = vmatpush1.msra.mxu0 %v298
    %2530 = vmatprep.subr.mxu0 %v295
    %2531 = vmatpush1.msra.mxu0 %v294
    %2532 = vmatprep.subr.mxu0 %v291
    %2533 = vmatpush1.msra.mxu0 %v290
    %2534 = vmatprep.subr.mxu0 %v287
    %2535 = vmatpush1.msra.mxu0 %v286
    %2536 = vmatprep.subr.mxu0 %v283
    %2537 = vmatpush1.msra.mxu0 %v282
    %2538 = vmatprep.subr.mxu0 %v279
    %2539 = vmatpush1.msra.mxu0 %v278
    %2540 = vmatprep.subr.mxu0 %v275
    %2541 = vmatpush1.msra.mxu0 %v274
    %2542 = vmatprep.subr.mxu0 %v271
    %2543 = vmatpush1.msra.mxu0 %v270
    %2544 = vmatprep.subr.mxu0 %v395
    %2545 = vmatpush2.msra.mxu0 %v394
    %2546 = vmatprep.subr.mxu0 %v391
    %2547 = vmatpush2.msra.mxu0 %v390
    %2548 = vmatprep.subr.mxu0 %v387
    %2549 = vmatpush2.msra.mxu0 %v386
    %2550 = vmatprep.subr.mxu0 %v383
    %2551 = vmatpush2.msra.mxu0 %v382
    %2552 = vmatprep.subr.mxu0 %v379
    %2553 = vmatpush2.msra.mxu0 %v378
    %2554 = vmatprep.subr.mxu0 %v375
    %2555 = vmatpush2.msra.mxu0 %v374
    %2556 = vmatprep.subr.mxu0 %v371
    %2557 = vmatpush2.msra.mxu0 %v370
    %2558 = vmatprep.subr.mxu0 %v367
    %2559 = vmatpush2.msra.mxu0 %v366
    %2560 = vmatprep.subr.mxu0 %v363
    %2561 = vmatpush2.msra.mxu0 %v362
    %2562 = vmatprep.subr.mxu0 %v359
    %2563 = vmatpush2.msra.mxu0 %v358
    %2564 = vmatprep.subr.mxu0 %v355
    %2565 = vmatpush2.msra.mxu0 %v354
    %2566 = vmatprep.subr.mxu0 %v351
    %2567 = vmatpush2.msra.mxu0 %v350
    %2568 = vmatprep.subr.mxu0 %v347
    %2569 = vmatpush2.msra.mxu0 %v346
    %2570 = vmatprep.subr.mxu0 %v343
    %2571 = vmatpush2.msra.mxu0 %v342
    %2572 = vmatprep.subr.mxu0 %v339
    %2573 = vmatpush2.msra.mxu0 %v338
    %2574 = vmatprep.subr.mxu0 %v335
    %2575 = vmatpush2.msra.mxu0 %v334
    %2576 = vmatprep.mubr.f32.mxu0 %v2378
    %2577 = vmatmul.mubr.f32.gmra.mxu0 %v2511
    %v2578 = vpop.f32.mrf.mxu0
    %v2579 = vadd.f32 %v2196, %v2578
    %v2580 = vpop.f32.mrf.mxu0
    %v2581 = vadd.f32 %v2200, %v2580
    %2582 = vdwg.mxu0
    %2583 = vmatprep.subr.mxu0 %v333
    %2584 = vmatpush1.msra.mxu0 %v332
    %2585 = vmatprep.subr.mxu0 %v329
    %2586 = vmatpush1.msra.mxu0 %v328
    %2587 = vmatprep.subr.mxu0 %v325
    %2588 = vmatpush1.msra.mxu0 %v324
    %2589 = vmatprep.subr.mxu0 %v321
    %2590 = vmatpush1.msra.mxu0 %v320
    %2591 = vmatprep.subr.mxu0 %v317
    %2592 = vmatpush1.msra.mxu0 %v316
    %2593 = vmatprep.subr.mxu0 %v313
    %2594 = vmatpush1.msra.mxu0 %v312
    %2595 = vmatprep.subr.mxu0 %v309
    %2596 = vmatpush1.msra.mxu0 %v308
    %2597 = vmatprep.subr.mxu0 %v305
    %2598 = vmatpush1.msra.mxu0 %v304
    %2599 = vmatprep.subr.mxu0 %v301
    %2600 = vmatpush1.msra.mxu0 %v300
    %2601 = vmatprep.subr.mxu0 %v297
    %2602 = vmatpush1.msra.mxu0 %v296
    %2603 = vmatprep.subr.mxu0 %v293
    %2604 = vmatpush1.msra.mxu0 %v292
    %2605 = vmatprep.subr.mxu0 %v289
    %2606 = vmatpush1.msra.mxu0 %v288
    %2607 = vmatprep.subr.mxu0 %v285
    %2608 = vmatpush1.msra.mxu0 %v284
    %2609 = vmatprep.subr.mxu0 %v281
    %2610 = vmatpush1.msra.mxu0 %v280
    %2611 = vmatprep.subr.mxu0 %v277
    %2612 = vmatpush1.msra.mxu0 %v276
    %2613 = vmatprep.subr.mxu0 %v273
    %2614 = vmatpush1.msra.mxu0 %v272
    %2615 = vmatprep.subr.mxu0 %v397
    %2616 = vmatpush2.msra.mxu0 %v396
    %2617 = vmatprep.subr.mxu0 %v393
    %2618 = vmatpush2.msra.mxu0 %v392
    %2619 = vmatprep.subr.mxu0 %v389
    %2620 = vmatpush2.msra.mxu0 %v388
    %2621 = vmatprep.subr.mxu0 %v385
    %2622 = vmatpush2.msra.mxu0 %v384
    %2623 = vmatprep.subr.mxu0 %v381
    %2624 = vmatpush2.msra.mxu0 %v380
    %2625 = vmatprep.subr.mxu0 %v377
    %2626 = vmatpush2.msra.mxu0 %v376
    %2627 = vmatprep.subr.mxu0 %v373
    %2628 = vmatpush2.msra.mxu0 %v372
    %2629 = vmatprep.subr.mxu0 %v369
    %2630 = vmatpush2.msra.mxu0 %v368
    %2631 = vmatprep.subr.mxu0 %v365
    %2632 = vmatpush2.msra.mxu0 %v364
    %2633 = vmatprep.subr.mxu0 %v361
    %2634 = vmatpush2.msra.mxu0 %v360
    %2635 = vmatprep.subr.mxu0 %v357
    %2636 = vmatpush2.msra.mxu0 %v356
    %2637 = vmatprep.subr.mxu0 %v353
    %2638 = vmatpush2.msra.mxu0 %v352
    %2639 = vmatprep.subr.mxu0 %v349
    %2640 = vmatpush2.msra.mxu0 %v348
    %2641 = vmatprep.subr.mxu0 %v345
    %2642 = vmatpush2.msra.mxu0 %v344
    %2643 = vmatprep.subr.mxu0 %v341
    %2644 = vmatpush2.msra.mxu0 %v340
    %2645 = vmatprep.subr.mxu0 %v337
    %2646 = vmatpush2.msra.mxu0 %v336
    %2647 = vmatprep.mubr.f32.mxu0 %v2378
    %2648 = vmatmul.mubr.f32.gmra.mxu0 %v2511
    %v2649 = vpop.f32.mrf.mxu0
    %v2650 = vadd.f32 %v2204, %v2649
    %v2651 = vpop.f32.mrf.mxu0
    %v2652 = vadd.f32 %v2208, %v2651
    %2653 = vdwg.mxu0
    %v2654 = vxor.u32 %v2579, 2147483648
    %v2655 = vxor.u32 %v2581, 2147483648
    %v2656 = vxor.u32 %v2650, 2147483648
    %v2657 = vmul.f32 %v2654, 1.442695
    %v2658 = vpow.pop %v2657
    %v2659 = vmul.f32 %v2655, 1.442695
    %v2660 = vpow.pop %v2659
    %v2661 = vmul.f32 %v2656, 1.442695
    %v2662 = vpow.pop %v2661
    %v2663 = vadd.f32 %v2658, 1.0
    %v2664 = vadd.f32 %v2660, 1.0
    %v2665 = vadd.f32 %v2662, 1.0
    %v2666 = vrcp.pop %v2663
    %v2667 = vmul.f32 1.0, %v2666
    %v2668 = vrcp.pop %v2664
    %v2669 = vmul.f32 1.0, %v2668
    %v2670 = vrcp.pop %v2665
    %v2671 = vmul.f32 1.0, %v2670
    %v2672 = vtanh.pop %v2652
    %v2673 = vmul.f32 %v2669, %v2376
    %v2674 = vmul.f32 %v2667, %v2672
    %v2675 = vadd.f32 %v2673, %v2674
    %v2676 = vtanh.pop %v2675
    %v2677 = vmul.f32 %v2671, %v2676
    %2678 = vmatprep.subr.mxu0 0.0
    %2679 = vmatpush1.msra.mxu0 %v414
    %2680 = vmatprep.subr.mxu0 0.0
    %2681 = vmatpush1.msra.mxu0 %v413
    %2682 = vmatprep.subr.mxu0 0.0
    %2683 = vmatpush1.msra.mxu0 %v412
    %2684 = vmatprep.subr.mxu0 0.0
    %2685 = vmatpush1.msra.mxu0 %v411
    %2686 = vmatprep.subr.mxu0 0.0
    %2687 = vmatpush1.msra.mxu0 %v410
    %2688 = vmatprep.subr.mxu0 0.0
    %2689 = vmatpush1.msra.mxu0 %v409
    %2690 = vmatprep.subr.mxu0 0.0
    %2691 = vmatpush1.msra.mxu0 %v408
    %2692 = vmatprep.subr.mxu0 0.0
    %2693 = vmatpush1.msra.mxu0 %v407
    %2694 = vmatprep.subr.mxu0 0.0
    %2695 = vmatpush1.msra.mxu0 %v406
    %2696 = vmatprep.subr.mxu0 0.0
    %2697 = vmatpush1.msra.mxu0 %v405
    %2698 = vmatprep.subr.mxu0 0.0
    %2699 = vmatpush1.msra.mxu0 %v404
    %2700 = vmatprep.subr.mxu0 0.0
    %2701 = vmatpush1.msra.mxu0 %v403
    %2702 = vmatprep.subr.mxu0 0.0
    %2703 = vmatpush1.msra.mxu0 %v402
    %2704 = vmatprep.subr.mxu0 0.0
    %2705 = vmatpush1.msra.mxu0 %v401
    %2706 = vmatprep.subr.mxu0 0.0
    %2707 = vmatpush1.msra.mxu0 %v400
    %2708 = vmatprep.subr.mxu0 0.0
    %2709 = vmatpush1.msra.mxu0 %v399
    %2710 = vmatprep.subr.mxu0 0.0
    %2711 = vmatpush2.msra.mxu0 0.0
    %2712 = vmatprep.subr.mxu0 0.0
    %2713 = vmatpush2.msra.mxu0 0.0
    %2714 = vmatprep.subr.mxu0 0.0
    %2715 = vmatpush2.msra.mxu0 0.0
    %2716 = vmatprep.subr.mxu0 0.0
    %2717 = vmatpush2.msra.mxu0 0.0
    %2718 = vmatprep.subr.mxu0 0.0
    %2719 = vmatpush2.msra.mxu0 0.0
    %2720 = vmatprep.subr.mxu0 0.0
    %2721 = vmatpush2.msra.mxu0 0.0
    %2722 = vmatprep.subr.mxu0 0.0
    %2723 = vmatpush2.msra.mxu0 0.0
    %2724 = vmatprep.subr.mxu0 0.0
    %2725 = vmatpush2.msra.mxu0 0.0
    %2726 = vmatprep.subr.mxu0 0.0
    %2727 = vmatpush2.msra.mxu0 0.0
    %2728 = vmatprep.subr.mxu0 0.0
    %2729 = vmatpush2.msra.mxu0 0.0
    %2730 = vmatprep.subr.mxu0 0.0
    %2731 = vmatpush2.msra.mxu0 0.0
    %2732 = vmatprep.subr.mxu0 0.0
    %2733 = vmatpush2.msra.mxu0 0.0
    %2734 = vmatprep.subr.mxu0 0.0
    %2735 = vmatpush2.msra.mxu0 0.0
    %2736 = vmatprep.subr.mxu0 0.0
    %2737 = vmatpush2.msra.mxu0 0.0
    %2738 = vmatprep.subr.mxu0 0.0
    %2739 = vmatpush2.msra.mxu0 0.0
    %2740 = vmatprep.subr.mxu0 0.0
    %2741 = vmatpush2.msra.mxu0 0.0
    %2742 = vmatprep.mubr.f32.mxu0 0.0
    %2743 = vmatmul.mubr.f32.gmra.mxu0 %v2677
    %v2744 = vpop.f32.mrf.mxu0
    %v2745 = vadd.f32 %v2383, %v2744
    %v2746 = vpop.f32.mrf.mxu0
    %2747 = vdwg.mxu0
    %2748 = vmax.xlane.f32.xlu0 %v2745
    %v2749 = vpop.xlane.xlu0 %2748
    %vm2750 = vcmp.eq.f32.partialorder %v2745, %v2749
    %v2751 = vsel %vm2750, %v417, 128
    %v2752 = vand.u32 %v2751, 65535
    %v2753 = vshra.s32 %v2751, 16
    %v2754 = vcvt.s32.f32 %v2752
    %v2755 = vcvt.s32.f32 %v2753
    %2756 = vmin.xlane.f32.xlu0 %v2755
    %v2757 = vpop.xlane.xlu0 %2756
    %vm2758 = vcmp.eq.f32.partialorder %v2755, %v2757
    %v2759 = vsel %vm2758, %v2754, inf
    %2760 = vmin.xlane.f32.xlu0 %v2759
    %v2761 = vpop.xlane.xlu0 %2760
    %v2762 = vcvt.f32.s32 %v2761
    %v2763 = vcvt.f32.s32 %v2757
    %v2764 = vshll.u32 %v2763, 16
    %v2765 = vadd.s32 %v2764, %v2762
    %v2766 = vcvt.s32.f32 %v2765
    %v2767 = vsel %vm2501, 1.0, 0.0
    %vm2768 = vcmp.gt.f32.partialorder %v2767, 0.5
    %v2769 = vsel %vm2768, -inf, %v2745
    %2770 = vmax.xlane.f32.xlu0 %v2769
    %v2771 = vpop.xlane.xlu0 %2770
    %vm2772 = vcmp.eq.f32.partialorder %v2769, %v2771
    %v2773 = vsel %vm2772, %v417, 128
    %v2774 = vand.u32 %v2773, 65535
    %v2775 = vshra.s32 %v2773, 16
    %v2776 = vcvt.s32.f32 %v2774
    %v2777 = vcvt.s32.f32 %v2775
    %2778 = vmin.xlane.f32.xlu0 %v2777
    %v2779 = vpop.xlane.xlu0 %2778
    %vm2780 = vcmp.eq.f32.partialorder %v2777, %v2779
    %v2781 = vsel %vm2780, %v2776, inf
    %2782 = vmin.xlane.f32.xlu0 %v2781
    %v2783 = vpop.xlane.xlu0 %2782
    %v2784 = vcvt.f32.s32 %v2783
    %v2785 = vcvt.f32.s32 %v2779
    %v2786 = vshll.u32 %v2785, 16
    %v2787 = vadd.s32 %v2786, %v2784
    %v2788 = vsub.f32 %v2769, %v2771
    %v2789 = vmul.f32 %v2788, 1.442695
    %v2790 = vpow.pop %v2789
    %2791 = vadd.xlane.f32.xlu0 %v2790
    %v2792 = vpop.xlane.xlu0 %2791
    %v2793 = vlog2.pop %v2792
    %v2794 = vmul.f32 %v2793, 0.6931472
    %vm2795 = vcmp.eq.s32.totalorder %v417, %v2787
    %v2796 = vsub.f32 %v2788, %v2794
    %v2797 = vsel %vm2795, %v2796, 0.0
    %2798 = vadd.xlane.f32.xlu0 %v2797
    %v2799 = vpop.xlane.xlu0 %2798
    %vm2800 = vcmp.eq.s32.totalorder %v417, 1
    %v2801 = vcvt.s32.f32 %v2787
    %v2802 = vsel %vm2800, %v2801, %v2507
    %v2803 = vsel %vm2800, %v2799, %v2508
    %v2804 = vmul.f32 %v2766, %v2182
    %v2805 = vadd.f32 %v2804, %v2188
    %v2806 = vmax.f32 %v2805, 0.0
    %2807 = vmatprep.subr.mxu0 %v331
    %2808 = vmatpush1.msra.mxu0 %v330
    %2809 = vmatprep.subr.mxu0 %v327
    %2810 = vmatpush1.msra.mxu0 %v326
    %2811 = vmatprep.subr.mxu0 %v323
    %2812 = vmatpush1.msra.mxu0 %v322
    %2813 = vmatprep.subr.mxu0 %v319
    %2814 = vmatpush1.msra.mxu0 %v318
    %2815 = vmatprep.subr.mxu0 %v315
    %2816 = vmatpush1.msra.mxu0 %v314
    %2817 = vmatprep.subr.mxu0 %v311
    %2818 = vmatpush1.msra.mxu0 %v310
    %2819 = vmatprep.subr.mxu0 %v307
    %2820 = vmatpush1.msra.mxu0 %v306
    %2821 = vmatprep.subr.mxu0 %v303
    %2822 = vmatpush1.msra.mxu0 %v302
    %2823 = vmatprep.subr.mxu0 %v299
    %2824 = vmatpush1.msra.mxu0 %v298
    %2825 = vmatprep.subr.mxu0 %v295
    %2826 = vmatpush1.msra.mxu0 %v294
    %2827 = vmatprep.subr.mxu0 %v291
    %2828 = vmatpush1.msra.mxu0 %v290
    %2829 = vmatprep.subr.mxu0 %v287
    %2830 = vmatpush1.msra.mxu0 %v286
    %2831 = vmatprep.subr.mxu0 %v283
    %2832 = vmatpush1.msra.mxu0 %v282
    %2833 = vmatprep.subr.mxu0 %v279
    %2834 = vmatpush1.msra.mxu0 %v278
    %2835 = vmatprep.subr.mxu0 %v275
    %2836 = vmatpush1.msra.mxu0 %v274
    %2837 = vmatprep.subr.mxu0 %v271
    %2838 = vmatpush1.msra.mxu0 %v270
    %2839 = vmatprep.subr.mxu0 %v395
    %2840 = vmatpush2.msra.mxu0 %v394
    %2841 = vmatprep.subr.mxu0 %v391
    %2842 = vmatpush2.msra.mxu0 %v390
    %2843 = vmatprep.subr.mxu0 %v387
    %2844 = vmatpush2.msra.mxu0 %v386
    %2845 = vmatprep.subr.mxu0 %v383
    %2846 = vmatpush2.msra.mxu0 %v382
    %2847 = vmatprep.subr.mxu0 %v379
    %2848 = vmatpush2.msra.mxu0 %v378
    %2849 = vmatprep.subr.mxu0 %v375
    %2850 = vmatpush2.msra.mxu0 %v374
    %2851 = vmatprep.subr.mxu0 %v371
    %2852 = vmatpush2.msra.mxu0 %v370
    %2853 = vmatprep.subr.mxu0 %v367
    %2854 = vmatpush2.msra.mxu0 %v366
    %2855 = vmatprep.subr.mxu0 %v363
    %2856 = vmatpush2.msra.mxu0 %v362
    %2857 = vmatprep.subr.mxu0 %v359
    %2858 = vmatpush2.msra.mxu0 %v358
    %2859 = vmatprep.subr.mxu0 %v355
    %2860 = vmatpush2.msra.mxu0 %v354
    %2861 = vmatprep.subr.mxu0 %v351
    %2862 = vmatpush2.msra.mxu0 %v350
    %2863 = vmatprep.subr.mxu0 %v347
    %2864 = vmatpush2.msra.mxu0 %v346
    %2865 = vmatprep.subr.mxu0 %v343
    %2866 = vmatpush2.msra.mxu0 %v342
    %2867 = vmatprep.subr.mxu0 %v339
    %2868 = vmatpush2.msra.mxu0 %v338
    %2869 = vmatprep.subr.mxu0 %v335
    %2870 = vmatpush2.msra.mxu0 %v334
    %2871 = vmatprep.mubr.f32.mxu0 %v2677
    %2872 = vmatmul.mubr.f32.gmra.mxu0 %v2806
    %v2873 = vpop.f32.mrf.mxu0
    %v2874 = vadd.f32 %v2196, %v2873
    %v2875 = vpop.f32.mrf.mxu0
    %v2876 = vadd.f32 %v2200, %v2875
    %2877 = vdwg.mxu0
    %2878 = vmatprep.subr.mxu0 %v333
    %2879 = vmatpush1.msra.mxu0 %v332
    %2880 = vmatprep.subr.mxu0 %v329
    %2881 = vmatpush1.msra.mxu0 %v328
    %2882 = vmatprep.subr.mxu0 %v325
    %2883 = vmatpush1.msra.mxu0 %v324
    %2884 = vmatprep.subr.mxu0 %v321
    %2885 = vmatpush1.msra.mxu0 %v320
    %2886 = vmatprep.subr.mxu0 %v317
    %2887 = vmatpush1.msra.mxu0 %v316
    %2888 = vmatprep.subr.mxu0 %v313
    %2889 = vmatpush1.msra.mxu0 %v312
    %2890 = vmatprep.subr.mxu0 %v309
    %2891 = vmatpush1.msra.mxu0 %v308
    %2892 = vmatprep.subr.mxu0 %v305
    %2893 = vmatpush1.msra.mxu0 %v304
    %2894 = vmatprep.subr.mxu0 %v301
    %2895 = vmatpush1.msra.mxu0 %v300
    %2896 = vmatprep.subr.mxu0 %v297
    %2897 = vmatpush1.msra.mxu0 %v296
    %2898 = vmatprep.subr.mxu0 %v293
    %2899 = vmatpush1.msra.mxu0 %v292
    %2900 = vmatprep.subr.mxu0 %v289
    %2901 = vmatpush1.msra.mxu0 %v288
    %2902 = vmatprep.subr.mxu0 %v285
    %2903 = vmatpush1.msra.mxu0 %v284
    %2904 = vmatprep.subr.mxu0 %v281
    %2905 = vmatpush1.msra.mxu0 %v280
    %2906 = vmatprep.subr.mxu0 %v277
    %2907 = vmatpush1.msra.mxu0 %v276
    %2908 = vmatprep.subr.mxu0 %v273
    %2909 = vmatpush1.msra.mxu0 %v272
    %2910 = vmatprep.subr.mxu0 %v397
    %2911 = vmatpush2.msra.mxu0 %v396
    %2912 = vmatprep.subr.mxu0 %v393
    %2913 = vmatpush2.msra.mxu0 %v392
    %2914 = vmatprep.subr.mxu0 %v389
    %2915 = vmatpush2.msra.mxu0 %v388
    %2916 = vmatprep.subr.mxu0 %v385
    %2917 = vmatpush2.msra.mxu0 %v384
    %2918 = vmatprep.subr.mxu0 %v381
    %2919 = vmatpush2.msra.mxu0 %v380
    %2920 = vmatprep.subr.mxu0 %v377
    %2921 = vmatpush2.msra.mxu0 %v376
    %2922 = vmatprep.subr.mxu0 %v373
    %2923 = vmatpush2.msra.mxu0 %v372
    %2924 = vmatprep.subr.mxu0 %v369
    %2925 = vmatpush2.msra.mxu0 %v368
    %2926 = vmatprep.subr.mxu0 %v365
    %2927 = vmatpush2.msra.mxu0 %v364
    %2928 = vmatprep.subr.mxu0 %v361
    %2929 = vmatpush2.msra.mxu0 %v360
    %2930 = vmatprep.subr.mxu0 %v357
    %2931 = vmatpush2.msra.mxu0 %v356
    %2932 = vmatprep.subr.mxu0 %v353
    %2933 = vmatpush2.msra.mxu0 %v352
    %2934 = vmatprep.subr.mxu0 %v349
    %2935 = vmatpush2.msra.mxu0 %v348
    %2936 = vmatprep.subr.mxu0 %v345
    %2937 = vmatpush2.msra.mxu0 %v344
    %2938 = vmatprep.subr.mxu0 %v341
    %2939 = vmatpush2.msra.mxu0 %v340
    %2940 = vmatprep.subr.mxu0 %v337
    %2941 = vmatpush2.msra.mxu0 %v336
    %2942 = vmatprep.mubr.f32.mxu0 %v2677
    %2943 = vmatmul.mubr.f32.gmra.mxu0 %v2806
    %v2944 = vpop.f32.mrf.mxu0
    %v2945 = vadd.f32 %v2204, %v2944
    %v2946 = vpop.f32.mrf.mxu0
    %v2947 = vadd.f32 %v2208, %v2946
    %2948 = vdwg.mxu0
    %v2949 = vxor.u32 %v2874, 2147483648
    %v2950 = vxor.u32 %v2876, 2147483648
    %v2951 = vxor.u32 %v2945, 2147483648
    %v2952 = vmul.f32 %v2949, 1.442695
    %v2953 = vpow.pop %v2952
    %v2954 = vmul.f32 %v2950, 1.442695
    %v2955 = vpow.pop %v2954
    %v2956 = vmul.f32 %v2951, 1.442695
    %v2957 = vpow.pop %v2956
    %v2958 = vadd.f32 %v2953, 1.0
    %v2959 = vadd.f32 %v2955, 1.0
    %v2960 = vadd.f32 %v2957, 1.0
    %v2961 = vrcp.pop %v2958
    %v2962 = vmul.f32 1.0, %v2961
    %v2963 = vrcp.pop %v2959
    %v2964 = vmul.f32 1.0, %v2963
    %v2965 = vrcp.pop %v2960
    %v2966 = vmul.f32 1.0, %v2965
    %v2967 = vtanh.pop %v2947
    %v2968 = vmul.f32 %v2964, %v2675
    %v2969 = vmul.f32 %v2962, %v2967
    %v2970 = vadd.f32 %v2968, %v2969
    %v2971 = vtanh.pop %v2970
    %v2972 = vmul.f32 %v2966, %v2971
    %2973 = vmatprep.subr.mxu0 0.0
    %2974 = vmatpush1.msra.mxu0 %v414
    %2975 = vmatprep.subr.mxu0 0.0
    %2976 = vmatpush1.msra.mxu0 %v413
    %2977 = vmatprep.subr.mxu0 0.0
    %2978 = vmatpush1.msra.mxu0 %v412
    %2979 = vmatprep.subr.mxu0 0.0
    %2980 = vmatpush1.msra.mxu0 %v411
    %2981 = vmatprep.subr.mxu0 0.0
    %2982 = vmatpush1.msra.mxu0 %v410
    %2983 = vmatprep.subr.mxu0 0.0
    %2984 = vmatpush1.msra.mxu0 %v409
    %2985 = vmatprep.subr.mxu0 0.0
    %2986 = vmatpush1.msra.mxu0 %v408
    %2987 = vmatprep.subr.mxu0 0.0
    %2988 = vmatpush1.msra.mxu0 %v407
    %2989 = vmatprep.subr.mxu0 0.0
    %2990 = vmatpush1.msra.mxu0 %v406
    %2991 = vmatprep.subr.mxu0 0.0
    %2992 = vmatpush1.msra.mxu0 %v405
    %2993 = vmatprep.subr.mxu0 0.0
    %2994 = vmatpush1.msra.mxu0 %v404
    %2995 = vmatprep.subr.mxu0 0.0
    %2996 = vmatpush1.msra.mxu0 %v403
    %2997 = vmatprep.subr.mxu0 0.0
    %2998 = vmatpush1.msra.mxu0 %v402
    %2999 = vmatprep.subr.mxu0 0.0
    %3000 = vmatpush1.msra.mxu0 %v401
    %3001 = vmatprep.subr.mxu0 0.0
    %3002 = vmatpush1.msra.mxu0 %v400
    %3003 = vmatprep.subr.mxu0 0.0
    %3004 = vmatpush1.msra.mxu0 %v399
    %3005 = vmatprep.subr.mxu0 0.0
    %3006 = vmatpush2.msra.mxu0 0.0
    %3007 = vmatprep.subr.mxu0 0.0
    %3008 = vmatpush2.msra.mxu0 0.0
    %3009 = vmatprep.subr.mxu0 0.0
    %3010 = vmatpush2.msra.mxu0 0.0
    %3011 = vmatprep.subr.mxu0 0.0
    %3012 = vmatpush2.msra.mxu0 0.0
    %3013 = vmatprep.subr.mxu0 0.0
    %3014 = vmatpush2.msra.mxu0 0.0
    %3015 = vmatprep.subr.mxu0 0.0
    %3016 = vmatpush2.msra.mxu0 0.0
    %3017 = vmatprep.subr.mxu0 0.0
    %3018 = vmatpush2.msra.mxu0 0.0
    %3019 = vmatprep.subr.mxu0 0.0
    %3020 = vmatpush2.msra.mxu0 0.0
    %3021 = vmatprep.subr.mxu0 0.0
    %3022 = vmatpush2.msra.mxu0 0.0
    %3023 = vmatprep.subr.mxu0 0.0
    %3024 = vmatpush2.msra.mxu0 0.0
    %3025 = vmatprep.subr.mxu0 0.0
    %3026 = vmatpush2.msra.mxu0 0.0
    %3027 = vmatprep.subr.mxu0 0.0
    %3028 = vmatpush2.msra.mxu0 0.0
    %3029 = vmatprep.subr.mxu0 0.0
    %3030 = vmatpush2.msra.mxu0 0.0
    %3031 = vmatprep.subr.mxu0 0.0
    %3032 = vmatpush2.msra.mxu0 0.0
    %3033 = vmatprep.subr.mxu0 0.0
    %3034 = vmatpush2.msra.mxu0 0.0
    %3035 = vmatprep.subr.mxu0 0.0
    %3036 = vmatpush2.msra.mxu0 0.0
    %3037 = vmatprep.mubr.f32.mxu0 0.0
    %3038 = vmatmul.mubr.f32.gmra.mxu0 %v2972
    %v3039 = vpop.f32.mrf.mxu0
    %v3040 = vadd.f32 %v2383, %v3039
    %v3041 = vpop.f32.mrf.mxu0
    %3042 = vdwg.mxu0
    %3043 = vmax.xlane.f32.xlu0 %v3040
    %v3044 = vpop.xlane.xlu0 %3043
    %vm3045 = vcmp.eq.f32.partialorder %v3040, %v3044
    %v3046 = vsel %vm3045, %v417, 128
    %v3047 = vand.u32 %v3046, 65535
    %v3048 = vshra.s32 %v3046, 16
    %v3049 = vcvt.s32.f32 %v3047
    %v3050 = vcvt.s32.f32 %v3048
    %3051 = vmin.xlane.f32.xlu0 %v3050
    %v3052 = vpop.xlane.xlu0 %3051
    %vm3053 = vcmp.eq.f32.partialorder %v3050, %v3052
    %v3054 = vsel %vm3053, %v3049, inf
    %3055 = vmin.xlane.f32.xlu0 %v3054
    %v3056 = vpop.xlane.xlu0 %3055
    %v3057 = vcvt.f32.s32 %v3056
    %v3058 = vcvt.f32.s32 %v3052
    %v3059 = vshll.u32 %v3058, 16
    %v3060 = vadd.s32 %v3059, %v3057
    %v3061 = vcvt.s32.f32 %v3060
    %v3062 = vsel %vm2795, 1.0, %v2767
    %vm3063 = vcmp.gt.f32.partialorder %v3062, 0.5
    %v3064 = vsel %vm3063, -inf, %v3040
    %3065 = vmax.xlane.f32.xlu0 %v3064
    %v3066 = vpop.xlane.xlu0 %3065
    %vm3067 = vcmp.eq.f32.partialorder %v3064, %v3066
    %v3068 = vsel %vm3067, %v417, 128
    %v3069 = vand.u32 %v3068, 65535
    %v3070 = vshra.s32 %v3068, 16
    %v3071 = vcvt.s32.f32 %v3069
    %v3072 = vcvt.s32.f32 %v3070
    %3073 = vmin.xlane.f32.xlu0 %v3072
    %v3074 = vpop.xlane.xlu0 %3073
    %vm3075 = vcmp.eq.f32.partialorder %v3072, %v3074
    %v3076 = vsel %vm3075, %v3071, inf
    %3077 = vmin.xlane.f32.xlu0 %v3076
    %v3078 = vpop.xlane.xlu0 %3077
    %v3079 = vcvt.f32.s32 %v3078
    %v3080 = vcvt.f32.s32 %v3074
    %v3081 = vshll.u32 %v3080, 16
    %v3082 = vadd.s32 %v3081, %v3079
    %v3083 = vsub.f32 %v3064, %v3066
    %v3084 = vmul.f32 %v3083, 1.442695
    %v3085 = vpow.pop %v3084
    %3086 = vadd.xlane.f32.xlu0 %v3085
    %v3087 = vpop.xlane.xlu0 %3086
    %v3088 = vlog2.pop %v3087
    %v3089 = vmul.f32 %v3088, 0.6931472
    %vm3090 = vcmp.eq.s32.totalorder %v417, %v3082
    %v3091 = vsub.f32 %v3083, %v3089
    %v3092 = vsel %vm3090, %v3091, 0.0
    %3093 = vadd.xlane.f32.xlu0 %v3092
    %v3094 = vpop.xlane.xlu0 %3093
    %vm3095 = vcmp.eq.s32.totalorder %v417, 2
    %v3096 = vcvt.s32.f32 %v3082
    %v3097 = vsel %vm3095, %v3096, %v2802
    %v3098 = vsel %vm3095, %v3094, %v2803
    %v3099 = vmul.f32 %v3061, %v2182
    %v3100 = vadd.f32 %v3099, %v2188
    %v3101 = vmax.f32 %v3100, 0.0
    %3102 = vmatprep.subr.mxu0 %v331
    %3103 = vmatpush1.msra.mxu0 %v330
    %3104 = vmatprep.subr.mxu0 %v327
    %3105 = vmatpush1.msra.mxu0 %v326
    %3106 = vmatprep.subr.mxu0 %v323
    %3107 = vmatpush1.msra.mxu0 %v322
    %3108 = vmatprep.subr.mxu0 %v319
    %3109 = vmatpush1.msra.mxu0 %v318
    %3110 = vmatprep.subr.mxu0 %v315
    %3111 = vmatpush1.msra.mxu0 %v314
    %3112 = vmatprep.subr.mxu0 %v311
    %3113 = vmatpush1.msra.mxu0 %v310
    %3114 = vmatprep.subr.mxu0 %v307
    %3115 = vmatpush1.msra.mxu0 %v306
    %3116 = vmatprep.subr.mxu0 %v303
    %3117 = vmatpush1.msra.mxu0 %v302
    %3118 = vmatprep.subr.mxu0 %v299
    %3119 = vmatpush1.msra.mxu0 %v298
    %3120 = vmatprep.subr.mxu0 %v295
    %3121 = vmatpush1.msra.mxu0 %v294
    %3122 = vmatprep.subr.mxu0 %v291
    %3123 = vmatpush1.msra.mxu0 %v290
    %3124 = vmatprep.subr.mxu0 %v287
    %3125 = vmatpush1.msra.mxu0 %v286
    %3126 = vmatprep.subr.mxu0 %v283
    %3127 = vmatpush1.msra.mxu0 %v282
    %3128 = vmatprep.subr.mxu0 %v279
    %3129 = vmatpush1.msra.mxu0 %v278
    %3130 = vmatprep.subr.mxu0 %v275
    %3131 = vmatpush1.msra.mxu0 %v274
    %3132 = vmatprep.subr.mxu0 %v271
    %3133 = vmatpush1.msra.mxu0 %v270
    %3134 = vmatprep.subr.mxu0 %v395
    %3135 = vmatpush2.msra.mxu0 %v394
    %3136 = vmatprep.subr.mxu0 %v391
    %3137 = vmatpush2.msra.mxu0 %v390
    %3138 = vmatprep.subr.mxu0 %v387
    %3139 = vmatpush2.msra.mxu0 %v386
    %3140 = vmatprep.subr.mxu0 %v383
    %3141 = vmatpush2.msra.mxu0 %v382
    %3142 = vmatprep.subr.mxu0 %v379
    %3143 = vmatpush2.msra.mxu0 %v378
    %3144 = vmatprep.subr.mxu0 %v375
    %3145 = vmatpush2.msra.mxu0 %v374
    %3146 = vmatprep.subr.mxu0 %v371
    %3147 = vmatpush2.msra.mxu0 %v370
    %3148 = vmatprep.subr.mxu0 %v367
    %3149 = vmatpush2.msra.mxu0 %v366
    %3150 = vmatprep.subr.mxu0 %v363
    %3151 = vmatpush2.msra.mxu0 %v362
    %3152 = vmatprep.subr.mxu0 %v359
    %3153 = vmatpush2.msra.mxu0 %v358
    %3154 = vmatprep.subr.mxu0 %v355
    %3155 = vmatpush2.msra.mxu0 %v354
    %3156 = vmatprep.subr.mxu0 %v351
    %3157 = vmatpush2.msra.mxu0 %v350
    %3158 = vmatprep.subr.mxu0 %v347
    %3159 = vmatpush2.msra.mxu0 %v346
    %3160 = vmatprep.subr.mxu0 %v343
    %3161 = vmatpush2.msra.mxu0 %v342
    %3162 = vmatprep.subr.mxu0 %v339
    %3163 = vmatpush2.msra.mxu0 %v338
    %3164 = vmatprep.subr.mxu0 %v335
    %3165 = vmatpush2.msra.mxu0 %v334
    %3166 = vmatprep.mubr.f32.mxu0 %v2972
    %3167 = vmatmul.mubr.f32.gmra.mxu0 %v3101
    %v3168 = vpop.f32.mrf.mxu0
    %v3169 = vadd.f32 %v2196, %v3168
    %v3170 = vpop.f32.mrf.mxu0
    %v3171 = vadd.f32 %v2200, %v3170
    %3172 = vdwg.mxu0
    %3173 = vmatprep.subr.mxu0 %v333
    %3174 = vmatpush1.msra.mxu0 %v332
    %3175 = vmatprep.subr.mxu0 %v329
    %3176 = vmatpush1.msra.mxu0 %v328
    %3177 = vmatprep.subr.mxu0 %v325
    %3178 = vmatpush1.msra.mxu0 %v324
    %3179 = vmatprep.subr.mxu0 %v321
    %3180 = vmatpush1.msra.mxu0 %v320
    %3181 = vmatprep.subr.mxu0 %v317
    %3182 = vmatpush1.msra.mxu0 %v316
    %3183 = vmatprep.subr.mxu0 %v313
    %3184 = vmatpush1.msra.mxu0 %v312
    %3185 = vmatprep.subr.mxu0 %v309
    %3186 = vmatpush1.msra.mxu0 %v308
    %3187 = vmatprep.subr.mxu0 %v305
    %3188 = vmatpush1.msra.mxu0 %v304
    %3189 = vmatprep.subr.mxu0 %v301
    %3190 = vmatpush1.msra.mxu0 %v300
    %3191 = vmatprep.subr.mxu0 %v297
    %3192 = vmatpush1.msra.mxu0 %v296
    %3193 = vmatprep.subr.mxu0 %v293
    %3194 = vmatpush1.msra.mxu0 %v292
    %3195 = vmatprep.subr.mxu0 %v289
    %3196 = vmatpush1.msra.mxu0 %v288
    %3197 = vmatprep.subr.mxu0 %v285
    %3198 = vmatpush1.msra.mxu0 %v284
    %3199 = vmatprep.subr.mxu0 %v281
    %3200 = vmatpush1.msra.mxu0 %v280
    %3201 = vmatprep.subr.mxu0 %v277
    %3202 = vmatpush1.msra.mxu0 %v276
    %3203 = vmatprep.subr.mxu0 %v273
    %3204 = vmatpush1.msra.mxu0 %v272
    %3205 = vmatprep.subr.mxu0 %v397
    %3206 = vmatpush2.msra.mxu0 %v396
    %3207 = vmatprep.subr.mxu0 %v393
    %3208 = vmatpush2.msra.mxu0 %v392
    %3209 = vmatprep.subr.mxu0 %v389
    %3210 = vmatpush2.msra.mxu0 %v388
    %3211 = vmatprep.subr.mxu0 %v385
    %3212 = vmatpush2.msra.mxu0 %v384
    %3213 = vmatprep.subr.mxu0 %v381
    %3214 = vmatpush2.msra.mxu0 %v380
    %3215 = vmatprep.subr.mxu0 %v377
    %3216 = vmatpush2.msra.mxu0 %v376
    %3217 = vmatprep.subr.mxu0 %v373
    %3218 = vmatpush2.msra.mxu0 %v372
    %3219 = vmatprep.subr.mxu0 %v369
    %3220 = vmatpush2.msra.mxu0 %v368
    %3221 = vmatprep.subr.mxu0 %v365
    %3222 = vmatpush2.msra.mxu0 %v364
    %3223 = vmatprep.subr.mxu0 %v361
    %3224 = vmatpush2.msra.mxu0 %v360
    %3225 = vmatprep.subr.mxu0 %v357
    %3226 = vmatpush2.msra.mxu0 %v356
    %3227 = vmatprep.subr.mxu0 %v353
    %3228 = vmatpush2.msra.mxu0 %v352
    %3229 = vmatprep.subr.mxu0 %v349
    %3230 = vmatpush2.msra.mxu0 %v348
    %3231 = vmatprep.subr.mxu0 %v345
    %3232 = vmatpush2.msra.mxu0 %v344
    %3233 = vmatprep.subr.mxu0 %v341
    %3234 = vmatpush2.msra.mxu0 %v340
    %3235 = vmatprep.subr.mxu0 %v337
    %3236 = vmatpush2.msra.mxu0 %v336
    %3237 = vmatprep.mubr.f32.mxu0 %v2972
    %3238 = vmatmul.mubr.f32.gmra.mxu0 %v3101
    %v3239 = vpop.f32.mrf.mxu0
    %v3240 = vadd.f32 %v2204, %v3239
    %v3241 = vpop.f32.mrf.mxu0
    %v3242 = vadd.f32 %v2208, %v3241
    %3243 = vdwg.mxu0
    %v3244 = vxor.u32 %v3169, 2147483648
    %v3245 = vxor.u32 %v3171, 2147483648
    %v3246 = vxor.u32 %v3240, 2147483648
    %v3247 = vmul.f32 %v3244, 1.442695
    %v3248 = vpow.pop %v3247
    %v3249 = vmul.f32 %v3245, 1.442695
    %v3250 = vpow.pop %v3249
    %v3251 = vmul.f32 %v3246, 1.442695
    %v3252 = vpow.pop %v3251
    %v3253 = vadd.f32 %v3248, 1.0
    %v3254 = vadd.f32 %v3250, 1.0
    %v3255 = vadd.f32 %v3252, 1.0
    %v3256 = vrcp.pop %v3253
    %v3257 = vmul.f32 1.0, %v3256
    %v3258 = vrcp.pop %v3254
    %v3259 = vmul.f32 1.0, %v3258
    %v3260 = vrcp.pop %v3255
    %v3261 = vmul.f32 1.0, %v3260
    %v3262 = vtanh.pop %v3242
    %v3263 = vmul.f32 %v3259, %v2970
    %v3264 = vmul.f32 %v3257, %v3262
    %v3265 = vadd.f32 %v3263, %v3264
    %v3266 = vtanh.pop %v3265
    %v3267 = vmul.f32 %v3261, %v3266
    %3268 = vmatprep.subr.mxu0 0.0
    %3269 = vmatpush1.msra.mxu0 %v414
    %3270 = vmatprep.subr.mxu0 0.0
    %3271 = vmatpush1.msra.mxu0 %v413
    %3272 = vmatprep.subr.mxu0 0.0
    %3273 = vmatpush1.msra.mxu0 %v412
    %3274 = vmatprep.subr.mxu0 0.0
    %3275 = vmatpush1.msra.mxu0 %v411
    %3276 = vmatprep.subr.mxu0 0.0
    %3277 = vmatpush1.msra.mxu0 %v410
    %3278 = vmatprep.subr.mxu0 0.0
    %3279 = vmatpush1.msra.mxu0 %v409
    %3280 = vmatprep.subr.mxu0 0.0
    %3281 = vmatpush1.msra.mxu0 %v408
    %3282 = vmatprep.subr.mxu0 0.0
    %3283 = vmatpush1.msra.mxu0 %v407
    %3284 = vmatprep.subr.mxu0 0.0
    %3285 = vmatpush1.msra.mxu0 %v406
    %3286 = vmatprep.subr.mxu0 0.0
    %3287 = vmatpush1.msra.mxu0 %v405
    %3288 = vmatprep.subr.mxu0 0.0
    %3289 = vmatpush1.msra.mxu0 %v404
    %3290 = vmatprep.subr.mxu0 0.0
    %3291 = vmatpush1.msra.mxu0 %v403
    %3292 = vmatprep.subr.mxu0 0.0
    %3293 = vmatpush1.msra.mxu0 %v402
    %3294 = vmatprep.subr.mxu0 0.0
    %3295 = vmatpush1.msra.mxu0 %v401
    %3296 = vmatprep.subr.mxu0 0.0
    %3297 = vmatpush1.msra.mxu0 %v400
    %3298 = vmatprep.subr.mxu0 0.0
    %3299 = vmatpush1.msra.mxu0 %v399
    %3300 = vmatprep.subr.mxu0 0.0
    %3301 = vmatpush2.msra.mxu0 0.0
    %3302 = vmatprep.subr.mxu0 0.0
    %3303 = vmatpush2.msra.mxu0 0.0
    %3304 = vmatprep.subr.mxu0 0.0
    %3305 = vmatpush2.msra.mxu0 0.0
    %3306 = vmatprep.subr.mxu0 0.0
    %3307 = vmatpush2.msra.mxu0 0.0
    %3308 = vmatprep.subr.mxu0 0.0
    %3309 = vmatpush2.msra.mxu0 0.0
    %3310 = vmatprep.subr.mxu0 0.0
    %3311 = vmatpush2.msra.mxu0 0.0
    %3312 = vmatprep.subr.mxu0 0.0
    %3313 = vmatpush2.msra.mxu0 0.0
    %3314 = vmatprep.subr.mxu0 0.0
    %3315 = vmatpush2.msra.mxu0 0.0
    %3316 = vmatprep.subr.mxu0 0.0
    %3317 = vmatpush2.msra.mxu0 0.0
    %3318 = vmatprep.subr.mxu0 0.0
    %3319 = vmatpush2.msra.mxu0 0.0
    %3320 = vmatprep.subr.mxu0 0.0
    %3321 = vmatpush2.msra.mxu0 0.0
    %3322 = vmatprep.subr.mxu0 0.0
    %3323 = vmatpush2.msra.mxu0 0.0
    %3324 = vmatprep.subr.mxu0 0.0
    %3325 = vmatpush2.msra.mxu0 0.0
    %3326 = vmatprep.subr.mxu0 0.0
    %3327 = vmatpush2.msra.mxu0 0.0
    %3328 = vmatprep.subr.mxu0 0.0
    %3329 = vmatpush2.msra.mxu0 0.0
    %3330 = vmatprep.subr.mxu0 0.0
    %3331 = vmatpush2.msra.mxu0 0.0
    %3332 = vmatprep.mubr.f32.mxu0 0.0
    %3333 = vmatmul.mubr.f32.gmra.mxu0 %v3267
    %v3334 = vpop.f32.mrf.mxu0
    %v3335 = vadd.f32 %v2383, %v3334
    %v3336 = vpop.f32.mrf.mxu0
    %3337 = vdwg.mxu0
    %3338 = vmax.xlane.f32.xlu0 %v3335
    %v3339 = vpop.xlane.xlu0 %3338
    %vm3340 = vcmp.eq.f32.partialorder %v3335, %v3339
    %v3341 = vsel %vm3340, %v417, 128
    %v3342 = vand.u32 %v3341, 65535
    %v3343 = vshra.s32 %v3341, 16
    %v3344 = vcvt.s32.f32 %v3342
    %v3345 = vcvt.s32.f32 %v3343
    %3346 = vmin.xlane.f32.xlu0 %v3345
    %v3347 = vpop.xlane.xlu0 %3346
    %vm3348 = vcmp.eq.f32.partialorder %v3345, %v3347
    %v3349 = vsel %vm3348, %v3344, inf
    %3350 = vmin.xlane.f32.xlu0 %v3349
    %v3351 = vpop.xlane.xlu0 %3350
    %v3352 = vcvt.f32.s32 %v3351
    %v3353 = vcvt.f32.s32 %v3347
    %v3354 = vshll.u32 %v3353, 16
    %v3355 = vadd.s32 %v3354, %v3352
    %v3356 = vcvt.s32.f32 %v3355
    %v3357 = vsel %vm3090, 1.0, %v3062
    %vm3358 = vcmp.gt.f32.partialorder %v3357, 0.5
    %v3359 = vsel %vm3358, -inf, %v3335
    %3360 = vmax.xlane.f32.xlu0 %v3359
    %v3361 = vpop.xlane.xlu0 %3360
    %vm3362 = vcmp.eq.f32.partialorder %v3359, %v3361
    %v3363 = vsel %vm3362, %v417, 128
    %v3364 = vand.u32 %v3363, 65535
    %v3365 = vshra.s32 %v3363, 16
    %v3366 = vcvt.s32.f32 %v3364
    %v3367 = vcvt.s32.f32 %v3365
    %3368 = vmin.xlane.f32.xlu0 %v3367
    %v3369 = vpop.xlane.xlu0 %3368
    %vm3370 = vcmp.eq.f32.partialorder %v3367, %v3369
    %v3371 = vsel %vm3370, %v3366, inf
    %3372 = vmin.xlane.f32.xlu0 %v3371
    %v3373 = vpop.xlane.xlu0 %3372
    %v3374 = vcvt.f32.s32 %v3373
    %v3375 = vcvt.f32.s32 %v3369
    %v3376 = vshll.u32 %v3375, 16
    %v3377 = vadd.s32 %v3376, %v3374
    %v3378 = vsub.f32 %v3359, %v3361
    %v3379 = vmul.f32 %v3378, 1.442695
    %v3380 = vpow.pop %v3379
    %3381 = vadd.xlane.f32.xlu0 %v3380
    %v3382 = vpop.xlane.xlu0 %3381
    %v3383 = vlog2.pop %v3382
    %v3384 = vmul.f32 %v3383, 0.6931472
    %vm3385 = vcmp.eq.s32.totalorder %v417, %v3377
    %v3386 = vsub.f32 %v3378, %v3384
    %v3387 = vsel %vm3385, %v3386, 0.0
    %3388 = vadd.xlane.f32.xlu0 %v3387
    %v3389 = vpop.xlane.xlu0 %3388
    %vm3390 = vcmp.eq.s32.totalorder %v417, 3
    %v3391 = vcvt.s32.f32 %v3377
    %v3392 = vsel %vm3390, %v3391, %v3097
    %v3393 = vsel %vm3390, %v3389, %v3098
    %v3394 = vmul.f32 %v3356, %v2182
    %v3395 = vadd.f32 %v3394, %v2188
    %v3396 = vmax.f32 %v3395, 0.0
    %3397 = vmatprep.subr.mxu0 %v331
    %3398 = vmatpush1.msra.mxu0 %v330
    %3399 = vmatprep.subr.mxu0 %v327
    %3400 = vmatpush1.msra.mxu0 %v326
    %3401 = vmatprep.subr.mxu0 %v323
    %3402 = vmatpush1.msra.mxu0 %v322
    %3403 = vmatprep.subr.mxu0 %v319
    %3404 = vmatpush1.msra.mxu0 %v318
    %3405 = vmatprep.subr.mxu0 %v315
    %3406 = vmatpush1.msra.mxu0 %v314
    %3407 = vmatprep.subr.mxu0 %v311
    %3408 = vmatpush1.msra.mxu0 %v310
    %3409 = vmatprep.subr.mxu0 %v307
    %3410 = vmatpush1.msra.mxu0 %v306
    %3411 = vmatprep.subr.mxu0 %v303
    %3412 = vmatpush1.msra.mxu0 %v302
    %3413 = vmatprep.subr.mxu0 %v299
    %3414 = vmatpush1.msra.mxu0 %v298
    %3415 = vmatprep.subr.mxu0 %v295
    %3416 = vmatpush1.msra.mxu0 %v294
    %3417 = vmatprep.subr.mxu0 %v291
    %3418 = vmatpush1.msra.mxu0 %v290
    %3419 = vmatprep.subr.mxu0 %v287
    %3420 = vmatpush1.msra.mxu0 %v286
    %3421 = vmatprep.subr.mxu0 %v283
    %3422 = vmatpush1.msra.mxu0 %v282
    %3423 = vmatprep.subr.mxu0 %v279
    %3424 = vmatpush1.msra.mxu0 %v278
    %3425 = vmatprep.subr.mxu0 %v275
    %3426 = vmatpush1.msra.mxu0 %v274
    %3427 = vmatprep.subr.mxu0 %v271
    %3428 = vmatpush1.msra.mxu0 %v270
    %3429 = vmatprep.subr.mxu0 %v395
    %3430 = vmatpush2.msra.mxu0 %v394
    %3431 = vmatprep.subr.mxu0 %v391
    %3432 = vmatpush2.msra.mxu0 %v390
    %3433 = vmatprep.subr.mxu0 %v387
    %3434 = vmatpush2.msra.mxu0 %v386
    %3435 = vmatprep.subr.mxu0 %v383
    %3436 = vmatpush2.msra.mxu0 %v382
    %3437 = vmatprep.subr.mxu0 %v379
    %3438 = vmatpush2.msra.mxu0 %v378
    %3439 = vmatprep.subr.mxu0 %v375
    %3440 = vmatpush2.msra.mxu0 %v374
    %3441 = vmatprep.subr.mxu0 %v371
    %3442 = vmatpush2.msra.mxu0 %v370
    %3443 = vmatprep.subr.mxu0 %v367
    %3444 = vmatpush2.msra.mxu0 %v366
    %3445 = vmatprep.subr.mxu0 %v363
    %3446 = vmatpush2.msra.mxu0 %v362
    %3447 = vmatprep.subr.mxu0 %v359
    %3448 = vmatpush2.msra.mxu0 %v358
    %3449 = vmatprep.subr.mxu0 %v355
    %3450 = vmatpush2.msra.mxu0 %v354
    %3451 = vmatprep.subr.mxu0 %v351
    %3452 = vmatpush2.msra.mxu0 %v350
    %3453 = vmatprep.subr.mxu0 %v347
    %3454 = vmatpush2.msra.mxu0 %v346
    %3455 = vmatprep.subr.mxu0 %v343
    %3456 = vmatpush2.msra.mxu0 %v342
    %3457 = vmatprep.subr.mxu0 %v339
    %3458 = vmatpush2.msra.mxu0 %v338
    %3459 = vmatprep.subr.mxu0 %v335
    %3460 = vmatpush2.msra.mxu0 %v334
    %3461 = vmatprep.mubr.f32.mxu0 %v3267
    %3462 = vmatmul.mubr.f32.gmra.mxu0 %v3396
    %v3463 = vpop.f32.mrf.mxu0
    %v3464 = vadd.f32 %v2196, %v3463
    %v3465 = vpop.f32.mrf.mxu0
    %v3466 = vadd.f32 %v2200, %v3465
    %3467 = vdwg.mxu0
    %3468 = vmatprep.subr.mxu0 %v333
    %3469 = vmatpush1.msra.mxu0 %v332
    %3470 = vmatprep.subr.mxu0 %v329
    %3471 = vmatpush1.msra.mxu0 %v328
    %3472 = vmatprep.subr.mxu0 %v325
    %3473 = vmatpush1.msra.mxu0 %v324
    %3474 = vmatprep.subr.mxu0 %v321
    %3475 = vmatpush1.msra.mxu0 %v320
    %3476 = vmatprep.subr.mxu0 %v317
    %3477 = vmatpush1.msra.mxu0 %v316
    %3478 = vmatprep.subr.mxu0 %v313
    %3479 = vmatpush1.msra.mxu0 %v312
    %3480 = vmatprep.subr.mxu0 %v309
    %3481 = vmatpush1.msra.mxu0 %v308
    %3482 = vmatprep.subr.mxu0 %v305
    %3483 = vmatpush1.msra.mxu0 %v304
    %3484 = vmatprep.subr.mxu0 %v301
    %3485 = vmatpush1.msra.mxu0 %v300
    %3486 = vmatprep.subr.mxu0 %v297
    %3487 = vmatpush1.msra.mxu0 %v296
    %3488 = vmatprep.subr.mxu0 %v293
    %3489 = vmatpush1.msra.mxu0 %v292
    %3490 = vmatprep.subr.mxu0 %v289
    %3491 = vmatpush1.msra.mxu0 %v288
    %3492 = vmatprep.subr.mxu0 %v285
    %3493 = vmatpush1.msra.mxu0 %v284
    %3494 = vmatprep.subr.mxu0 %v281
    %3495 = vmatpush1.msra.mxu0 %v280
    %3496 = vmatprep.subr.mxu0 %v277
    %3497 = vmatpush1.msra.mxu0 %v276
    %3498 = vmatprep.subr.mxu0 %v273
    %3499 = vmatpush1.msra.mxu0 %v272
    %3500 = vmatprep.subr.mxu0 %v397
    %3501 = vmatpush2.msra.mxu0 %v396
    %3502 = vmatprep.subr.mxu0 %v393
    %3503 = vmatpush2.msra.mxu0 %v392
    %3504 = vmatprep.subr.mxu0 %v389
    %3505 = vmatpush2.msra.mxu0 %v388
    %3506 = vmatprep.subr.mxu0 %v385
    %3507 = vmatpush2.msra.mxu0 %v384
    %3508 = vmatprep.subr.mxu0 %v381
    %3509 = vmatpush2.msra.mxu0 %v380
    %3510 = vmatprep.subr.mxu0 %v377
    %3511 = vmatpush2.msra.mxu0 %v376
    %3512 = vmatprep.subr.mxu0 %v373
    %3513 = vmatpush2.msra.mxu0 %v372
    %3514 = vmatprep.subr.mxu0 %v369
    %3515 = vmatpush2.msra.mxu0 %v368
    %3516 = vmatprep.subr.mxu0 %v365
    %3517 = vmatpush2.msra.mxu0 %v364
    %3518 = vmatprep.subr.mxu0 %v361
    %3519 = vmatpush2.msra.mxu0 %v360
    %3520 = vmatprep.subr.mxu0 %v357
    %3521 = vmatpush2.msra.mxu0 %v356
    %3522 = vmatprep.subr.mxu0 %v353
    %3523 = vmatpush2.msra.mxu0 %v352
    %3524 = vmatprep.subr.mxu0 %v349
    %3525 = vmatpush2.msra.mxu0 %v348
    %3526 = vmatprep.subr.mxu0 %v345
    %3527 = vmatpush2.msra.mxu0 %v344
    %3528 = vmatprep.subr.mxu0 %v341
    %3529 = vmatpush2.msra.mxu0 %v340
    %3530 = vmatprep.subr.mxu0 %v337
    %3531 = vmatpush2.msra.mxu0 %v336
    %3532 = vmatprep.mubr.f32.mxu0 %v3267
    %3533 = vmatmul.mubr.f32.gmra.mxu0 %v3396
    %v3534 = vpop.f32.mrf.mxu0
    %v3535 = vadd.f32 %v2204, %v3534
    %v3536 = vpop.f32.mrf.mxu0
    %v3537 = vadd.f32 %v2208, %v3536
    %3538 = vdwg.mxu0
    %v3539 = vxor.u32 %v3464, 2147483648
    %v3540 = vxor.u32 %v3466, 2147483648
    %v3541 = vxor.u32 %v3535, 2147483648
    %v3542 = vmul.f32 %v3539, 1.442695
    %v3543 = vpow.pop %v3542
    %v3544 = vmul.f32 %v3540, 1.442695
    %v3545 = vpow.pop %v3544
    %v3546 = vmul.f32 %v3541, 1.442695
    %v3547 = vpow.pop %v3546
    %v3548 = vadd.f32 %v3543, 1.0
    %v3549 = vadd.f32 %v3545, 1.0
    %v3550 = vadd.f32 %v3547, 1.0
    %v3551 = vrcp.pop %v3548
    %v3552 = vmul.f32 1.0, %v3551
    %v3553 = vrcp.pop %v3549
    %v3554 = vmul.f32 1.0, %v3553
    %v3555 = vrcp.pop %v3550
    %v3556 = vmul.f32 1.0, %v3555
    %v3557 = vtanh.pop %v3537
    %v3558 = vmul.f32 %v3554, %v3265
    %v3559 = vmul.f32 %v3552, %v3557
    %v3560 = vadd.f32 %v3558, %v3559
    %v3561 = vtanh.pop %v3560
    %v3562 = vmul.f32 %v3556, %v3561
    %3563 = vmatprep.subr.mxu0 0.0
    %3564 = vmatpush1.msra.mxu0 %v414
    %3565 = vmatprep.subr.mxu0 0.0
    %3566 = vmatpush1.msra.mxu0 %v413
    %3567 = vmatprep.subr.mxu0 0.0
    %3568 = vmatpush1.msra.mxu0 %v412
    %3569 = vmatprep.subr.mxu0 0.0
    %3570 = vmatpush1.msra.mxu0 %v411
    %3571 = vmatprep.subr.mxu0 0.0
    %3572 = vmatpush1.msra.mxu0 %v410
    %3573 = vmatprep.subr.mxu0 0.0
    %3574 = vmatpush1.msra.mxu0 %v409
    %3575 = vmatprep.subr.mxu0 0.0
    %3576 = vmatpush1.msra.mxu0 %v408
    %3577 = vmatprep.subr.mxu0 0.0
    %3578 = vmatpush1.msra.mxu0 %v407
    %3579 = vmatprep.subr.mxu0 0.0
    %3580 = vmatpush1.msra.mxu0 %v406
    %3581 = vmatprep.subr.mxu0 0.0
    %3582 = vmatpush1.msra.mxu0 %v405
    %3583 = vmatprep.subr.mxu0 0.0
    %3584 = vmatpush1.msra.mxu0 %v404
    %3585 = vmatprep.subr.mxu0 0.0
    %3586 = vmatpush1.msra.mxu0 %v403
    %3587 = vmatprep.subr.mxu0 0.0
    %3588 = vmatpush1.msra.mxu0 %v402
    %3589 = vmatprep.subr.mxu0 0.0
    %3590 = vmatpush1.msra.mxu0 %v401
    %3591 = vmatprep.subr.mxu0 0.0
    %3592 = vmatpush1.msra.mxu0 %v400
    %3593 = vmatprep.subr.mxu0 0.0
    %3594 = vmatpush1.msra.mxu0 %v399
    %3595 = vmatprep.subr.mxu0 0.0
    %3596 = vmatpush2.msra.mxu0 0.0
    %3597 = vmatprep.subr.mxu0 0.0
    %3598 = vmatpush2.msra.mxu0 0.0
    %3599 = vmatprep.subr.mxu0 0.0
    %3600 = vmatpush2.msra.mxu0 0.0
    %3601 = vmatprep.subr.mxu0 0.0
    %3602 = vmatpush2.msra.mxu0 0.0
    %3603 = vmatprep.subr.mxu0 0.0
    %3604 = vmatpush2.msra.mxu0 0.0
    %3605 = vmatprep.subr.mxu0 0.0
    %3606 = vmatpush2.msra.mxu0 0.0
    %3607 = vmatprep.subr.mxu0 0.0
    %3608 = vmatpush2.msra.mxu0 0.0
    %3609 = vmatprep.subr.mxu0 0.0
    %3610 = vmatpush2.msra.mxu0 0.0
    %3611 = vmatprep.subr.mxu0 0.0
    %3612 = vmatpush2.msra.mxu0 0.0
    %3613 = vmatprep.subr.mxu0 0.0
    %3614 = vmatpush2.msra.mxu0 0.0
    %3615 = vmatprep.subr.mxu0 0.0
    %3616 = vmatpush2.msra.mxu0 0.0
    %3617 = vmatprep.subr.mxu0 0.0
    %3618 = vmatpush2.msra.mxu0 0.0
    %3619 = vmatprep.subr.mxu0 0.0
    %3620 = vmatpush2.msra.mxu0 0.0
    %3621 = vmatprep.subr.mxu0 0.0
    %3622 = vmatpush2.msra.mxu0 0.0
    %3623 = vmatprep.subr.mxu0 0.0
    %3624 = vmatpush2.msra.mxu0 0.0
    %3625 = vmatprep.subr.mxu0 0.0
    %3626 = vmatpush2.msra.mxu0 0.0
    %3627 = vmatprep.mubr.f32.mxu0 0.0
    %3628 = vmatmul.mubr.f32.gmra.mxu0 %v3562
    %v3629 = vpop.f32.mrf.mxu0
    %v3630 = vadd.f32 %v2383, %v3629
    %v3631 = vpop.f32.mrf.mxu0
    %3632 = vdwg.mxu0
    %3633 = vmax.xlane.f32.xlu0 %v3630
    %v3634 = vpop.xlane.xlu0 %3633
    %vm3635 = vcmp.eq.f32.partialorder %v3630, %v3634
    %v3636 = vsel %vm3635, %v417, 128
    %v3637 = vand.u32 %v3636, 65535
    %v3638 = vshra.s32 %v3636, 16
    %v3639 = vcvt.s32.f32 %v3637
    %v3640 = vcvt.s32.f32 %v3638
    %3641 = vmin.xlane.f32.xlu0 %v3640
    %v3642 = vpop.xlane.xlu0 %3641
    %vm3643 = vcmp.eq.f32.partialorder %v3640, %v3642
    %v3644 = vsel %vm3643, %v3639, inf
    %3645 = vmin.xlane.f32.xlu0 %v3644
    %v3646 = vpop.xlane.xlu0 %3645
    %v3647 = vcvt.f32.s32 %v3646
    %v3648 = vcvt.f32.s32 %v3642
    %v3649 = vshll.u32 %v3648, 16
    %v3650 = vadd.s32 %v3649, %v3647
    %v3651 = vcvt.s32.f32 %v3650
    %v3652 = vsel %vm3385, 1.0, %v3357
    %vm3653 = vcmp.gt.f32.partialorder %v3652, 0.5
    %v3654 = vsel %vm3653, -inf, %v3630
    %3655 = vmax.xlane.f32.xlu0 %v3654
    %v3656 = vpop.xlane.xlu0 %3655
    %vm3657 = vcmp.eq.f32.partialorder %v3654, %v3656
    %v3658 = vsel %vm3657, %v417, 128
    %v3659 = vand.u32 %v3658, 65535
    %v3660 = vshra.s32 %v3658, 16
    %v3661 = vcvt.s32.f32 %v3659
    %v3662 = vcvt.s32.f32 %v3660
    %3663 = vmin.xlane.f32.xlu0 %v3662
    %v3664 = vpop.xlane.xlu0 %3663
    %vm3665 = vcmp.eq.f32.partialorder %v3662, %v3664
    %v3666 = vsel %vm3665, %v3661, inf
    %3667 = vmin.xlane.f32.xlu0 %v3666
    %v3668 = vpop.xlane.xlu0 %3667
    %v3669 = vcvt.f32.s32 %v3668
    %v3670 = vcvt.f32.s32 %v3664
    %v3671 = vshll.u32 %v3670, 16
    %v3672 = vadd.s32 %v3671, %v3669
    %v3673 = vsub.f32 %v3654, %v3656
    %v3674 = vmul.f32 %v3673, 1.442695
    %v3675 = vpow.pop %v3674
    %3676 = vadd.xlane.f32.xlu0 %v3675
    %v3677 = vpop.xlane.xlu0 %3676
    %v3678 = vlog2.pop %v3677
    %v3679 = vmul.f32 %v3678, 0.6931472
    %vm3680 = vcmp.eq.s32.totalorder %v417, %v3672
    %v3681 = vsub.f32 %v3673, %v3679
    %v3682 = vsel %vm3680, %v3681, 0.0
    %3683 = vadd.xlane.f32.xlu0 %v3682
    %v3684 = vpop.xlane.xlu0 %3683
    %vm3685 = vcmp.eq.s32.totalorder %v417, 4
    %v3686 = vcvt.s32.f32 %v3672
    %v3687 = vsel %vm3685, %v3686, %v3392
    %v3688 = vsel %vm3685, %v3684, %v3393
    %v3689 = vmul.f32 %v3651, %v2182
    %v3690 = vadd.f32 %v3689, %v2188
    %v3691 = vmax.f32 %v3690, 0.0
    %3692 = vmatprep.subr.mxu0 %v331
    %3693 = vmatpush1.msra.mxu0 %v330
    %3694 = vmatprep.subr.mxu0 %v327
    %3695 = vmatpush1.msra.mxu0 %v326
    %3696 = vmatprep.subr.mxu0 %v323
    %3697 = vmatpush1.msra.mxu0 %v322
    %3698 = vmatprep.subr.mxu0 %v319
    %3699 = vmatpush1.msra.mxu0 %v318
    %3700 = vmatprep.subr.mxu0 %v315
    %3701 = vmatpush1.msra.mxu0 %v314
    %3702 = vmatprep.subr.mxu0 %v311
    %3703 = vmatpush1.msra.mxu0 %v310
    %3704 = vmatprep.subr.mxu0 %v307
    %3705 = vmatpush1.msra.mxu0 %v306
    %3706 = vmatprep.subr.mxu0 %v303
    %3707 = vmatpush1.msra.mxu0 %v302
    %3708 = vmatprep.subr.mxu0 %v299
    %3709 = vmatpush1.msra.mxu0 %v298
    %3710 = vmatprep.subr.mxu0 %v295
    %3711 = vmatpush1.msra.mxu0 %v294
    %3712 = vmatprep.subr.mxu0 %v291
    %3713 = vmatpush1.msra.mxu0 %v290
    %3714 = vmatprep.subr.mxu0 %v287
    %3715 = vmatpush1.msra.mxu0 %v286
    %3716 = vmatprep.subr.mxu0 %v283
    %3717 = vmatpush1.msra.mxu0 %v282
    %3718 = vmatprep.subr.mxu0 %v279
    %3719 = vmatpush1.msra.mxu0 %v278
    %3720 = vmatprep.subr.mxu0 %v275
    %3721 = vmatpush1.msra.mxu0 %v274
    %3722 = vmatprep.subr.mxu0 %v271
    %3723 = vmatpush1.msra.mxu0 %v270
    %3724 = vmatprep.subr.mxu0 %v395
    %3725 = vmatpush2.msra.mxu0 %v394
    %3726 = vmatprep.subr.mxu0 %v391
    %3727 = vmatpush2.msra.mxu0 %v390
    %3728 = vmatprep.subr.mxu0 %v387
    %3729 = vmatpush2.msra.mxu0 %v386
    %3730 = vmatprep.subr.mxu0 %v383
    %3731 = vmatpush2.msra.mxu0 %v382
    %3732 = vmatprep.subr.mxu0 %v379
    %3733 = vmatpush2.msra.mxu0 %v378
    %3734 = vmatprep.subr.mxu0 %v375
    %3735 = vmatpush2.msra.mxu0 %v374
    %3736 = vmatprep.subr.mxu0 %v371
    %3737 = vmatpush2.msra.mxu0 %v370
    %3738 = vmatprep.subr.mxu0 %v367
    %3739 = vmatpush2.msra.mxu0 %v366
    %3740 = vmatprep.subr.mxu0 %v363
    %3741 = vmatpush2.msra.mxu0 %v362
    %3742 = vmatprep.subr.mxu0 %v359
    %3743 = vmatpush2.msra.mxu0 %v358
    %3744 = vmatprep.subr.mxu0 %v355
    %3745 = vmatpush2.msra.mxu0 %v354
    %3746 = vmatprep.subr.mxu0 %v351
    %3747 = vmatpush2.msra.mxu0 %v350
    %3748 = vmatprep.subr.mxu0 %v347
    %3749 = vmatpush2.msra.mxu0 %v346
    %3750 = vmatprep.subr.mxu0 %v343
    %3751 = vmatpush2.msra.mxu0 %v342
    %3752 = vmatprep.subr.mxu0 %v339
    %3753 = vmatpush2.msra.mxu0 %v338
    %3754 = vmatprep.subr.mxu0 %v335
    %3755 = vmatpush2.msra.mxu0 %v334
    %3756 = vmatprep.mubr.f32.mxu0 %v3562
    %3757 = vmatmul.mubr.f32.gmra.mxu0 %v3691
    %v3758 = vpop.f32.mrf.mxu0
    %v3759 = vadd.f32 %v2196, %v3758
    %v3760 = vpop.f32.mrf.mxu0
    %v3761 = vadd.f32 %v2200, %v3760
    %3762 = vdwg.mxu0
    %3763 = vmatprep.subr.mxu0 %v333
    %3764 = vmatpush1.msra.mxu0 %v332
    %3765 = vmatprep.subr.mxu0 %v329
    %3766 = vmatpush1.msra.mxu0 %v328
    %3767 = vmatprep.subr.mxu0 %v325
    %3768 = vmatpush1.msra.mxu0 %v324
    %3769 = vmatprep.subr.mxu0 %v321
    %3770 = vmatpush1.msra.mxu0 %v320
    %3771 = vmatprep.subr.mxu0 %v317
    %3772 = vmatpush1.msra.mxu0 %v316
    %3773 = vmatprep.subr.mxu0 %v313
    %3774 = vmatpush1.msra.mxu0 %v312
    %3775 = vmatprep.subr.mxu0 %v309
    %3776 = vmatpush1.msra.mxu0 %v308
    %3777 = vmatprep.subr.mxu0 %v305
    %3778 = vmatpush1.msra.mxu0 %v304
    %3779 = vmatprep.subr.mxu0 %v301
    %3780 = vmatpush1.msra.mxu0 %v300
    %3781 = vmatprep.subr.mxu0 %v297
    %3782 = vmatpush1.msra.mxu0 %v296
    %3783 = vmatprep.subr.mxu0 %v293
    %3784 = vmatpush1.msra.mxu0 %v292
    %3785 = vmatprep.subr.mxu0 %v289
    %3786 = vmatpush1.msra.mxu0 %v288
    %3787 = vmatprep.subr.mxu0 %v285
    %3788 = vmatpush1.msra.mxu0 %v284
    %3789 = vmatprep.subr.mxu0 %v281
    %3790 = vmatpush1.msra.mxu0 %v280
    %3791 = vmatprep.subr.mxu0 %v277
    %3792 = vmatpush1.msra.mxu0 %v276
    %3793 = vmatprep.subr.mxu0 %v273
    %3794 = vmatpush1.msra.mxu0 %v272
    %3795 = vmatprep.subr.mxu0 %v397
    %3796 = vmatpush2.msra.mxu0 %v396
    %3797 = vmatprep.subr.mxu0 %v393
    %3798 = vmatpush2.msra.mxu0 %v392
    %3799 = vmatprep.subr.mxu0 %v389
    %3800 = vmatpush2.msra.mxu0 %v388
    %3801 = vmatprep.subr.mxu0 %v385
    %3802 = vmatpush2.msra.mxu0 %v384
    %3803 = vmatprep.subr.mxu0 %v381
    %3804 = vmatpush2.msra.mxu0 %v380
    %3805 = vmatprep.subr.mxu0 %v377
    %3806 = vmatpush2.msra.mxu0 %v376
    %3807 = vmatprep.subr.mxu0 %v373
    %3808 = vmatpush2.msra.mxu0 %v372
    %3809 = vmatprep.subr.mxu0 %v369
    %3810 = vmatpush2.msra.mxu0 %v368
    %3811 = vmatprep.subr.mxu0 %v365
    %3812 = vmatpush2.msra.mxu0 %v364
    %3813 = vmatprep.subr.mxu0 %v361
    %3814 = vmatpush2.msra.mxu0 %v360
    %3815 = vmatprep.subr.mxu0 %v357
    %3816 = vmatpush2.msra.mxu0 %v356
    %3817 = vmatprep.subr.mxu0 %v353
    %3818 = vmatpush2.msra.mxu0 %v352
    %3819 = vmatprep.subr.mxu0 %v349
    %3820 = vmatpush2.msra.mxu0 %v348
    %3821 = vmatprep.subr.mxu0 %v345
    %3822 = vmatpush2.msra.mxu0 %v344
    %3823 = vmatprep.subr.mxu0 %v341
    %3824 = vmatpush2.msra.mxu0 %v340
    %3825 = vmatprep.subr.mxu0 %v337
    %3826 = vmatpush2.msra.mxu0 %v336
    %3827 = vmatprep.mubr.f32.mxu0 %v3562
    %3828 = vmatmul.mubr.f32.gmra.mxu0 %v3691
    %v3829 = vpop.f32.mrf.mxu0
    %v3830 = vadd.f32 %v2204, %v3829
    %v3831 = vpop.f32.mrf.mxu0
    %v3832 = vadd.f32 %v2208, %v3831
    %3833 = vdwg.mxu0
    %v3834 = vxor.u32 %v3759, 2147483648
    %v3835 = vxor.u32 %v3761, 2147483648
    %v3836 = vxor.u32 %v3830, 2147483648
    %v3837 = vmul.f32 %v3834, 1.442695
    %v3838 = vpow.pop %v3837
    %v3839 = vmul.f32 %v3835, 1.442695
    %v3840 = vpow.pop %v3839
    %v3841 = vmul.f32 %v3836, 1.442695
    %v3842 = vpow.pop %v3841
    %v3843 = vadd.f32 %v3838, 1.0
    %v3844 = vadd.f32 %v3840, 1.0
    %v3845 = vadd.f32 %v3842, 1.0
    %v3846 = vrcp.pop %v3843
    %v3847 = vmul.f32 1.0, %v3846
    %v3848 = vrcp.pop %v3844
    %v3849 = vmul.f32 1.0, %v3848
    %v3850 = vrcp.pop %v3845
    %v3851 = vmul.f32 1.0, %v3850
    %v3852 = vtanh.pop %v3832
    %v3853 = vmul.f32 %v3849, %v3560
    %v3854 = vmul.f32 %v3847, %v3852
    %v3855 = vadd.f32 %v3853, %v3854
    %v3856 = vtanh.pop %v3855
    %v3857 = vmul.f32 %v3851, %v3856
    %3858 = vmatprep.subr.mxu0 0.0
    %3859 = vmatpush1.msra.mxu0 %v414
    %3860 = vmatprep.subr.mxu0 0.0
    %3861 = vmatpush1.msra.mxu0 %v413
    %3862 = vmatprep.subr.mxu0 0.0
    %3863 = vmatpush1.msra.mxu0 %v412
    %3864 = vmatprep.subr.mxu0 0.0
    %3865 = vmatpush1.msra.mxu0 %v411
    %3866 = vmatprep.subr.mxu0 0.0
    %3867 = vmatpush1.msra.mxu0 %v410
    %3868 = vmatprep.subr.mxu0 0.0
    %3869 = vmatpush1.msra.mxu0 %v409
    %3870 = vmatprep.subr.mxu0 0.0
    %3871 = vmatpush1.msra.mxu0 %v408
    %3872 = vmatprep.subr.mxu0 0.0
    %3873 = vmatpush1.msra.mxu0 %v407
    %3874 = vmatprep.subr.mxu0 0.0
    %3875 = vmatpush1.msra.mxu0 %v406
    %3876 = vmatprep.subr.mxu0 0.0
    %3877 = vmatpush1.msra.mxu0 %v405
    %3878 = vmatprep.subr.mxu0 0.0
    %3879 = vmatpush1.msra.mxu0 %v404
    %3880 = vmatprep.subr.mxu0 0.0
    %3881 = vmatpush1.msra.mxu0 %v403
    %3882 = vmatprep.subr.mxu0 0.0
    %3883 = vmatpush1.msra.mxu0 %v402
    %3884 = vmatprep.subr.mxu0 0.0
    %3885 = vmatpush1.msra.mxu0 %v401
    %3886 = vmatprep.subr.mxu0 0.0
    %3887 = vmatpush1.msra.mxu0 %v400
    %3888 = vmatprep.subr.mxu0 0.0
    %3889 = vmatpush1.msra.mxu0 %v399
    %3890 = vmatprep.subr.mxu0 0.0
    %3891 = vmatpush2.msra.mxu0 0.0
    %3892 = vmatprep.subr.mxu0 0.0
    %3893 = vmatpush2.msra.mxu0 0.0
    %3894 = vmatprep.subr.mxu0 0.0
    %3895 = vmatpush2.msra.mxu0 0.0
    %3896 = vmatprep.subr.mxu0 0.0
    %3897 = vmatpush2.msra.mxu0 0.0
    %3898 = vmatprep.subr.mxu0 0.0
    %3899 = vmatpush2.msra.mxu0 0.0
    %3900 = vmatprep.subr.mxu0 0.0
    %3901 = vmatpush2.msra.mxu0 0.0
    %3902 = vmatprep.subr.mxu0 0.0
    %3903 = vmatpush2.msra.mxu0 0.0
    %3904 = vmatprep.subr.mxu0 0.0
    %3905 = vmatpush2.msra.mxu0 0.0
    %3906 = vmatprep.subr.mxu0 0.0
    %3907 = vmatpush2.msra.mxu0 0.0
    %3908 = vmatprep.subr.mxu0 0.0
    %3909 = vmatpush2.msra.mxu0 0.0
    %3910 = vmatprep.subr.mxu0 0.0
    %3911 = vmatpush2.msra.mxu0 0.0
    %3912 = vmatprep.subr.mxu0 0.0
    %3913 = vmatpush2.msra.mxu0 0.0
    %3914 = vmatprep.subr.mxu0 0.0
    %3915 = vmatpush2.msra.mxu0 0.0
    %3916 = vmatprep.subr.mxu0 0.0
    %3917 = vmatpush2.msra.mxu0 0.0
    %3918 = vmatprep.subr.mxu0 0.0
    %3919 = vmatpush2.msra.mxu0 0.0
    %3920 = vmatprep.subr.mxu0 0.0
    %3921 = vmatpush2.msra.mxu0 0.0
    %3922 = vmatprep.mubr.f32.mxu0 0.0
    %3923 = vmatmul.mubr.f32.gmra.mxu0 %v3857
    %v3924 = vpop.f32.mrf.mxu0
    %v3925 = vadd.f32 %v2383, %v3924
    %v3926 = vpop.f32.mrf.mxu0
    %3927 = vdwg.mxu0
    %3928 = vmax.xlane.f32.xlu0 %v3925
    %v3929 = vpop.xlane.xlu0 %3928
    %vm3930 = vcmp.eq.f32.partialorder %v3925, %v3929
    %v3931 = vsel %vm3930, %v417, 128
    %v3932 = vand.u32 %v3931, 65535
    %v3933 = vshra.s32 %v3931, 16
    %v3934 = vcvt.s32.f32 %v3932
    %v3935 = vcvt.s32.f32 %v3933
    %3936 = vmin.xlane.f32.xlu0 %v3935
    %v3937 = vpop.xlane.xlu0 %3936
    %vm3938 = vcmp.eq.f32.partialorder %v3935, %v3937
    %v3939 = vsel %vm3938, %v3934, inf
    %3940 = vmin.xlane.f32.xlu0 %v3939
    %v3941 = vpop.xlane.xlu0 %3940
    %v3942 = vcvt.f32.s32 %v3941
    %v3943 = vcvt.f32.s32 %v3937
    %v3944 = vshll.u32 %v3943, 16
    %v3945 = vadd.s32 %v3944, %v3942
    %v3946 = vcvt.s32.f32 %v3945
    %v3947 = vsel %vm3680, 1.0, %v3652
    %vm3948 = vcmp.gt.f32.partialorder %v3947, 0.5
    %v3949 = vsel %vm3948, -inf, %v3925
    %3950 = vmax.xlane.f32.xlu0 %v3949
    %v3951 = vpop.xlane.xlu0 %3950
    %vm3952 = vcmp.eq.f32.partialorder %v3949, %v3951
    %v3953 = vsel %vm3952, %v417, 128
    %v3954 = vand.u32 %v3953, 65535
    %v3955 = vshra.s32 %v3953, 16
    %v3956 = vcvt.s32.f32 %v3954
    %v3957 = vcvt.s32.f32 %v3955
    %3958 = vmin.xlane.f32.xlu0 %v3957
    %v3959 = vpop.xlane.xlu0 %3958
    %vm3960 = vcmp.eq.f32.partialorder %v3957, %v3959
    %v3961 = vsel %vm3960, %v3956, inf
    %3962 = vmin.xlane.f32.xlu0 %v3961
    %v3963 = vpop.xlane.xlu0 %3962
    %v3964 = vcvt.f32.s32 %v3963
    %v3965 = vcvt.f32.s32 %v3959
    %v3966 = vshll.u32 %v3965, 16
    %v3967 = vadd.s32 %v3966, %v3964
    %v3968 = vsub.f32 %v3949, %v3951
    %v3969 = vmul.f32 %v3968, 1.442695
    %v3970 = vpow.pop %v3969
    %3971 = vadd.xlane.f32.xlu0 %v3970
    %v3972 = vpop.xlane.xlu0 %3971
    %v3973 = vlog2.pop %v3972
    %v3974 = vmul.f32 %v3973, 0.6931472
    %vm3975 = vcmp.eq.s32.totalorder %v417, %v3967
    %v3976 = vsub.f32 %v3968, %v3974
    %v3977 = vsel %vm3975, %v3976, 0.0
    %3978 = vadd.xlane.f32.xlu0 %v3977
    %v3979 = vpop.xlane.xlu0 %3978
    %vm3980 = vcmp.eq.s32.totalorder %v417, 5
    %v3981 = vcvt.s32.f32 %v3967
    %v3982 = vsel %vm3980, %v3981, %v3687
    %v3983 = vsel %vm3980, %v3979, %v3688
    %v3984 = vmul.f32 %v3946, %v2182
    %v3985 = vadd.f32 %v3984, %v2188
    %v3986 = vmax.f32 %v3985, 0.0
    %3987 = vmatprep.subr.mxu0 %v331
    %3988 = vmatpush1.msra.mxu0 %v330
    %3989 = vmatprep.subr.mxu0 %v327
    %3990 = vmatpush1.msra.mxu0 %v326
    %3991 = vmatprep.subr.mxu0 %v323
    %3992 = vmatpush1.msra.mxu0 %v322
    %3993 = vmatprep.subr.mxu0 %v319
    %3994 = vmatpush1.msra.mxu0 %v318
    %3995 = vmatprep.subr.mxu0 %v315
    %3996 = vmatpush1.msra.mxu0 %v314
    %3997 = vmatprep.subr.mxu0 %v311
    %3998 = vmatpush1.msra.mxu0 %v310
    %3999 = vmatprep.subr.mxu0 %v307
    %4000 = vmatpush1.msra.mxu0 %v306
    %4001 = vmatprep.subr.mxu0 %v303
    %4002 = vmatpush1.msra.mxu0 %v302
    %4003 = vmatprep.subr.mxu0 %v299
    %4004 = vmatpush1.msra.mxu0 %v298
    %4005 = vmatprep.subr.mxu0 %v295
    %4006 = vmatpush1.msra.mxu0 %v294
    %4007 = vmatprep.subr.mxu0 %v291
    %4008 = vmatpush1.msra.mxu0 %v290
    %4009 = vmatprep.subr.mxu0 %v287
    %4010 = vmatpush1.msra.mxu0 %v286
    %4011 = vmatprep.subr.mxu0 %v283
    %4012 = vmatpush1.msra.mxu0 %v282
    %4013 = vmatprep.subr.mxu0 %v279
    %4014 = vmatpush1.msra.mxu0 %v278
    %4015 = vmatprep.subr.mxu0 %v275
    %4016 = vmatpush1.msra.mxu0 %v274
    %4017 = vmatprep.subr.mxu0 %v271
    %4018 = vmatpush1.msra.mxu0 %v270
    %4019 = vmatprep.subr.mxu0 %v395
    %4020 = vmatpush2.msra.mxu0 %v394
    %4021 = vmatprep.subr.mxu0 %v391
    %4022 = vmatpush2.msra.mxu0 %v390
    %4023 = vmatprep.subr.mxu0 %v387
    %4024 = vmatpush2.msra.mxu0 %v386
    %4025 = vmatprep.subr.mxu0 %v383
    %4026 = vmatpush2.msra.mxu0 %v382
    %4027 = vmatprep.subr.mxu0 %v379
    %4028 = vmatpush2.msra.mxu0 %v378
    %4029 = vmatprep.subr.mxu0 %v375
    %4030 = vmatpush2.msra.mxu0 %v374
    %4031 = vmatprep.subr.mxu0 %v371
    %4032 = vmatpush2.msra.mxu0 %v370
    %4033 = vmatprep.subr.mxu0 %v367
    %4034 = vmatpush2.msra.mxu0 %v366
    %4035 = vmatprep.subr.mxu0 %v363
    %4036 = vmatpush2.msra.mxu0 %v362
    %4037 = vmatprep.subr.mxu0 %v359
    %4038 = vmatpush2.msra.mxu0 %v358
    %4039 = vmatprep.subr.mxu0 %v355
    %4040 = vmatpush2.msra.mxu0 %v354
    %4041 = vmatprep.subr.mxu0 %v351
    %4042 = vmatpush2.msra.mxu0 %v350
    %4043 = vmatprep.subr.mxu0 %v347
    %4044 = vmatpush2.msra.mxu0 %v346
    %4045 = vmatprep.subr.mxu0 %v343
    %4046 = vmatpush2.msra.mxu0 %v342
    %4047 = vmatprep.subr.mxu0 %v339
    %4048 = vmatpush2.msra.mxu0 %v338
    %4049 = vmatprep.subr.mxu0 %v335
    %4050 = vmatpush2.msra.mxu0 %v334
    %4051 = vmatprep.mubr.f32.mxu0 %v3857
    %4052 = vmatmul.mubr.f32.gmra.mxu0 %v3986
    %v4053 = vpop.f32.mrf.mxu0
    %v4054 = vadd.f32 %v2196, %v4053
    %v4055 = vpop.f32.mrf.mxu0
    %v4056 = vadd.f32 %v2200, %v4055
    %4057 = vdwg.mxu0
    %4058 = vmatprep.subr.mxu0 %v333
    %4059 = vmatpush1.msra.mxu0 %v332
    %4060 = vmatprep.subr.mxu0 %v329
    %4061 = vmatpush1.msra.mxu0 %v328
    %4062 = vmatprep.subr.mxu0 %v325
    %4063 = vmatpush1.msra.mxu0 %v324
    %4064 = vmatprep.subr.mxu0 %v321
    %4065 = vmatpush1.msra.mxu0 %v320
    %4066 = vmatprep.subr.mxu0 %v317
    %4067 = vmatpush1.msra.mxu0 %v316
    %4068 = vmatprep.subr.mxu0 %v313
    %4069 = vmatpush1.msra.mxu0 %v312
    %4070 = vmatprep.subr.mxu0 %v309
    %4071 = vmatpush1.msra.mxu0 %v308
    %4072 = vmatprep.subr.mxu0 %v305
    %4073 = vmatpush1.msra.mxu0 %v304
    %4074 = vmatprep.subr.mxu0 %v301
    %4075 = vmatpush1.msra.mxu0 %v300
    %4076 = vmatprep.subr.mxu0 %v297
    %4077 = vmatpush1.msra.mxu0 %v296
    %4078 = vmatprep.subr.mxu0 %v293
    %4079 = vmatpush1.msra.mxu0 %v292
    %4080 = vmatprep.subr.mxu0 %v289
    %4081 = vmatpush1.msra.mxu0 %v288
    %4082 = vmatprep.subr.mxu0 %v285
    %4083 = vmatpush1.msra.mxu0 %v284
    %4084 = vmatprep.subr.mxu0 %v281
    %4085 = vmatpush1.msra.mxu0 %v280
    %4086 = vmatprep.subr.mxu0 %v277
    %4087 = vmatpush1.msra.mxu0 %v276
    %4088 = vmatprep.subr.mxu0 %v273
    %4089 = vmatpush1.msra.mxu0 %v272
    %4090 = vmatprep.subr.mxu0 %v397
    %4091 = vmatpush2.msra.mxu0 %v396
    %4092 = vmatprep.subr.mxu0 %v393
    %4093 = vmatpush2.msra.mxu0 %v392
    %4094 = vmatprep.subr.mxu0 %v389
    %4095 = vmatpush2.msra.mxu0 %v388
    %4096 = vmatprep.subr.mxu0 %v385
    %4097 = vmatpush2.msra.mxu0 %v384
    %4098 = vmatprep.subr.mxu0 %v381
    %4099 = vmatpush2.msra.mxu0 %v380
    %4100 = vmatprep.subr.mxu0 %v377
    %4101 = vmatpush2.msra.mxu0 %v376
    %4102 = vmatprep.subr.mxu0 %v373
    %4103 = vmatpush2.msra.mxu0 %v372
    %4104 = vmatprep.subr.mxu0 %v369
    %4105 = vmatpush2.msra.mxu0 %v368
    %4106 = vmatprep.subr.mxu0 %v365
    %4107 = vmatpush2.msra.mxu0 %v364
    %4108 = vmatprep.subr.mxu0 %v361
    %4109 = vmatpush2.msra.mxu0 %v360
    %4110 = vmatprep.subr.mxu0 %v357
    %4111 = vmatpush2.msra.mxu0 %v356
    %4112 = vmatprep.subr.mxu0 %v353
    %4113 = vmatpush2.msra.mxu0 %v352
    %4114 = vmatprep.subr.mxu0 %v349
    %4115 = vmatpush2.msra.mxu0 %v348
    %4116 = vmatprep.subr.mxu0 %v345
    %4117 = vmatpush2.msra.mxu0 %v344
    %4118 = vmatprep.subr.mxu0 %v341
    %4119 = vmatpush2.msra.mxu0 %v340
    %4120 = vmatprep.subr.mxu0 %v337
    %4121 = vmatpush2.msra.mxu0 %v336
    %4122 = vmatprep.mubr.f32.mxu0 %v3857
    %4123 = vmatmul.mubr.f32.gmra.mxu0 %v3986
    %v4124 = vpop.f32.mrf.mxu0
    %v4125 = vadd.f32 %v2204, %v4124
    %v4126 = vpop.f32.mrf.mxu0
    %v4127 = vadd.f32 %v2208, %v4126
    %4128 = vdwg.mxu0
    %v4129 = vxor.u32 %v4054, 2147483648
    %v4130 = vxor.u32 %v4056, 2147483648
    %v4131 = vxor.u32 %v4125, 2147483648
    %v4132 = vmul.f32 %v4129, 1.442695
    %v4133 = vpow.pop %v4132
    %v4134 = vmul.f32 %v4130, 1.442695
    %v4135 = vpow.pop %v4134
    %v4136 = vmul.f32 %v4131, 1.442695
    %v4137 = vpow.pop %v4136
    %v4138 = vadd.f32 %v4133, 1.0
    %v4139 = vadd.f32 %v4135, 1.0
    %v4140 = vadd.f32 %v4137, 1.0
    %v4141 = vrcp.pop %v4138
    %v4142 = vmul.f32 1.0, %v4141
    %v4143 = vrcp.pop %v4139
    %v4144 = vmul.f32 1.0, %v4143
    %v4145 = vrcp.pop %v4140
    %v4146 = vmul.f32 1.0, %v4145
    %v4147 = vtanh.pop %v4127
    %v4148 = vmul.f32 %v4144, %v3855
    %v4149 = vmul.f32 %v4142, %v4147
    %v4150 = vadd.f32 %v4148, %v4149
    %v4151 = vtanh.pop %v4150
    %v4152 = vmul.f32 %v4146, %v4151
    %4153 = vmatprep.subr.mxu0 0.0
    %4154 = vmatpush1.msra.mxu0 %v414
    %4155 = vmatprep.subr.mxu0 0.0
    %4156 = vmatpush1.msra.mxu0 %v413
    %4157 = vmatprep.subr.mxu0 0.0
    %4158 = vmatpush1.msra.mxu0 %v412
    %4159 = vmatprep.subr.mxu0 0.0
    %4160 = vmatpush1.msra.mxu0 %v411
    %4161 = vmatprep.subr.mxu0 0.0
    %4162 = vmatpush1.msra.mxu0 %v410
    %4163 = vmatprep.subr.mxu0 0.0
    %4164 = vmatpush1.msra.mxu0 %v409
    %4165 = vmatprep.subr.mxu0 0.0
    %4166 = vmatpush1.msra.mxu0 %v408
    %4167 = vmatprep.subr.mxu0 0.0
    %4168 = vmatpush1.msra.mxu0 %v407
    %4169 = vmatprep.subr.mxu0 0.0
    %4170 = vmatpush1.msra.mxu0 %v406
    %4171 = vmatprep.subr.mxu0 0.0
    %4172 = vmatpush1.msra.mxu0 %v405
    %4173 = vmatprep.subr.mxu0 0.0
    %4174 = vmatpush1.msra.mxu0 %v404
    %4175 = vmatprep.subr.mxu0 0.0
    %4176 = vmatpush1.msra.mxu0 %v403
    %4177 = vmatprep.subr.mxu0 0.0
    %4178 = vmatpush1.msra.mxu0 %v402
    %4179 = vmatprep.subr.mxu0 0.0
    %4180 = vmatpush1.msra.mxu0 %v401
    %4181 = vmatprep.subr.mxu0 0.0
    %4182 = vmatpush1.msra.mxu0 %v400
    %4183 = vmatprep.subr.mxu0 0.0
    %4184 = vmatpush1.msra.mxu0 %v399
    %4185 = vmatprep.subr.mxu0 0.0
    %4186 = vmatpush2.msra.mxu0 0.0
    %4187 = vmatprep.subr.mxu0 0.0
    %4188 = vmatpush2.msra.mxu0 0.0
    %4189 = vmatprep.subr.mxu0 0.0
    %4190 = vmatpush2.msra.mxu0 0.0
    %4191 = vmatprep.subr.mxu0 0.0
    %4192 = vmatpush2.msra.mxu0 0.0
    %4193 = vmatprep.subr.mxu0 0.0
    %4194 = vmatpush2.msra.mxu0 0.0
    %4195 = vmatprep.subr.mxu0 0.0
    %4196 = vmatpush2.msra.mxu0 0.0
    %4197 = vmatprep.subr.mxu0 0.0
    %4198 = vmatpush2.msra.mxu0 0.0
    %4199 = vmatprep.subr.mxu0 0.0
    %4200 = vmatpush2.msra.mxu0 0.0
    %4201 = vmatprep.subr.mxu0 0.0
    %4202 = vmatpush2.msra.mxu0 0.0
    %4203 = vmatprep.subr.mxu0 0.0
    %4204 = vmatpush2.msra.mxu0 0.0
    %4205 = vmatprep.subr.mxu0 0.0
    %4206 = vmatpush2.msra.mxu0 0.0
    %4207 = vmatprep.subr.mxu0 0.0
    %4208 = vmatpush2.msra.mxu0 0.0
    %4209 = vmatprep.subr.mxu0 0.0
    %4210 = vmatpush2.msra.mxu0 0.0
    %4211 = vmatprep.subr.mxu0 0.0
    %4212 = vmatpush2.msra.mxu0 0.0
    %4213 = vmatprep.subr.mxu0 0.0
    %4214 = vmatpush2.msra.mxu0 0.0
    %4215 = vmatprep.subr.mxu0 0.0
    %4216 = vmatpush2.msra.mxu0 0.0
    %4217 = vmatprep.mubr.f32.mxu0 0.0
    %4218 = vmatmul.mubr.f32.gmra.mxu0 %v4152
    %v4219 = vpop.f32.mrf.mxu0
    %v4220 = vadd.f32 %v2383, %v4219
    %v4221 = vpop.f32.mrf.mxu0
    %4222 = vdwg.mxu0
    %4223 = vmax.xlane.f32.xlu0 %v4220
    %v4224 = vpop.xlane.xlu0 %4223
    %vm4225 = vcmp.eq.f32.partialorder %v4220, %v4224
    %v4226 = vsel %vm4225, %v417, 128
    %v4227 = vand.u32 %v4226, 65535
    %v4228 = vshra.s32 %v4226, 16
    %v4229 = vcvt.s32.f32 %v4227
    %v4230 = vcvt.s32.f32 %v4228
    %4231 = vmin.xlane.f32.xlu0 %v4230
    %v4232 = vpop.xlane.xlu0 %4231
    %vm4233 = vcmp.eq.f32.partialorder %v4230, %v4232
    %v4234 = vsel %vm4233, %v4229, inf
    %4235 = vmin.xlane.f32.xlu0 %v4234
    %v4236 = vpop.xlane.xlu0 %4235
    %v4237 = vcvt.f32.s32 %v4236
    %v4238 = vcvt.f32.s32 %v4232
    %v4239 = vshll.u32 %v4238, 16
    %v4240 = vadd.s32 %v4239, %v4237
    %v4241 = vcvt.s32.f32 %v4240
    %v4242 = vsel %vm3975, 1.0, %v3947
    %vm4243 = vcmp.gt.f32.partialorder %v4242, 0.5
    %v4244 = vsel %vm4243, -inf, %v4220
    %4245 = vmax.xlane.f32.xlu0 %v4244
    %v4246 = vpop.xlane.xlu0 %4245
    %vm4247 = vcmp.eq.f32.partialorder %v4244, %v4246
    %v4248 = vsel %vm4247, %v417, 128
    %v4249 = vand.u32 %v4248, 65535
    %v4250 = vshra.s32 %v4248, 16
    %v4251 = vcvt.s32.f32 %v4249
    %v4252 = vcvt.s32.f32 %v4250
    %4253 = vmin.xlane.f32.xlu0 %v4252
    %v4254 = vpop.xlane.xlu0 %4253
    %vm4255 = vcmp.eq.f32.partialorder %v4252, %v4254
    %v4256 = vsel %vm4255, %v4251, inf
    %4257 = vmin.xlane.f32.xlu0 %v4256
    %v4258 = vpop.xlane.xlu0 %4257
    %v4259 = vcvt.f32.s32 %v4258
    %v4260 = vcvt.f32.s32 %v4254
    %v4261 = vshll.u32 %v4260, 16
    %v4262 = vadd.s32 %v4261, %v4259
    %v4263 = vsub.f32 %v4244, %v4246
    %v4264 = vmul.f32 %v4263, 1.442695
    %v4265 = vpow.pop %v4264
    %4266 = vadd.xlane.f32.xlu0 %v4265
    %v4267 = vpop.xlane.xlu0 %4266
    %v4268 = vlog2.pop %v4267
    %v4269 = vmul.f32 %v4268, 0.6931472
    %vm4270 = vcmp.eq.s32.totalorder %v417, %v4262
    %v4271 = vsub.f32 %v4263, %v4269
    %v4272 = vsel %vm4270, %v4271, 0.0
    %4273 = vadd.xlane.f32.xlu0 %v4272
    %v4274 = vpop.xlane.xlu0 %4273
    %vm4275 = vcmp.eq.s32.totalorder %v417, 6
    %v4276 = vcvt.s32.f32 %v4262
    %v4277 = vsel %vm4275, %v4276, %v3982
    %v4278 = vsel %vm4275, %v4274, %v3983
    %v4279 = vmul.f32 %v4241, %v2182
    %v4280 = vadd.f32 %v4279, %v2188
    %v4281 = vmax.f32 %v4280, 0.0
    %4282 = vmatprep.subr.mxu0 %v331
    %4283 = vmatpush1.msra.mxu0 %v330
    %4284 = vmatprep.subr.mxu0 %v327
    %4285 = vmatpush1.msra.mxu0 %v326
    %4286 = vmatprep.subr.mxu0 %v323
    %4287 = vmatpush1.msra.mxu0 %v322
    %4288 = vmatprep.subr.mxu0 %v319
    %4289 = vmatpush1.msra.mxu0 %v318
    %4290 = vmatprep.subr.mxu0 %v315
    %4291 = vmatpush1.msra.mxu0 %v314
    %4292 = vmatprep.subr.mxu0 %v311
    %4293 = vmatpush1.msra.mxu0 %v310
    %4294 = vmatprep.subr.mxu0 %v307
    %4295 = vmatpush1.msra.mxu0 %v306
    %4296 = vmatprep.subr.mxu0 %v303
    %4297 = vmatpush1.msra.mxu0 %v302
    %4298 = vmatprep.subr.mxu0 %v299
    %4299 = vmatpush1.msra.mxu0 %v298
    %4300 = vmatprep.subr.mxu0 %v295
    %4301 = vmatpush1.msra.mxu0 %v294
    %4302 = vmatprep.subr.mxu0 %v291
    %4303 = vmatpush1.msra.mxu0 %v290
    %4304 = vmatprep.subr.mxu0 %v287
    %4305 = vmatpush1.msra.mxu0 %v286
    %4306 = vmatprep.subr.mxu0 %v283
    %4307 = vmatpush1.msra.mxu0 %v282
    %4308 = vmatprep.subr.mxu0 %v279
    %4309 = vmatpush1.msra.mxu0 %v278
    %4310 = vmatprep.subr.mxu0 %v275
    %4311 = vmatpush1.msra.mxu0 %v274
    %4312 = vmatprep.subr.mxu0 %v271
    %4313 = vmatpush1.msra.mxu0 %v270
    %4314 = vmatprep.subr.mxu0 %v395
    %4315 = vmatpush2.msra.mxu0 %v394
    %4316 = vmatprep.subr.mxu0 %v391
    %4317 = vmatpush2.msra.mxu0 %v390
    %4318 = vmatprep.subr.mxu0 %v387
    %4319 = vmatpush2.msra.mxu0 %v386
    %4320 = vmatprep.subr.mxu0 %v383
    %4321 = vmatpush2.msra.mxu0 %v382
    %4322 = vmatprep.subr.mxu0 %v379
    %4323 = vmatpush2.msra.mxu0 %v378
    %4324 = vmatprep.subr.mxu0 %v375
    %4325 = vmatpush2.msra.mxu0 %v374
    %4326 = vmatprep.subr.mxu0 %v371
    %4327 = vmatpush2.msra.mxu0 %v370
    %4328 = vmatprep.subr.mxu0 %v367
    %4329 = vmatpush2.msra.mxu0 %v366
    %4330 = vmatprep.subr.mxu0 %v363
    %4331 = vmatpush2.msra.mxu0 %v362
    %4332 = vmatprep.subr.mxu0 %v359
    %4333 = vmatpush2.msra.mxu0 %v358
    %4334 = vmatprep.subr.mxu0 %v355
    %4335 = vmatpush2.msra.mxu0 %v354
    %4336 = vmatprep.subr.mxu0 %v351
    %4337 = vmatpush2.msra.mxu0 %v350
    %4338 = vmatprep.subr.mxu0 %v347
    %4339 = vmatpush2.msra.mxu0 %v346
    %4340 = vmatprep.subr.mxu0 %v343
    %4341 = vmatpush2.msra.mxu0 %v342
    %4342 = vmatprep.subr.mxu0 %v339
    %4343 = vmatpush2.msra.mxu0 %v338
    %4344 = vmatprep.subr.mxu0 %v335
    %4345 = vmatpush2.msra.mxu0 %v334
    %4346 = vmatprep.mubr.f32.mxu0 %v4152
    %4347 = vmatmul.mubr.f32.gmra.mxu0 %v4281
    %v4348 = vpop.f32.mrf.mxu0
    %v4349 = vadd.f32 %v2196, %v4348
    %v4350 = vpop.f32.mrf.mxu0
    %v4351 = vadd.f32 %v2200, %v4350
    %4352 = vdwg.mxu0
    %4353 = vmatprep.subr.mxu0 %v333
    %4354 = vmatpush1.msra.mxu0 %v332
    %4355 = vmatprep.subr.mxu0 %v329
    %4356 = vmatpush1.msra.mxu0 %v328
    %4357 = vmatprep.subr.mxu0 %v325
    %4358 = vmatpush1.msra.mxu0 %v324
    %4359 = vmatprep.subr.mxu0 %v321
    %4360 = vmatpush1.msra.mxu0 %v320
    %4361 = vmatprep.subr.mxu0 %v317
    %4362 = vmatpush1.msra.mxu0 %v316
    %4363 = vmatprep.subr.mxu0 %v313
    %4364 = vmatpush1.msra.mxu0 %v312
    %4365 = vmatprep.subr.mxu0 %v309
    %4366 = vmatpush1.msra.mxu0 %v308
    %4367 = vmatprep.subr.mxu0 %v305
    %4368 = vmatpush1.msra.mxu0 %v304
    %4369 = vmatprep.subr.mxu0 %v301
    %4370 = vmatpush1.msra.mxu0 %v300
    %4371 = vmatprep.subr.mxu0 %v297
    %4372 = vmatpush1.msra.mxu0 %v296
    %4373 = vmatprep.subr.mxu0 %v293
    %4374 = vmatpush1.msra.mxu0 %v292
    %4375 = vmatprep.subr.mxu0 %v289
    %4376 = vmatpush1.msra.mxu0 %v288
    %4377 = vmatprep.subr.mxu0 %v285
    %4378 = vmatpush1.msra.mxu0 %v284
    %4379 = vmatprep.subr.mxu0 %v281
    %4380 = vmatpush1.msra.mxu0 %v280
    %4381 = vmatprep.subr.mxu0 %v277
    %4382 = vmatpush1.msra.mxu0 %v276
    %4383 = vmatprep.subr.mxu0 %v273
    %4384 = vmatpush1.msra.mxu0 %v272
    %4385 = vmatprep.subr.mxu0 %v397
    %4386 = vmatpush2.msra.mxu0 %v396
    %4387 = vmatprep.subr.mxu0 %v393
    %4388 = vmatpush2.msra.mxu0 %v392
    %4389 = vmatprep.subr.mxu0 %v389
    %4390 = vmatpush2.msra.mxu0 %v388
    %4391 = vmatprep.subr.mxu0 %v385
    %4392 = vmatpush2.msra.mxu0 %v384
    %4393 = vmatprep.subr.mxu0 %v381
    %4394 = vmatpush2.msra.mxu0 %v380
    %4395 = vmatprep.subr.mxu0 %v377
    %4396 = vmatpush2.msra.mxu0 %v376
    %4397 = vmatprep.subr.mxu0 %v373
    %4398 = vmatpush2.msra.mxu0 %v372
    %4399 = vmatprep.subr.mxu0 %v369
    %4400 = vmatpush2.msra.mxu0 %v368
    %4401 = vmatprep.subr.mxu0 %v365
    %4402 = vmatpush2.msra.mxu0 %v364
    %4403 = vmatprep.subr.mxu0 %v361
    %4404 = vmatpush2.msra.mxu0 %v360
    %4405 = vmatprep.subr.mxu0 %v357
    %4406 = vmatpush2.msra.mxu0 %v356
    %4407 = vmatprep.subr.mxu0 %v353
    %4408 = vmatpush2.msra.mxu0 %v352
    %4409 = vmatprep.subr.mxu0 %v349
    %4410 = vmatpush2.msra.mxu0 %v348
    %4411 = vmatprep.subr.mxu0 %v345
    %4412 = vmatpush2.msra.mxu0 %v344
    %4413 = vmatprep.subr.mxu0 %v341
    %4414 = vmatpush2.msra.mxu0 %v340
    %4415 = vmatprep.subr.mxu0 %v337
    %4416 = vmatpush2.msra.mxu0 %v336
    %4417 = vmatprep.mubr.f32.mxu0 %v4152
    %4418 = vmatmul.mubr.f32.gmra.mxu0 %v4281
    %v4419 = vpop.f32.mrf.mxu0
    %v4420 = vadd.f32 %v2204, %v4419
    %v4421 = vpop.f32.mrf.mxu0
    %v4422 = vadd.f32 %v2208, %v4421
    %4423 = vdwg.mxu0
    %v4424 = vxor.u32 %v4349, 2147483648
    %v4425 = vxor.u32 %v4351, 2147483648
    %v4426 = vxor.u32 %v4420, 2147483648
    %v4427 = vmul.f32 %v4424, 1.442695
    %v4428 = vpow.pop %v4427
    %v4429 = vmul.f32 %v4425, 1.442695
    %v4430 = vpow.pop %v4429
    %v4431 = vmul.f32 %v4426, 1.442695
    %v4432 = vpow.pop %v4431
    %v4433 = vadd.f32 %v4428, 1.0
    %v4434 = vadd.f32 %v4430, 1.0
    %v4435 = vadd.f32 %v4432, 1.0
    %v4436 = vrcp.pop %v4433
    %v4437 = vmul.f32 1.0, %v4436
    %v4438 = vrcp.pop %v4434
    %v4439 = vmul.f32 1.0, %v4438
    %v4440 = vrcp.pop %v4435
    %v4441 = vmul.f32 1.0, %v4440
    %v4442 = vtanh.pop %v4422
    %v4443 = vmul.f32 %v4439, %v4150
    %v4444 = vmul.f32 %v4437, %v4442
    %v4445 = vadd.f32 %v4443, %v4444
    %v4446 = vtanh.pop %v4445
    %v4447 = vmul.f32 %v4441, %v4446
    %4448 = vmatprep.subr.mxu0 0.0
    %4449 = vmatpush1.msra.mxu0 %v414
    %4450 = vmatprep.subr.mxu0 0.0
    %4451 = vmatpush1.msra.mxu0 %v413
    %4452 = vmatprep.subr.mxu0 0.0
    %4453 = vmatpush1.msra.mxu0 %v412
    %4454 = vmatprep.subr.mxu0 0.0
    %4455 = vmatpush1.msra.mxu0 %v411
    %4456 = vmatprep.subr.mxu0 0.0
    %4457 = vmatpush1.msra.mxu0 %v410
    %4458 = vmatprep.subr.mxu0 0.0
    %4459 = vmatpush1.msra.mxu0 %v409
    %4460 = vmatprep.subr.mxu0 0.0
    %4461 = vmatpush1.msra.mxu0 %v408
    %4462 = vmatprep.subr.mxu0 0.0
    %4463 = vmatpush1.msra.mxu0 %v407
    %4464 = vmatprep.subr.mxu0 0.0
    %4465 = vmatpush1.msra.mxu0 %v406
    %4466 = vmatprep.subr.mxu0 0.0
    %4467 = vmatpush1.msra.mxu0 %v405
    %4468 = vmatprep.subr.mxu0 0.0
    %4469 = vmatpush1.msra.mxu0 %v404
    %4470 = vmatprep.subr.mxu0 0.0
    %4471 = vmatpush1.msra.mxu0 %v403
    %4472 = vmatprep.subr.mxu0 0.0
    %4473 = vmatpush1.msra.mxu0 %v402
    %4474 = vmatprep.subr.mxu0 0.0
    %4475 = vmatpush1.msra.mxu0 %v401
    %4476 = vmatprep.subr.mxu0 0.0
    %4477 = vmatpush1.msra.mxu0 %v400
    %4478 = vmatprep.subr.mxu0 0.0
    %4479 = vmatpush1.msra.mxu0 %v399
    %4480 = vmatprep.subr.mxu0 0.0
    %4481 = vmatpush2.msra.mxu0 0.0
    %4482 = vmatprep.subr.mxu0 0.0
    %4483 = vmatpush2.msra.mxu0 0.0
    %4484 = vmatprep.subr.mxu0 0.0
    %4485 = vmatpush2.msra.mxu0 0.0
    %4486 = vmatprep.subr.mxu0 0.0
    %4487 = vmatpush2.msra.mxu0 0.0
    %4488 = vmatprep.subr.mxu0 0.0
    %4489 = vmatpush2.msra.mxu0 0.0
    %4490 = vmatprep.subr.mxu0 0.0
    %4491 = vmatpush2.msra.mxu0 0.0
    %4492 = vmatprep.subr.mxu0 0.0
    %4493 = vmatpush2.msra.mxu0 0.0
    %4494 = vmatprep.subr.mxu0 0.0
    %4495 = vmatpush2.msra.mxu0 0.0
    %4496 = vmatprep.subr.mxu0 0.0
    %4497 = vmatpush2.msra.mxu0 0.0
    %4498 = vmatprep.subr.mxu0 0.0
    %4499 = vmatpush2.msra.mxu0 0.0
    %4500 = vmatprep.subr.mxu0 0.0
    %4501 = vmatpush2.msra.mxu0 0.0
    %4502 = vmatprep.subr.mxu0 0.0
    %4503 = vmatpush2.msra.mxu0 0.0
    %4504 = vmatprep.subr.mxu0 0.0
    %4505 = vmatpush2.msra.mxu0 0.0
    %4506 = vmatprep.subr.mxu0 0.0
    %4507 = vmatpush2.msra.mxu0 0.0
    %4508 = vmatprep.subr.mxu0 0.0
    %4509 = vmatpush2.msra.mxu0 0.0
    %4510 = vmatprep.subr.mxu0 0.0
    %4511 = vmatpush2.msra.mxu0 0.0
    %4512 = vmatprep.mubr.f32.mxu0 0.0
    %4513 = vmatmul.mubr.f32.gmra.mxu0 %v4447
    %v4514 = vpop.f32.mrf.mxu0
    %v4515 = vadd.f32 %v2383, %v4514
    %v4516 = vpop.f32.mrf.mxu0
    %4517 = vdwg.mxu0
    %v4518 = vsel %vm4270, 1.0, %v4242
    %vm4519 = vcmp.gt.f32.partialorder %v4518, 0.5
    %v4520 = vsel %vm4519, -inf, %v4515
    %4521 = vmax.xlane.f32.xlu0 %v4520
    %v4522 = vpop.xlane.xlu0 %4521
    %vm4523 = vcmp.eq.f32.partialorder %v4520, %v4522
    %v4524 = vsel %vm4523, %v417, 128
    %v4525 = vand.u32 %v4524, 65535
    %v4526 = vshra.s32 %v4524, 16
    %v4527 = vcvt.s32.f32 %v4525
    %v4528 = vcvt.s32.f32 %v4526
    %4529 = vmin.xlane.f32.xlu0 %v4528
    %v4530 = vpop.xlane.xlu0 %4529
    %vm4531 = vcmp.eq.f32.partialorder %v4528, %v4530
    %v4532 = vsel %vm4531, %v4527, inf
    %4533 = vmin.xlane.f32.xlu0 %v4532
    %v4534 = vpop.xlane.xlu0 %4533
    %v4535 = vcvt.f32.s32 %v4534
    %v4536 = vcvt.f32.s32 %v4530
    %v4537 = vshll.u32 %v4536, 16
    %v4538 = vadd.s32 %v4537, %v4535
    %v4539 = vsub.f32 %v4520, %v4522
    %v4540 = vmul.f32 %v4539, 1.442695
    %v4541 = vpow.pop %v4540
    %4542 = vadd.xlane.f32.xlu0 %v4541
    %v4543 = vpop.xlane.xlu0 %4542
    %v4544 = vlog2.pop %v4543
    %v4545 = vmul.f32 %v4544, 0.6931472
    %vm4546 = vcmp.eq.s32.totalorder %v417, %v4538
    %v4547 = vsub.f32 %v4539, %v4545
    %v4548 = vsel %vm4546, %v4547, 0.0
    %4549 = vadd.xlane.f32.xlu0 %v4548
    %v4550 = vpop.xlane.xlu0 %4549
    %vm4551 = vcmp.eq.s32.totalorder %v417, 7
    %v4552 = vcvt.s32.f32 %v4538
    %v4553 = vsel %vm4551, %v4552, %v4277
    %v4554 = vsel %vm4551, %v4550, %v4278
    %vm4555 = vcmask 64512
    %4556 = vst.msk [vmem:[#allocation13] sm:$0xff] %vm4555, %v4553
    %4557 = vst.msk [vmem:[#allocation14] sm:$0xff] %vm4555, %v4554
    // Predicated region
    $region70: #{tpu_custom_call.1} parent=1 // pred_check
      _
    $region71: #{tpu_custom_call.1} parent=1 // pred_check_branch
      %4559 = sbr.rel (0) target = $region73
    $region72: #{tpu_custom_call.1} parent=1 // pred_region
      %s4561 = ssub.s32 128, 128
      %4562 = vsyncadd [#allocation4], %s4561
      %s4564 = sshll.u32 [#allocation13], 4
      %s4565 = int_to_ptr.vmem [resolvable:$true] %s4564
      %4567 = dma.vmem_to_hbm [thread:$0]  %s4565, 128, %s11, [#allocation4]
    $region73: #{tpu_custom_call.1} parent=1 // pred_fallthru
      _
    // Predicated region
    $region74: #{tpu_custom_call.1} parent=1 // pred_check
      _
    $region75: #{tpu_custom_call.1} parent=1 // pred_check_branch
      %4569 = sbr.rel (0) target = $region77
    $region76: #{tpu_custom_call.1} parent=1 // pred_region
      %s4571 = ssub.s32 128, 128
      %4572 = vsyncadd [#allocation15], %s4571
      %s4574 = sshll.u32 [#allocation14], 4
      %s4575 = int_to_ptr.vmem [resolvable:$true] %s4574
      %4577 = dma.vmem_to_hbm [thread:$0]  %s4575, 128, %s12, [#allocation15]
    $region77: #{tpu_custom_call.1} parent=1 // pred_fallthru
      _
    // Predicated region
    $region78: #{tpu_custom_call.1} parent=1 // pred_check
      _
    $region79: #{tpu_custom_call.1} parent=1 // pred_check_branch
      %4579 = sbr.rel (0) target = $region81
    $region80: #{tpu_custom_call.1} parent=1 // pred_region
      %4580 = dma.done [#allocation4], 128
    $region81: #{tpu_custom_call.1} parent=1 // pred_fallthru
      _
    // Predicated region
    $region82: #{tpu_custom_call.1} parent=1 // pred_check
      _
    $region83: #{tpu_custom_call.1} parent=1 // pred_check_branch
      %4582 = sbr.rel (0) target = $region85
    $region84: #{tpu_custom_call.1} parent=1 // pred_region
      %4583 = dma.done [#allocation15], 128
    $region85: #{tpu_custom_call.1} parent=1 // pred_fallthru
      _
    %4584 = vsyncpa [#allocation3], 1
    %4585 = vsyncpa [#allocation6], 1
    %4586 = vsyncpa [#allocation9], 1
    %4587 = vsyncpa [#allocation12], 1
    %4588 = vsyncpa [#allocation4], 1
    %4589 = vsyncpa [#allocation15], 1

</llo_original>
